<compile_context>
chip_gen: v7x
topology: tpu7x:2x2x1
jax: 0.10.0
libtpu: 0.0.40
codegen_flags: <defaults>
</compile_context>

<pallas_src>
import functools
import math

import jax
import jax.numpy as jnp
from jax.experimental import pallas as pl
from jax.experimental.pallas import tpu as pltpu


CFG = dict(vocab=100, max_pos=16, hidden=32, heads=4, layers=2, inter=64)


def _gelu(x):
    # tanh-approx GELU in f32 (rides the EUP slot).
    return 0.5 * x * (1.0 + jnp.tanh(0.7978845608028654 * (x + 0.044715 * x * x * x)))


# ----------------------------- fused Pallas kernel ---------------------------

def bert_encoder_kernel(x_ref, m_ref, eg_ref, eb_ref,
                        wqkv_ref, bqkv_ref, wo_ref, bo_ref, ln1g_ref, ln1b_ref,
                        w1_ref, b1_ref, w2_ref, b2_ref, ln2g_ref, ln2b_ref,
                        o_ref, *, num_heads, num_layers, eps):
    """One batch row per grid step: embedding LN + all encoder layers, fully in VMEM.

    Blocks:
      x_ref  : [1, T, H] f32   raw embedding sum for this batch
      m_ref  : [1, 1, T] f32   additive attention mask (0 keep / -10000 PAD)
      weights: stacked over layers, e.g. wqkv_ref [L, H, 3H] bf16, wo_ref [L, NH, Dh, H] bf16
      o_ref  : [1, T, H] f32   final hidden states
    """
    H = x_ref.shape[2]
    dh = H // num_heads
    mask = m_ref[0]                                   # [1, T] f32, broadcasts over queries

    def layer_norm(v, g, b):
        mu = jnp.mean(v, axis=-1, keepdims=True)
        vc = v - mu
        var = jnp.mean(vc * vc, axis=-1, keepdims=True)
        return vc * jax.lax.rsqrt(var + eps) * g + b

    # Embedding LayerNorm fused in (saves a pallas_call + an HBM round trip).
    x = layer_norm(x_ref[0], eg_ref[...], eb_ref[...])            # [T, H] f32

    for li in range(num_layers):                                  # static unroll (L small)
        # --- fused Q|K|V projection; softmax scale pre-folded into the Q weights ---
        qkv = jnp.dot(x.astype(wqkv_ref.dtype), wqkv_ref[li],
                      preferred_element_type=jnp.float32) + bqkv_ref[li]   # [T, 3H] f32

        # --- attention: per-head slices of the qkv slab, context folded directly
        #     into the output projection (no concatenation, no layout shuffles) ---
        attn = jnp.zeros_like(x)                                   # [T, H] f32
        for hd in range(num_heads):
            q = qkv[:, hd * dh:(hd + 1) * dh].astype(jnp.bfloat16)            # [T, Dh]
            k = qkv[:, H + hd * dh:H + (hd + 1) * dh].astype(jnp.bfloat16)    # [T, Dh]
            v = qkv[:, 2 * H + hd * dh:2 * H + (hd + 1) * dh].astype(jnp.bfloat16)
            s = jnp.dot(q, k.T, preferred_element_type=jnp.float32) + mask    # [T, T] f32
            s = s - jnp.max(s, axis=-1, keepdims=True)
            p = jnp.exp(s)
            p = p / jnp.sum(p, axis=-1, keepdims=True)
            ctx = jnp.dot(p.astype(jnp.bfloat16), v,
                          preferred_element_type=jnp.float32)                 # [T, Dh] f32
            # head's slice of the output projection: ctx_h @ wo[h*Dh:(h+1)*Dh, :]
            attn = attn + jnp.dot(ctx.astype(wo_ref.dtype), wo_ref[li, hd],
                                  preferred_element_type=jnp.float32)         # [T, H] f32

        # --- out-proj bias + residual + LayerNorm ---
        x = layer_norm(attn + bo_ref[li] + x, ln1g_ref[li], ln1b_ref[li])

        # --- FFN (matmul + GELU + matmul) + residual + LayerNorm;
        #     the [T, I] intermediate never leaves vregs/VMEM ---
        ff = jnp.dot(x.astype(w1_ref.dtype), w1_ref[li],
                     preferred_element_type=jnp.float32) + b1_ref[li]          # [T, I]
        ff = _gelu(ff)
        y = jnp.dot(ff.astype(w2_ref.dtype), w2_ref[li],
                    preferred_element_type=jnp.float32) + b2_ref[li]           # [T, H]
        x = layer_norm(y + x, ln2g_ref[li], ln2b_ref[li])

    o_ref[0] = x.astype(o_ref.dtype)


def pallas_bert_encoder(params, x_emb, add_mask, cfg):
    """x_emb: [B, T, H] f32 raw embedding sum; add_mask: [B, 1, T] f32 additive mask."""
    B, T, H = x_emb.shape
    NH, L, I = cfg["heads"], cfg["layers"], cfg["inter"]
    dh = H // NH

    def full(shape):
        # Whole-array block, constant across grid steps (loaded into VMEM once).
        return pl.BlockSpec(shape, lambda b: (0,) * len(shape))

    return pl.pallas_call(
        functools.partial(bert_encoder_kernel,
                          num_heads=NH, num_layers=L, eps=1e-12),
        grid=(B,),
        in_specs=[
            pl.BlockSpec((1, T, H), lambda b: (b, 0, 0)),     # x_emb (this batch)
            pl.BlockSpec((1, 1, T), lambda b: (b, 0, 0)),     # additive mask (this batch)
            full((1, H)), full((1, H)),                       # emb LN gamma / beta
            full((L, H, 3 * H)), full((L, 1, 3 * H)),         # wqkv, bqkv
            full((L, NH, dh, H)), full((L, 1, H)),            # wo (per-head rows), bo
            full((L, 1, H)), full((L, 1, H)),                 # ln1 gamma / beta
            full((L, H, I)), full((L, 1, I)),                 # w1, b1
            full((L, I, H)), full((L, 1, H)),                 # w2, b2
            full((L, 1, H)), full((L, 1, H)),                 # ln2 gamma / beta
        ],
        out_specs=pl.BlockSpec((1, T, H), lambda b: (b, 0, 0)),
        out_shape=jax.ShapeDtypeStruct((B, T, H), jnp.float32),
        compiler_params=pltpu.CompilerParams(
            dimension_semantics=("parallel",)),               # v7x: one batch per TC
    )(x_emb, add_mask,
      params["emb_ln_g"], params["emb_ln_b"],
      params["wqkv"], params["bqkv"],
      params["wo"], params["bo"], params["ln1_g"], params["ln1_b"],
      params["w1"], params["b1"], params["w2"], params["b2"],
      params["ln2_g"], params["ln2_b"])


# ----------------------------- Model definition ------------------------------

def init_params(key, cfg):
    H, I, L, NH = cfg["hidden"], cfg["inter"], cfg["layers"], cfg["heads"]
    dh = H // NH
    scale = 1.0 / math.sqrt(dh)

    def nrm(k, shape):
        return jax.random.normal(k, shape, jnp.float32) * 0.02

    keys = jax.random.split(key, 4 + L)
    params = {
        "word_emb": nrm(keys[0], (cfg["vocab"], H)),
        "pos_emb": nrm(keys[1], (cfg["max_pos"], H)),
        "type_emb": nrm(keys[2], (2, H)),
        "emb_ln_g": jnp.ones((1, H), jnp.float32),
        "emb_ln_b": jnp.zeros((1, H), jnp.float32),
        "cls_w": nrm(keys[3], (H, 1)),
        "cls_b": jnp.zeros((1,), jnp.float32),
    }

    wqkv, bqkv, wo, bo = [], [], [], []
    ln1g, ln1b, w1, b1, w2, b2, ln2g, ln2b = [], [], [], [], [], [], [], []
    for li in range(L):
        lk = jax.random.split(keys[4 + li], 4)
        w_qkv = nrm(lk[0], (H, 3 * H))
        # Fold the 1/sqrt(Dh) softmax scale into the Q columns (zero runtime cost,
        # done in f32 before the bf16 cast so no extra rounding step at runtime).
        w_qkv = w_qkv.at[:, :H].multiply(scale)
        b_qkv = jnp.zeros((1, 3 * H), jnp.float32).at[:, :H].multiply(scale)
        wqkv.append(w_qkv.astype(jnp.bfloat16))
        bqkv.append(b_qkv)
        # Output projection stored per head: [NH, Dh, H] so the kernel slices by ref index.
        wo.append(nrm(lk[1], (H, H)).reshape(NH, dh, H).astype(jnp.bfloat16))
        bo.append(jnp.zeros((1, H), jnp.float32))
        ln1g.append(jnp.ones((1, H), jnp.float32))
        ln1b.append(jnp.zeros((1, H), jnp.float32))
        w1.append(nrm(lk[2], (H, I)).astype(jnp.bfloat16))
        b1.append(jnp.zeros((1, I), jnp.float32))
        w2.append(nrm(lk[3], (I, H)).astype(jnp.bfloat16))
        b2.append(jnp.zeros((1, H), jnp.float32))
        ln2g.append(jnp.ones((1, H), jnp.float32))
        ln2b.append(jnp.zeros((1, H), jnp.float32))

    params.update(
        wqkv=jnp.stack(wqkv), bqkv=jnp.stack(bqkv),
        wo=jnp.stack(wo), bo=jnp.stack(bo),
        ln1_g=jnp.stack(ln1g), ln1_b=jnp.stack(ln1b),
        w1=jnp.stack(w1), b1=jnp.stack(b1),
        w2=jnp.stack(w2), b2=jnp.stack(b2),
        ln2_g=jnp.stack(ln2g), ln2_b=jnp.stack(ln2b),
    )
    return params


def sentiment_classifier_forward(params, seq, attn_masks, cfg=CFG):
    """seq: int32 [B, T] token ids; attn_masks: [B, T] (1 = keep, 0 = PAD)."""
    B, T = seq.shape

    # Embedding gather stays in plain JAX glue (data-dependent gather).
    x = (params["word_emb"][seq]
         + params["pos_emb"][:T][None, :, :]
         + params["type_emb"][0][None, None, :])                  # [B, T, H] f32

    # Extended additive attention mask, BERT-style: 0 for keep, -10000 for PAD.
    add_mask = ((1.0 - attn_masks.astype(jnp.float32)) * -10000.0)[:, None, :]  # [B, 1, T]

    # Whole encoder (embedding LN + all layers) in one fused Pallas kernel.
    hidden = pallas_bert_encoder(params, x, add_mask, cfg)        # [B, T, H] f32

    cls_rep = hidden[:, 0]                                        # [B, H]  ([CLS] token)
    # Classifier head in plain JAX: [B,H]@[H,1] is ~64 MACs; a Pallas launch would be pure overhead.
    logits = cls_rep @ params["cls_w"] + params["cls_b"]          # [B, 1] f32
    return logits


# --------------------------------- Driver ------------------------------------

if __name__ == "__main__":
    B, T = 2, 8
    key = jax.random.PRNGKey(0)
    k_param, k_seq = jax.random.split(key)

    params = init_params(k_param, CFG)

    seq = jax.random.randint(k_seq, (B, T), 0, CFG["vocab"], dtype=jnp.int32)
    # Second sequence has two PAD positions at the end.
    attn_masks = jnp.array([[1, 1, 1, 1, 1, 1, 1, 1],
                            [1, 1, 1, 1, 1, 1, 0, 0]], dtype=jnp.int32)

    logits = jax.jit(sentiment_classifier_forward)(params, seq, attn_masks)
    logits = jax.block_until_ready(logits)

    assert logits.shape == (B, 1), logits.shape
    assert logits.dtype == jnp.float32
    assert bool(jnp.all(jnp.isfinite(logits)))
    print("KERNEL_OK")
</pallas_src>

<mosaic_0001>
module attributes {stable_mosaic.version = 11 : i64} {
  func.func @bert_encoder_kernel(%arg0: i32, %arg1: memref<1x8x32xf32, #tpu.memory_space<vmem>>, %arg2: memref<1x1x8xf32, #tpu.memory_space<vmem>>, %arg3: memref<1x32xf32, #tpu.memory_space<vmem>>, %arg4: memref<1x32xf32, #tpu.memory_space<vmem>>, %arg5: memref<2x32x96xbf16, #tpu.memory_space<vmem>>, %arg6: memref<2x1x96xf32, #tpu.memory_space<vmem>>, %arg7: memref<2x4x8x32xbf16, #tpu.memory_space<vmem>>, %arg8: memref<2x1x32xf32, #tpu.memory_space<vmem>>, %arg9: memref<2x1x32xf32, #tpu.memory_space<vmem>>, %arg10: memref<2x1x32xf32, #tpu.memory_space<vmem>>, %arg11: memref<2x32x64xbf16, #tpu.memory_space<vmem>>, %arg12: memref<2x1x64xf32, #tpu.memory_space<vmem>>, %arg13: memref<2x64x32xbf16, #tpu.memory_space<vmem>>, %arg14: memref<2x1x32xf32, #tpu.memory_space<vmem>>, %arg15: memref<2x1x32xf32, #tpu.memory_space<vmem>>, %arg16: memref<2x1x32xf32, #tpu.memory_space<vmem>>, %arg17: memref<1x8x32xf32, #tpu.memory_space<vmem>>) attributes {dimension_semantics = [#tpu.dimension_semantics<parallel>], iteration_bounds = array<i64: 2>, scalar_prefetch = 0 : i64, scratch_operands = 0 : i64, tpu.core_type = #tpu.core_type<tc>, window_params = [{transform_indices = @transform_0, window_bounds = array<i64: 1, 8, 32>}, {transform_indices = @transform_1, window_bounds = array<i64: 1, 1, 8>}, {pipeline_mode = #tpu.pipeline_mode<synchronous>, transform_indices = @transform_2, window_bounds = array<i64: 1, 32>}, {pipeline_mode = #tpu.pipeline_mode<synchronous>, transform_indices = @transform_3, window_bounds = array<i64: 1, 32>}, {pipeline_mode = #tpu.pipeline_mode<synchronous>, transform_indices = @transform_4, window_bounds = array<i64: 2, 32, 96>}, {pipeline_mode = #tpu.pipeline_mode<synchronous>, transform_indices = @transform_5, window_bounds = array<i64: 2, 1, 96>}, {pipeline_mode = #tpu.pipeline_mode<synchronous>, transform_indices = @transform_6, window_bounds = array<i64: 2, 4, 8, 32>}, {pipeline_mode = #tpu.pipeline_mode<synchronous>, transform_indices = @transform_7, window_bounds = array<i64: 2, 1, 32>}, {pipeline_mode = #tpu.pipeline_mode<synchronous>, transform_indices = @transform_8, window_bounds = array<i64: 2, 1, 32>}, {pipeline_mode = #tpu.pipeline_mode<synchronous>, transform_indices = @transform_9, window_bounds = array<i64: 2, 1, 32>}, {pipeline_mode = #tpu.pipeline_mode<synchronous>, transform_indices = @transform_10, window_bounds = array<i64: 2, 32, 64>}, {pipeline_mode = #tpu.pipeline_mode<synchronous>, transform_indices = @transform_11, window_bounds = array<i64: 2, 1, 64>}, {pipeline_mode = #tpu.pipeline_mode<synchronous>, transform_indices = @transform_12, window_bounds = array<i64: 2, 64, 32>}, {pipeline_mode = #tpu.pipeline_mode<synchronous>, transform_indices = @transform_13, window_bounds = array<i64: 2, 1, 32>}, {pipeline_mode = #tpu.pipeline_mode<synchronous>, transform_indices = @transform_14, window_bounds = array<i64: 2, 1, 32>}, {pipeline_mode = #tpu.pipeline_mode<synchronous>, transform_indices = @transform_15, window_bounds = array<i64: 2, 1, 32>}, {transform_indices = @transform_16, window_bounds = array<i64: 1, 8, 32>}]} {
    %c0 = arith.constant 0 : index
    %c0_0 = arith.constant 0 : index
    %c0_1 = arith.constant 0 : index
    %0 = vector.load %arg2[%c0, %c0_0, %c0_1] : memref<1x1x8xf32, #tpu.memory_space<vmem>>, vector<1x1x8xf32>
    %1 = vector.shape_cast %0 : vector<1x1x8xf32> to vector<1x8xf32>
    %c0_2 = arith.constant 0 : index
    %c0_3 = arith.constant 0 : index
    %c0_4 = arith.constant 0 : index
    %2 = vector.load %arg1[%c0_2, %c0_3, %c0_4] : memref<1x8x32xf32, #tpu.memory_space<vmem>>, vector<1x8x32xf32>
    %3 = vector.shape_cast %2 : vector<1x8x32xf32> to vector<8x32xf32>
    %c0_5 = arith.constant 0 : index
    %c0_6 = arith.constant 0 : index
    %4 = vector.load %arg3[%c0_5, %c0_6] : memref<1x32xf32, #tpu.memory_space<vmem>>, vector<1x32xf32>
    %c0_7 = arith.constant 0 : index
    %c0_8 = arith.constant 0 : index
    %5 = vector.load %arg4[%c0_7, %c0_8] : memref<1x32xf32, #tpu.memory_space<vmem>>, vector<1x32xf32>
    %cst = arith.constant dense<0.000000e+00> : vector<8xf32>
    %6 = vector.multi_reduction <add>, %3, %cst [1] : vector<8x32xf32> to vector<8xf32>
    %7 = vector.shape_cast %6 : vector<8xf32> to vector<8x1xf32>
    %cst_9 = arith.constant 3.200000e+01 : f32
    %8 = vector.broadcast %cst_9 : f32 to vector<8x1xf32>
    %9 = arith.divf %7, %8 : vector<8x1xf32>
    %10 = vector.broadcast %9 : vector<8x1xf32> to vector<8x32xf32>
    %11 = arith.subf %3, %10 : vector<8x32xf32>
    %12 = arith.mulf %11, %11 : vector<8x32xf32>
    %cst_10 = arith.constant dense<0.000000e+00> : vector<8xf32>
    %13 = vector.multi_reduction <add>, %12, %cst_10 [1] : vector<8x32xf32> to vector<8xf32>
    %14 = vector.shape_cast %13 : vector<8xf32> to vector<8x1xf32>
    %cst_11 = arith.constant 3.200000e+01 : f32
    %15 = vector.broadcast %cst_11 : f32 to vector<8x1xf32>
    %16 = arith.divf %14, %15 : vector<8x1xf32>
    %cst_12 = arith.constant 9.99999996E-13 : f32
    %17 = vector.broadcast %cst_12 : f32 to vector<8x1xf32>
    %18 = arith.addf %16, %17 : vector<8x1xf32>
    %19 = math.rsqrt %18 : vector<8x1xf32>
    %20 = vector.broadcast %19 : vector<8x1xf32> to vector<8x32xf32>
    %21 = arith.mulf %11, %20 : vector<8x32xf32>
    %22 = vector.broadcast %4 : vector<1x32xf32> to vector<8x32xf32>
    %23 = arith.mulf %21, %22 : vector<8x32xf32>
    %24 = vector.broadcast %5 : vector<1x32xf32> to vector<8x32xf32>
    %25 = arith.addf %23, %24 : vector<8x32xf32>
    %26 = arith.truncf %25 : vector<8x32xf32> to vector<8x32xbf16>
    %c0_13 = arith.constant 0 : index
    %c0_14 = arith.constant 0 : index
    %c0_15 = arith.constant 0 : index
    %27 = vector.load %arg5[%c0_13, %c0_14, %c0_15] : memref<2x32x96xbf16, #tpu.memory_space<vmem>>, vector<1x32x96xbf16>
    %28 = vector.shape_cast %27 : vector<1x32x96xbf16> to vector<32x96xbf16>
    %cst_16 = arith.constant dense<0.000000e+00> : vector<8x96xf32>
    %29 = tpu.matmul %26, %28, %cst_16 {dimension_numbers = #tpu.dot_dimension_numbers<[1], [0], [0], [1], [0, 0, 1, 1], [], []>} : vector<8x32xbf16>, vector<32x96xbf16>, vector<8x96xf32> -> vector<8x96xf32>
    %c0_17 = arith.constant 0 : index
    %c0_18 = arith.constant 0 : index
    %c0_19 = arith.constant 0 : index
    %30 = vector.load %arg6[%c0_17, %c0_18, %c0_19] : memref<2x1x96xf32, #tpu.memory_space<vmem>>, vector<1x1x96xf32>
    %31 = vector.shape_cast %30 : vector<1x1x96xf32> to vector<1x96xf32>
    %32 = vector.broadcast %31 : vector<1x96xf32> to vector<8x96xf32>
    %33 = arith.addf %29, %32 : vector<8x96xf32>
    %cst_20 = arith.constant 0.000000e+00 : f32
    %34 = vector.broadcast %cst_20 : f32 to vector<8x32xf32>
    %35 = vector.extract_strided_slice %33 {offsets = [0, 0], sizes = [8, 8], strides = [1, 1]} : vector<8x96xf32> to vector<8x8xf32>
    %36 = arith.truncf %35 : vector<8x8xf32> to vector<8x8xbf16>
    %37 = vector.extract_strided_slice %33 {offsets = [0, 32], sizes = [8, 8], strides = [1, 1]} : vector<8x96xf32> to vector<8x8xf32>
    %38 = arith.truncf %37 : vector<8x8xf32> to vector<8x8xbf16>
    %39 = vector.extract_strided_slice %33 {offsets = [0, 64], sizes = [8, 8], strides = [1, 1]} : vector<8x96xf32> to vector<8x8xf32>
    %40 = arith.truncf %39 : vector<8x8xf32> to vector<8x8xbf16>
    %41 = tpu.transpose %38, [1, 0] : vector<8x8xbf16> -> vector<8x8xbf16>
    %cst_21 = arith.constant dense<0.000000e+00> : vector<8x8xf32>
    %42 = tpu.matmul %36, %41, %cst_21 {dimension_numbers = #tpu.dot_dimension_numbers<[1], [0], [0], [1], [0, 0, 1, 1], [], []>} : vector<8x8xbf16>, vector<8x8xbf16>, vector<8x8xf32> -> vector<8x8xf32>
    %43 = vector.broadcast %1 : vector<1x8xf32> to vector<8x8xf32>
    %44 = arith.addf %42, %43 : vector<8x8xf32>
    %cst_22 = arith.constant dense<0xFF800000> : vector<8xf32>
    %45 = vector.multi_reduction <maximumf>, %44, %cst_22 [1] : vector<8x8xf32> to vector<8xf32>
    %46 = vector.shape_cast %45 : vector<8xf32> to vector<8x1xf32>
    %47 = vector.broadcast %46 : vector<8x1xf32> to vector<8x8xf32>
    %48 = arith.subf %44, %47 : vector<8x8xf32>
    %49 = math.exp %48 : vector<8x8xf32>
    %cst_23 = arith.constant dense<0.000000e+00> : vector<8xf32>
    %50 = vector.multi_reduction <add>, %49, %cst_23 [1] : vector<8x8xf32> to vector<8xf32>
    %51 = vector.shape_cast %50 : vector<8xf32> to vector<8x1xf32>
    %52 = vector.broadcast %51 : vector<8x1xf32> to vector<8x8xf32>
    %53 = arith.divf %49, %52 : vector<8x8xf32>
    %54 = arith.truncf %53 : vector<8x8xf32> to vector<8x8xbf16>
    %cst_24 = arith.constant dense<0.000000e+00> : vector<8x8xf32>
    %55 = tpu.matmul %54, %40, %cst_24 {dimension_numbers = #tpu.dot_dimension_numbers<[1], [0], [0], [1], [0, 0, 1, 1], [], []>} : vector<8x8xbf16>, vector<8x8xbf16>, vector<8x8xf32> -> vector<8x8xf32>
    %56 = arith.truncf %55 : vector<8x8xf32> to vector<8x8xbf16>
    %c0_25 = arith.constant 0 : index
    %c0_26 = arith.constant 0 : index
    %c0_27 = arith.constant 0 : index
    %c0_28 = arith.constant 0 : index
    %57 = vector.load %arg7[%c0_25, %c0_26, %c0_27, %c0_28] : memref<2x4x8x32xbf16, #tpu.memory_space<vmem>>, vector<1x1x8x32xbf16>
    %58 = vector.shape_cast %57 : vector<1x1x8x32xbf16> to vector<8x32xbf16>
    %cst_29 = arith.constant dense<0.000000e+00> : vector<8x32xf32>
    %59 = tpu.matmul %56, %58, %cst_29 {dimension_numbers = #tpu.dot_dimension_numbers<[1], [0], [0], [1], [0, 0, 1, 1], [], []>} : vector<8x8xbf16>, vector<8x32xbf16>, vector<8x32xf32> -> vector<8x32xf32>
    %60 = arith.addf %34, %59 : vector<8x32xf32>
    %61 = vector.extract_strided_slice %33 {offsets = [0, 8], sizes = [8, 8], strides = [1, 1]} : vector<8x96xf32> to vector<8x8xf32>
    %62 = arith.truncf %61 : vector<8x8xf32> to vector<8x8xbf16>
    %63 = vector.extract_strided_slice %33 {offsets = [0, 40], sizes = [8, 8], strides = [1, 1]} : vector<8x96xf32> to vector<8x8xf32>
    %64 = arith.truncf %63 : vector<8x8xf32> to vector<8x8xbf16>
    %65 = vector.extract_strided_slice %33 {offsets = [0, 72], sizes = [8, 8], strides = [1, 1]} : vector<8x96xf32> to vector<8x8xf32>
    %66 = arith.truncf %65 : vector<8x8xf32> to vector<8x8xbf16>
    %67 = tpu.transpose %64, [1, 0] : vector<8x8xbf16> -> vector<8x8xbf16>
    %cst_30 = arith.constant dense<0.000000e+00> : vector<8x8xf32>
    %68 = tpu.matmul %62, %67, %cst_30 {dimension_numbers = #tpu.dot_dimension_numbers<[1], [0], [0], [1], [0, 0, 1, 1], [], []>} : vector<8x8xbf16>, vector<8x8xbf16>, vector<8x8xf32> -> vector<8x8xf32>
    %69 = vector.broadcast %1 : vector<1x8xf32> to vector<8x8xf32>
    %70 = arith.addf %68, %69 : vector<8x8xf32>
    %cst_31 = arith.constant dense<0xFF800000> : vector<8xf32>
    %71 = vector.multi_reduction <maximumf>, %70, %cst_31 [1] : vector<8x8xf32> to vector<8xf32>
    %72 = vector.shape_cast %71 : vector<8xf32> to vector<8x1xf32>
    %73 = vector.broadcast %72 : vector<8x1xf32> to vector<8x8xf32>
    %74 = arith.subf %70, %73 : vector<8x8xf32>
    %75 = math.exp %74 : vector<8x8xf32>
    %cst_32 = arith.constant dense<0.000000e+00> : vector<8xf32>
    %76 = vector.multi_reduction <add>, %75, %cst_32 [1] : vector<8x8xf32> to vector<8xf32>
    %77 = vector.shape_cast %76 : vector<8xf32> to vector<8x1xf32>
    %78 = vector.broadcast %77 : vector<8x1xf32> to vector<8x8xf32>
    %79 = arith.divf %75, %78 : vector<8x8xf32>
    %80 = arith.truncf %79 : vector<8x8xf32> to vector<8x8xbf16>
    %cst_33 = arith.constant dense<0.000000e+00> : vector<8x8xf32>
    %81 = tpu.matmul %80, %66, %cst_33 {dimension_numbers = #tpu.dot_dimension_numbers<[1], [0], [0], [1], [0, 0, 1, 1], [], []>} : vector<8x8xbf16>, vector<8x8xbf16>, vector<8x8xf32> -> vector<8x8xf32>
    %82 = arith.truncf %81 : vector<8x8xf32> to vector<8x8xbf16>
    %c0_34 = arith.constant 0 : index
    %c1 = arith.constant 1 : index
    %c0_35 = arith.constant 0 : index
    %c0_36 = arith.constant 0 : index
    %83 = vector.load %arg7[%c0_34, %c1, %c0_35, %c0_36] : memref<2x4x8x32xbf16, #tpu.memory_space<vmem>>, vector<1x1x8x32xbf16>
    %84 = vector.shape_cast %83 : vector<1x1x8x32xbf16> to vector<8x32xbf16>
    %cst_37 = arith.constant dense<0.000000e+00> : vector<8x32xf32>
    %85 = tpu.matmul %82, %84, %cst_37 {dimension_numbers = #tpu.dot_dimension_numbers<[1], [0], [0], [1], [0, 0, 1, 1], [], []>} : vector<8x8xbf16>, vector<8x32xbf16>, vector<8x32xf32> -> vector<8x32xf32>
    %86 = arith.addf %60, %85 : vector<8x32xf32>
    %87 = vector.extract_strided_slice %33 {offsets = [0, 16], sizes = [8, 8], strides = [1, 1]} : vector<8x96xf32> to vector<8x8xf32>
    %88 = arith.truncf %87 : vector<8x8xf32> to vector<8x8xbf16>
    %89 = vector.extract_strided_slice %33 {offsets = [0, 48], sizes = [8, 8], strides = [1, 1]} : vector<8x96xf32> to vector<8x8xf32>
    %90 = arith.truncf %89 : vector<8x8xf32> to vector<8x8xbf16>
    %91 = vector.extract_strided_slice %33 {offsets = [0, 80], sizes = [8, 8], strides = [1, 1]} : vector<8x96xf32> to vector<8x8xf32>
    %92 = arith.truncf %91 : vector<8x8xf32> to vector<8x8xbf16>
    %93 = tpu.transpose %90, [1, 0] : vector<8x8xbf16> -> vector<8x8xbf16>
    %cst_38 = arith.constant dense<0.000000e+00> : vector<8x8xf32>
    %94 = tpu.matmul %88, %93, %cst_38 {dimension_numbers = #tpu.dot_dimension_numbers<[1], [0], [0], [1], [0, 0, 1, 1], [], []>} : vector<8x8xbf16>, vector<8x8xbf16>, vector<8x8xf32> -> vector<8x8xf32>
    %95 = vector.broadcast %1 : vector<1x8xf32> to vector<8x8xf32>
    %96 = arith.addf %94, %95 : vector<8x8xf32>
    %cst_39 = arith.constant dense<0xFF800000> : vector<8xf32>
    %97 = vector.multi_reduction <maximumf>, %96, %cst_39 [1] : vector<8x8xf32> to vector<8xf32>
    %98 = vector.shape_cast %97 : vector<8xf32> to vector<8x1xf32>
    %99 = vector.broadcast %98 : vector<8x1xf32> to vector<8x8xf32>
    %100 = arith.subf %96, %99 : vector<8x8xf32>
    %101 = math.exp %100 : vector<8x8xf32>
    %cst_40 = arith.constant dense<0.000000e+00> : vector<8xf32>
    %102 = vector.multi_reduction <add>, %101, %cst_40 [1] : vector<8x8xf32> to vector<8xf32>
    %103 = vector.shape_cast %102 : vector<8xf32> to vector<8x1xf32>
    %104 = vector.broadcast %103 : vector<8x1xf32> to vector<8x8xf32>
    %105 = arith.divf %101, %104 : vector<8x8xf32>
    %106 = arith.truncf %105 : vector<8x8xf32> to vector<8x8xbf16>
    %cst_41 = arith.constant dense<0.000000e+00> : vector<8x8xf32>
    %107 = tpu.matmul %106, %92, %cst_41 {dimension_numbers = #tpu.dot_dimension_numbers<[1], [0], [0], [1], [0, 0, 1, 1], [], []>} : vector<8x8xbf16>, vector<8x8xbf16>, vector<8x8xf32> -> vector<8x8xf32>
    %108 = arith.truncf %107 : vector<8x8xf32> to vector<8x8xbf16>
    %c0_42 = arith.constant 0 : index
    %c2 = arith.constant 2 : index
    %c0_43 = arith.constant 0 : index
    %c0_44 = arith.constant 0 : index
    %109 = vector.load %arg7[%c0_42, %c2, %c0_43, %c0_44] : memref<2x4x8x32xbf16, #tpu.memory_space<vmem>>, vector<1x1x8x32xbf16>
    %110 = vector.shape_cast %109 : vector<1x1x8x32xbf16> to vector<8x32xbf16>
    %cst_45 = arith.constant dense<0.000000e+00> : vector<8x32xf32>
    %111 = tpu.matmul %108, %110, %cst_45 {dimension_numbers = #tpu.dot_dimension_numbers<[1], [0], [0], [1], [0, 0, 1, 1], [], []>} : vector<8x8xbf16>, vector<8x32xbf16>, vector<8x32xf32> -> vector<8x32xf32>
    %112 = arith.addf %86, %111 : vector<8x32xf32>
    %113 = vector.extract_strided_slice %33 {offsets = [0, 24], sizes = [8, 8], strides = [1, 1]} : vector<8x96xf32> to vector<8x8xf32>
    %114 = arith.truncf %113 : vector<8x8xf32> to vector<8x8xbf16>
    %115 = vector.extract_strided_slice %33 {offsets = [0, 56], sizes = [8, 8], strides = [1, 1]} : vector<8x96xf32> to vector<8x8xf32>
    %116 = arith.truncf %115 : vector<8x8xf32> to vector<8x8xbf16>
    %117 = vector.extract_strided_slice %33 {offsets = [0, 88], sizes = [8, 8], strides = [1, 1]} : vector<8x96xf32> to vector<8x8xf32>
    %118 = arith.truncf %117 : vector<8x8xf32> to vector<8x8xbf16>
    %119 = tpu.transpose %116, [1, 0] : vector<8x8xbf16> -> vector<8x8xbf16>
    %cst_46 = arith.constant dense<0.000000e+00> : vector<8x8xf32>
    %120 = tpu.matmul %114, %119, %cst_46 {dimension_numbers = #tpu.dot_dimension_numbers<[1], [0], [0], [1], [0, 0, 1, 1], [], []>} : vector<8x8xbf16>, vector<8x8xbf16>, vector<8x8xf32> -> vector<8x8xf32>
    %121 = vector.broadcast %1 : vector<1x8xf32> to vector<8x8xf32>
    %122 = arith.addf %120, %121 : vector<8x8xf32>
    %cst_47 = arith.constant dense<0xFF800000> : vector<8xf32>
    %123 = vector.multi_reduction <maximumf>, %122, %cst_47 [1] : vector<8x8xf32> to vector<8xf32>
    %124 = vector.shape_cast %123 : vector<8xf32> to vector<8x1xf32>
    %125 = vector.broadcast %124 : vector<8x1xf32> to vector<8x8xf32>
    %126 = arith.subf %122, %125 : vector<8x8xf32>
    %127 = math.exp %126 : vector<8x8xf32>
    %cst_48 = arith.constant dense<0.000000e+00> : vector<8xf32>
    %128 = vector.multi_reduction <add>, %127, %cst_48 [1] : vector<8x8xf32> to vector<8xf32>
    %129 = vector.shape_cast %128 : vector<8xf32> to vector<8x1xf32>
    %130 = vector.broadcast %129 : vector<8x1xf32> to vector<8x8xf32>
    %131 = arith.divf %127, %130 : vector<8x8xf32>
    %132 = arith.truncf %131 : vector<8x8xf32> to vector<8x8xbf16>
    %cst_49 = arith.constant dense<0.000000e+00> : vector<8x8xf32>
    %133 = tpu.matmul %132, %118, %cst_49 {dimension_numbers = #tpu.dot_dimension_numbers<[1], [0], [0], [1], [0, 0, 1, 1], [], []>} : vector<8x8xbf16>, vector<8x8xbf16>, vector<8x8xf32> -> vector<8x8xf32>
    %134 = arith.truncf %133 : vector<8x8xf32> to vector<8x8xbf16>
    %c0_50 = arith.constant 0 : index
    %c3 = arith.constant 3 : index
    %c0_51 = arith.constant 0 : index
    %c0_52 = arith.constant 0 : index
    %135 = vector.load %arg7[%c0_50, %c3, %c0_51, %c0_52] : memref<2x4x8x32xbf16, #tpu.memory_space<vmem>>, vector<1x1x8x32xbf16>
    %136 = vector.shape_cast %135 : vector<1x1x8x32xbf16> to vector<8x32xbf16>
    %cst_53 = arith.constant dense<0.000000e+00> : vector<8x32xf32>
    %137 = tpu.matmul %134, %136, %cst_53 {dimension_numbers = #tpu.dot_dimension_numbers<[1], [0], [0], [1], [0, 0, 1, 1], [], []>} : vector<8x8xbf16>, vector<8x32xbf16>, vector<8x32xf32> -> vector<8x32xf32>
    %138 = arith.addf %112, %137 : vector<8x32xf32>
    %c0_54 = arith.constant 0 : index
    %c0_55 = arith.constant 0 : index
    %c0_56 = arith.constant 0 : index
    %139 = vector.load %arg8[%c0_54, %c0_55, %c0_56] : memref<2x1x32xf32, #tpu.memory_space<vmem>>, vector<1x1x32xf32>
    %140 = vector.shape_cast %139 : vector<1x1x32xf32> to vector<1x32xf32>
    %141 = vector.broadcast %140 : vector<1x32xf32> to vector<8x32xf32>
    %142 = arith.addf %138, %141 : vector<8x32xf32>
    %143 = arith.addf %142, %25 : vector<8x32xf32>
    %c0_57 = arith.constant 0 : index
    %c0_58 = arith.constant 0 : index
    %c0_59 = arith.constant 0 : index
    %144 = vector.load %arg9[%c0_57, %c0_58, %c0_59] : memref<2x1x32xf32, #tpu.memory_space<vmem>>, vector<1x1x32xf32>
    %145 = vector.shape_cast %144 : vector<1x1x32xf32> to vector<1x32xf32>
    %c0_60 = arith.constant 0 : index
    %c0_61 = arith.constant 0 : index
    %c0_62 = arith.constant 0 : index
    %146 = vector.load %arg10[%c0_60, %c0_61, %c0_62] : memref<2x1x32xf32, #tpu.memory_space<vmem>>, vector<1x1x32xf32>
    %147 = vector.shape_cast %146 : vector<1x1x32xf32> to vector<1x32xf32>
    %cst_63 = arith.constant dense<0.000000e+00> : vector<8xf32>
    %148 = vector.multi_reduction <add>, %143, %cst_63 [1] : vector<8x32xf32> to vector<8xf32>
    %149 = vector.shape_cast %148 : vector<8xf32> to vector<8x1xf32>
    %cst_64 = arith.constant 3.200000e+01 : f32
    %150 = vector.broadcast %cst_64 : f32 to vector<8x1xf32>
    %151 = arith.divf %149, %150 : vector<8x1xf32>
    %152 = vector.broadcast %151 : vector<8x1xf32> to vector<8x32xf32>
    %153 = arith.subf %143, %152 : vector<8x32xf32>
    %154 = arith.mulf %153, %153 : vector<8x32xf32>
    %cst_65 = arith.constant dense<0.000000e+00> : vector<8xf32>
    %155 = vector.multi_reduction <add>, %154, %cst_65 [1] : vector<8x32xf32> to vector<8xf32>
    %156 = vector.shape_cast %155 : vector<8xf32> to vector<8x1xf32>
    %cst_66 = arith.constant 3.200000e+01 : f32
    %157 = vector.broadcast %cst_66 : f32 to vector<8x1xf32>
    %158 = arith.divf %156, %157 : vector<8x1xf32>
    %cst_67 = arith.constant 9.99999996E-13 : f32
    %159 = vector.broadcast %cst_67 : f32 to vector<8x1xf32>
    %160 = arith.addf %158, %159 : vector<8x1xf32>
    %161 = math.rsqrt %160 : vector<8x1xf32>
    %162 = vector.broadcast %161 : vector<8x1xf32> to vector<8x32xf32>
    %163 = arith.mulf %153, %162 : vector<8x32xf32>
    %164 = vector.broadcast %145 : vector<1x32xf32> to vector<8x32xf32>
    %165 = arith.mulf %163, %164 : vector<8x32xf32>
    %166 = vector.broadcast %147 : vector<1x32xf32> to vector<8x32xf32>
    %167 = arith.addf %165, %166 : vector<8x32xf32>
    %168 = arith.truncf %167 : vector<8x32xf32> to vector<8x32xbf16>
    %c0_68 = arith.constant 0 : index
    %c0_69 = arith.constant 0 : index
    %c0_70 = arith.constant 0 : index
    %169 = vector.load %arg11[%c0_68, %c0_69, %c0_70] : memref<2x32x64xbf16, #tpu.memory_space<vmem>>, vector<1x32x64xbf16>
    %170 = vector.shape_cast %169 : vector<1x32x64xbf16> to vector<32x64xbf16>
    %cst_71 = arith.constant dense<0.000000e+00> : vector<8x64xf32>
    %171 = tpu.matmul %168, %170, %cst_71 {dimension_numbers = #tpu.dot_dimension_numbers<[1], [0], [0], [1], [0, 0, 1, 1], [], []>} : vector<8x32xbf16>, vector<32x64xbf16>, vector<8x64xf32> -> vector<8x64xf32>
    %c0_72 = arith.constant 0 : index
    %c0_73 = arith.constant 0 : index
    %c0_74 = arith.constant 0 : index
    %172 = vector.load %arg12[%c0_72, %c0_73, %c0_74] : memref<2x1x64xf32, #tpu.memory_space<vmem>>, vector<1x1x64xf32>
    %173 = vector.shape_cast %172 : vector<1x1x64xf32> to vector<1x64xf32>
    %174 = vector.broadcast %173 : vector<1x64xf32> to vector<8x64xf32>
    %175 = arith.addf %171, %174 : vector<8x64xf32>
    %cst_75 = arith.constant 5.000000e-01 : f32
    %176 = vector.broadcast %cst_75 : f32 to vector<8x64xf32>
    %177 = arith.mulf %176, %175 : vector<8x64xf32>
    %cst_76 = arith.constant 4.471500e-02 : f32
    %178 = vector.broadcast %cst_76 : f32 to vector<8x64xf32>
    %179 = arith.mulf %178, %175 : vector<8x64xf32>
    %180 = arith.mulf %179, %175 : vector<8x64xf32>
    %181 = arith.mulf %180, %175 : vector<8x64xf32>
    %182 = arith.addf %175, %181 : vector<8x64xf32>
    %cst_77 = arith.constant 0.797884583 : f32
    %183 = vector.broadcast %cst_77 : f32 to vector<8x64xf32>
    %184 = arith.mulf %183, %182 : vector<8x64xf32>
    %185 = math.tanh %184 : vector<8x64xf32>
    %cst_78 = arith.constant 1.000000e+00 : f32
    %186 = vector.broadcast %cst_78 : f32 to vector<8x64xf32>
    %187 = arith.addf %186, %185 : vector<8x64xf32>
    %188 = arith.mulf %177, %187 : vector<8x64xf32>
    %189 = arith.truncf %188 : vector<8x64xf32> to vector<8x64xbf16>
    %c0_79 = arith.constant 0 : index
    %c0_80 = arith.constant 0 : index
    %c0_81 = arith.constant 0 : index
    %190 = vector.load %arg13[%c0_79, %c0_80, %c0_81] : memref<2x64x32xbf16, #tpu.memory_space<vmem>>, vector<1x64x32xbf16>
    %191 = vector.shape_cast %190 : vector<1x64x32xbf16> to vector<64x32xbf16>
    %cst_82 = arith.constant dense<0.000000e+00> : vector<8x32xf32>
    %192 = tpu.matmul %189, %191, %cst_82 {dimension_numbers = #tpu.dot_dimension_numbers<[1], [0], [0], [1], [0, 0, 1, 1], [], []>} : vector<8x64xbf16>, vector<64x32xbf16>, vector<8x32xf32> -> vector<8x32xf32>
    %c0_83 = arith.constant 0 : index
    %c0_84 = arith.constant 0 : index
    %c0_85 = arith.constant 0 : index
    %193 = vector.load %arg14[%c0_83, %c0_84, %c0_85] : memref<2x1x32xf32, #tpu.memory_space<vmem>>, vector<1x1x32xf32>
    %194 = vector.shape_cast %193 : vector<1x1x32xf32> to vector<1x32xf32>
    %195 = vector.broadcast %194 : vector<1x32xf32> to vector<8x32xf32>
    %196 = arith.addf %192, %195 : vector<8x32xf32>
    %197 = arith.addf %196, %167 : vector<8x32xf32>
    %c0_86 = arith.constant 0 : index
    %c0_87 = arith.constant 0 : index
    %c0_88 = arith.constant 0 : index
    %198 = vector.load %arg15[%c0_86, %c0_87, %c0_88] : memref<2x1x32xf32, #tpu.memory_space<vmem>>, vector<1x1x32xf32>
    %199 = vector.shape_cast %198 : vector<1x1x32xf32> to vector<1x32xf32>
    %c0_89 = arith.constant 0 : index
    %c0_90 = arith.constant 0 : index
    %c0_91 = arith.constant 0 : index
    %200 = vector.load %arg16[%c0_89, %c0_90, %c0_91] : memref<2x1x32xf32, #tpu.memory_space<vmem>>, vector<1x1x32xf32>
    %201 = vector.shape_cast %200 : vector<1x1x32xf32> to vector<1x32xf32>
    %cst_92 = arith.constant dense<0.000000e+00> : vector<8xf32>
    %202 = vector.multi_reduction <add>, %197, %cst_92 [1] : vector<8x32xf32> to vector<8xf32>
    %203 = vector.shape_cast %202 : vector<8xf32> to vector<8x1xf32>
    %cst_93 = arith.constant 3.200000e+01 : f32
    %204 = vector.broadcast %cst_93 : f32 to vector<8x1xf32>
    %205 = arith.divf %203, %204 : vector<8x1xf32>
    %206 = vector.broadcast %205 : vector<8x1xf32> to vector<8x32xf32>
    %207 = arith.subf %197, %206 : vector<8x32xf32>
    %208 = arith.mulf %207, %207 : vector<8x32xf32>
    %cst_94 = arith.constant dense<0.000000e+00> : vector<8xf32>
    %209 = vector.multi_reduction <add>, %208, %cst_94 [1] : vector<8x32xf32> to vector<8xf32>
    %210 = vector.shape_cast %209 : vector<8xf32> to vector<8x1xf32>
    %cst_95 = arith.constant 3.200000e+01 : f32
    %211 = vector.broadcast %cst_95 : f32 to vector<8x1xf32>
    %212 = arith.divf %210, %211 : vector<8x1xf32>
    %cst_96 = arith.constant 9.99999996E-13 : f32
    %213 = vector.broadcast %cst_96 : f32 to vector<8x1xf32>
    %214 = arith.addf %212, %213 : vector<8x1xf32>
    %215 = math.rsqrt %214 : vector<8x1xf32>
    %216 = vector.broadcast %215 : vector<8x1xf32> to vector<8x32xf32>
    %217 = arith.mulf %207, %216 : vector<8x32xf32>
    %218 = vector.broadcast %199 : vector<1x32xf32> to vector<8x32xf32>
    %219 = arith.mulf %217, %218 : vector<8x32xf32>
    %220 = vector.broadcast %201 : vector<1x32xf32> to vector<8x32xf32>
    %221 = arith.addf %219, %220 : vector<8x32xf32>
    %222 = arith.truncf %221 : vector<8x32xf32> to vector<8x32xbf16>
    %c1_97 = arith.constant 1 : index
    %c0_98 = arith.constant 0 : index
    %c0_99 = arith.constant 0 : index
    %223 = vector.load %arg5[%c1_97, %c0_98, %c0_99] : memref<2x32x96xbf16, #tpu.memory_space<vmem>>, vector<1x32x96xbf16>
    %224 = vector.shape_cast %223 : vector<1x32x96xbf16> to vector<32x96xbf16>
    %cst_100 = arith.constant dense<0.000000e+00> : vector<8x96xf32>
    %225 = tpu.matmul %222, %224, %cst_100 {dimension_numbers = #tpu.dot_dimension_numbers<[1], [0], [0], [1], [0, 0, 1, 1], [], []>} : vector<8x32xbf16>, vector<32x96xbf16>, vector<8x96xf32> -> vector<8x96xf32>
    %c1_101 = arith.constant 1 : index
    %c0_102 = arith.constant 0 : index
    %c0_103 = arith.constant 0 : index
    %226 = vector.load %arg6[%c1_101, %c0_102, %c0_103] : memref<2x1x96xf32, #tpu.memory_space<vmem>>, vector<1x1x96xf32>
    %227 = vector.shape_cast %226 : vector<1x1x96xf32> to vector<1x96xf32>
    %228 = vector.broadcast %227 : vector<1x96xf32> to vector<8x96xf32>
    %229 = arith.addf %225, %228 : vector<8x96xf32>
    %cst_104 = arith.constant 0.000000e+00 : f32
    %230 = vector.broadcast %cst_104 : f32 to vector<8x32xf32>
    %231 = vector.extract_strided_slice %229 {offsets = [0, 0], sizes = [8, 8], strides = [1, 1]} : vector<8x96xf32> to vector<8x8xf32>
    %232 = arith.truncf %231 : vector<8x8xf32> to vector<8x8xbf16>
    %233 = vector.extract_strided_slice %229 {offsets = [0, 32], sizes = [8, 8], strides = [1, 1]} : vector<8x96xf32> to vector<8x8xf32>
    %234 = arith.truncf %233 : vector<8x8xf32> to vector<8x8xbf16>
    %235 = vector.extract_strided_slice %229 {offsets = [0, 64], sizes = [8, 8], strides = [1, 1]} : vector<8x96xf32> to vector<8x8xf32>
    %236 = arith.truncf %235 : vector<8x8xf32> to vector<8x8xbf16>
    %237 = tpu.transpose %234, [1, 0] : vector<8x8xbf16> -> vector<8x8xbf16>
    %cst_105 = arith.constant dense<0.000000e+00> : vector<8x8xf32>
    %238 = tpu.matmul %232, %237, %cst_105 {dimension_numbers = #tpu.dot_dimension_numbers<[1], [0], [0], [1], [0, 0, 1, 1], [], []>} : vector<8x8xbf16>, vector<8x8xbf16>, vector<8x8xf32> -> vector<8x8xf32>
    %239 = vector.broadcast %1 : vector<1x8xf32> to vector<8x8xf32>
    %240 = arith.addf %238, %239 : vector<8x8xf32>
    %cst_106 = arith.constant dense<0xFF800000> : vector<8xf32>
    %241 = vector.multi_reduction <maximumf>, %240, %cst_106 [1] : vector<8x8xf32> to vector<8xf32>
    %242 = vector.shape_cast %241 : vector<8xf32> to vector<8x1xf32>
    %243 = vector.broadcast %242 : vector<8x1xf32> to vector<8x8xf32>
    %244 = arith.subf %240, %243 : vector<8x8xf32>
    %245 = math.exp %244 : vector<8x8xf32>
    %cst_107 = arith.constant dense<0.000000e+00> : vector<8xf32>
    %246 = vector.multi_reduction <add>, %245, %cst_107 [1] : vector<8x8xf32> to vector<8xf32>
    %247 = vector.shape_cast %246 : vector<8xf32> to vector<8x1xf32>
    %248 = vector.broadcast %247 : vector<8x1xf32> to vector<8x8xf32>
    %249 = arith.divf %245, %248 : vector<8x8xf32>
    %250 = arith.truncf %249 : vector<8x8xf32> to vector<8x8xbf16>
    %cst_108 = arith.constant dense<0.000000e+00> : vector<8x8xf32>
    %251 = tpu.matmul %250, %236, %cst_108 {dimension_numbers = #tpu.dot_dimension_numbers<[1], [0], [0], [1], [0, 0, 1, 1], [], []>} : vector<8x8xbf16>, vector<8x8xbf16>, vector<8x8xf32> -> vector<8x8xf32>
    %252 = arith.truncf %251 : vector<8x8xf32> to vector<8x8xbf16>
    %c1_109 = arith.constant 1 : index
    %c0_110 = arith.constant 0 : index
    %c0_111 = arith.constant 0 : index
    %c0_112 = arith.constant 0 : index
    %253 = vector.load %arg7[%c1_109, %c0_110, %c0_111, %c0_112] : memref<2x4x8x32xbf16, #tpu.memory_space<vmem>>, vector<1x1x8x32xbf16>
    %254 = vector.shape_cast %253 : vector<1x1x8x32xbf16> to vector<8x32xbf16>
    %cst_113 = arith.constant dense<0.000000e+00> : vector<8x32xf32>
    %255 = tpu.matmul %252, %254, %cst_113 {dimension_numbers = #tpu.dot_dimension_numbers<[1], [0], [0], [1], [0, 0, 1, 1], [], []>} : vector<8x8xbf16>, vector<8x32xbf16>, vector<8x32xf32> -> vector<8x32xf32>
    %256 = arith.addf %230, %255 : vector<8x32xf32>
    %257 = vector.extract_strided_slice %229 {offsets = [0, 8], sizes = [8, 8], strides = [1, 1]} : vector<8x96xf32> to vector<8x8xf32>
    %258 = arith.truncf %257 : vector<8x8xf32> to vector<8x8xbf16>
    %259 = vector.extract_strided_slice %229 {offsets = [0, 40], sizes = [8, 8], strides = [1, 1]} : vector<8x96xf32> to vector<8x8xf32>
    %260 = arith.truncf %259 : vector<8x8xf32> to vector<8x8xbf16>
    %261 = vector.extract_strided_slice %229 {offsets = [0, 72], sizes = [8, 8], strides = [1, 1]} : vector<8x96xf32> to vector<8x8xf32>
    %262 = arith.truncf %261 : vector<8x8xf32> to vector<8x8xbf16>
    %263 = tpu.transpose %260, [1, 0] : vector<8x8xbf16> -> vector<8x8xbf16>
    %cst_114 = arith.constant dense<0.000000e+00> : vector<8x8xf32>
    %264 = tpu.matmul %258, %263, %cst_114 {dimension_numbers = #tpu.dot_dimension_numbers<[1], [0], [0], [1], [0, 0, 1, 1], [], []>} : vector<8x8xbf16>, vector<8x8xbf16>, vector<8x8xf32> -> vector<8x8xf32>
    %265 = vector.broadcast %1 : vector<1x8xf32> to vector<8x8xf32>
    %266 = arith.addf %264, %265 : vector<8x8xf32>
    %cst_115 = arith.constant dense<0xFF800000> : vector<8xf32>
    %267 = vector.multi_reduction <maximumf>, %266, %cst_115 [1] : vector<8x8xf32> to vector<8xf32>
    %268 = vector.shape_cast %267 : vector<8xf32> to vector<8x1xf32>
    %269 = vector.broadcast %268 : vector<8x1xf32> to vector<8x8xf32>
    %270 = arith.subf %266, %269 : vector<8x8xf32>
    %271 = math.exp %270 : vector<8x8xf32>
    %cst_116 = arith.constant dense<0.000000e+00> : vector<8xf32>
    %272 = vector.multi_reduction <add>, %271, %cst_116 [1] : vector<8x8xf32> to vector<8xf32>
    %273 = vector.shape_cast %272 : vector<8xf32> to vector<8x1xf32>
    %274 = vector.broadcast %273 : vector<8x1xf32> to vector<8x8xf32>
    %275 = arith.divf %271, %274 : vector<8x8xf32>
    %276 = arith.truncf %275 : vector<8x8xf32> to vector<8x8xbf16>
    %cst_117 = arith.constant dense<0.000000e+00> : vector<8x8xf32>
    %277 = tpu.matmul %276, %262, %cst_117 {dimension_numbers = #tpu.dot_dimension_numbers<[1], [0], [0], [1], [0, 0, 1, 1], [], []>} : vector<8x8xbf16>, vector<8x8xbf16>, vector<8x8xf32> -> vector<8x8xf32>
    %278 = arith.truncf %277 : vector<8x8xf32> to vector<8x8xbf16>
    %c1_118 = arith.constant 1 : index
    %c1_119 = arith.constant 1 : index
    %c0_120 = arith.constant 0 : index
    %c0_121 = arith.constant 0 : index
    %279 = vector.load %arg7[%c1_118, %c1_119, %c0_120, %c0_121] : memref<2x4x8x32xbf16, #tpu.memory_space<vmem>>, vector<1x1x8x32xbf16>
    %280 = vector.shape_cast %279 : vector<1x1x8x32xbf16> to vector<8x32xbf16>
    %cst_122 = arith.constant dense<0.000000e+00> : vector<8x32xf32>
    %281 = tpu.matmul %278, %280, %cst_122 {dimension_numbers = #tpu.dot_dimension_numbers<[1], [0], [0], [1], [0, 0, 1, 1], [], []>} : vector<8x8xbf16>, vector<8x32xbf16>, vector<8x32xf32> -> vector<8x32xf32>
    %282 = arith.addf %256, %281 : vector<8x32xf32>
    %283 = vector.extract_strided_slice %229 {offsets = [0, 16], sizes = [8, 8], strides = [1, 1]} : vector<8x96xf32> to vector<8x8xf32>
    %284 = arith.truncf %283 : vector<8x8xf32> to vector<8x8xbf16>
    %285 = vector.extract_strided_slice %229 {offsets = [0, 48], sizes = [8, 8], strides = [1, 1]} : vector<8x96xf32> to vector<8x8xf32>
    %286 = arith.truncf %285 : vector<8x8xf32> to vector<8x8xbf16>
    %287 = vector.extract_strided_slice %229 {offsets = [0, 80], sizes = [8, 8], strides = [1, 1]} : vector<8x96xf32> to vector<8x8xf32>
    %288 = arith.truncf %287 : vector<8x8xf32> to vector<8x8xbf16>
    %289 = tpu.transpose %286, [1, 0] : vector<8x8xbf16> -> vector<8x8xbf16>
    %cst_123 = arith.constant dense<0.000000e+00> : vector<8x8xf32>
    %290 = tpu.matmul %284, %289, %cst_123 {dimension_numbers = #tpu.dot_dimension_numbers<[1], [0], [0], [1], [0, 0, 1, 1], [], []>} : vector<8x8xbf16>, vector<8x8xbf16>, vector<8x8xf32> -> vector<8x8xf32>
    %291 = vector.broadcast %1 : vector<1x8xf32> to vector<8x8xf32>
    %292 = arith.addf %290, %291 : vector<8x8xf32>
    %cst_124 = arith.constant dense<0xFF800000> : vector<8xf32>
    %293 = vector.multi_reduction <maximumf>, %292, %cst_124 [1] : vector<8x8xf32> to vector<8xf32>
    %294 = vector.shape_cast %293 : vector<8xf32> to vector<8x1xf32>
    %295 = vector.broadcast %294 : vector<8x1xf32> to vector<8x8xf32>
    %296 = arith.subf %292, %295 : vector<8x8xf32>
    %297 = math.exp %296 : vector<8x8xf32>
    %cst_125 = arith.constant dense<0.000000e+00> : vector<8xf32>
    %298 = vector.multi_reduction <add>, %297, %cst_125 [1] : vector<8x8xf32> to vector<8xf32>
    %299 = vector.shape_cast %298 : vector<8xf32> to vector<8x1xf32>
    %300 = vector.broadcast %299 : vector<8x1xf32> to vector<8x8xf32>
    %301 = arith.divf %297, %300 : vector<8x8xf32>
    %302 = arith.truncf %301 : vector<8x8xf32> to vector<8x8xbf16>
    %cst_126 = arith.constant dense<0.000000e+00> : vector<8x8xf32>
    %303 = tpu.matmul %302, %288, %cst_126 {dimension_numbers = #tpu.dot_dimension_numbers<[1], [0], [0], [1], [0, 0, 1, 1], [], []>} : vector<8x8xbf16>, vector<8x8xbf16>, vector<8x8xf32> -> vector<8x8xf32>
    %304 = arith.truncf %303 : vector<8x8xf32> to vector<8x8xbf16>
    %c1_127 = arith.constant 1 : index
    %c2_128 = arith.constant 2 : index
    %c0_129 = arith.constant 0 : index
    %c0_130 = arith.constant 0 : index
    %305 = vector.load %arg7[%c1_127, %c2_128, %c0_129, %c0_130] : memref<2x4x8x32xbf16, #tpu.memory_space<vmem>>, vector<1x1x8x32xbf16>
    %306 = vector.shape_cast %305 : vector<1x1x8x32xbf16> to vector<8x32xbf16>
    %cst_131 = arith.constant dense<0.000000e+00> : vector<8x32xf32>
    %307 = tpu.matmul %304, %306, %cst_131 {dimension_numbers = #tpu.dot_dimension_numbers<[1], [0], [0], [1], [0, 0, 1, 1], [], []>} : vector<8x8xbf16>, vector<8x32xbf16>, vector<8x32xf32> -> vector<8x32xf32>
    %308 = arith.addf %282, %307 : vector<8x32xf32>
    %309 = vector.extract_strided_slice %229 {offsets = [0, 24], sizes = [8, 8], strides = [1, 1]} : vector<8x96xf32> to vector<8x8xf32>
    %310 = arith.truncf %309 : vector<8x8xf32> to vector<8x8xbf16>
    %311 = vector.extract_strided_slice %229 {offsets = [0, 56], sizes = [8, 8], strides = [1, 1]} : vector<8x96xf32> to vector<8x8xf32>
    %312 = arith.truncf %311 : vector<8x8xf32> to vector<8x8xbf16>
    %313 = vector.extract_strided_slice %229 {offsets = [0, 88], sizes = [8, 8], strides = [1, 1]} : vector<8x96xf32> to vector<8x8xf32>
    %314 = arith.truncf %313 : vector<8x8xf32> to vector<8x8xbf16>
    %315 = tpu.transpose %312, [1, 0] : vector<8x8xbf16> -> vector<8x8xbf16>
    %cst_132 = arith.constant dense<0.000000e+00> : vector<8x8xf32>
    %316 = tpu.matmul %310, %315, %cst_132 {dimension_numbers = #tpu.dot_dimension_numbers<[1], [0], [0], [1], [0, 0, 1, 1], [], []>} : vector<8x8xbf16>, vector<8x8xbf16>, vector<8x8xf32> -> vector<8x8xf32>
    %317 = vector.broadcast %1 : vector<1x8xf32> to vector<8x8xf32>
    %318 = arith.addf %316, %317 : vector<8x8xf32>
    %cst_133 = arith.constant dense<0xFF800000> : vector<8xf32>
    %319 = vector.multi_reduction <maximumf>, %318, %cst_133 [1] : vector<8x8xf32> to vector<8xf32>
    %320 = vector.shape_cast %319 : vector<8xf32> to vector<8x1xf32>
    %321 = vector.broadcast %320 : vector<8x1xf32> to vector<8x8xf32>
    %322 = arith.subf %318, %321 : vector<8x8xf32>
    %323 = math.exp %322 : vector<8x8xf32>
    %cst_134 = arith.constant dense<0.000000e+00> : vector<8xf32>
    %324 = vector.multi_reduction <add>, %323, %cst_134 [1] : vector<8x8xf32> to vector<8xf32>
    %325 = vector.shape_cast %324 : vector<8xf32> to vector<8x1xf32>
    %326 = vector.broadcast %325 : vector<8x1xf32> to vector<8x8xf32>
    %327 = arith.divf %323, %326 : vector<8x8xf32>
    %328 = arith.truncf %327 : vector<8x8xf32> to vector<8x8xbf16>
    %cst_135 = arith.constant dense<0.000000e+00> : vector<8x8xf32>
    %329 = tpu.matmul %328, %314, %cst_135 {dimension_numbers = #tpu.dot_dimension_numbers<[1], [0], [0], [1], [0, 0, 1, 1], [], []>} : vector<8x8xbf16>, vector<8x8xbf16>, vector<8x8xf32> -> vector<8x8xf32>
    %330 = arith.truncf %329 : vector<8x8xf32> to vector<8x8xbf16>
    %c1_136 = arith.constant 1 : index
    %c3_137 = arith.constant 3 : index
    %c0_138 = arith.constant 0 : index
    %c0_139 = arith.constant 0 : index
    %331 = vector.load %arg7[%c1_136, %c3_137, %c0_138, %c0_139] : memref<2x4x8x32xbf16, #tpu.memory_space<vmem>>, vector<1x1x8x32xbf16>
    %332 = vector.shape_cast %331 : vector<1x1x8x32xbf16> to vector<8x32xbf16>
    %cst_140 = arith.constant dense<0.000000e+00> : vector<8x32xf32>
    %333 = tpu.matmul %330, %332, %cst_140 {dimension_numbers = #tpu.dot_dimension_numbers<[1], [0], [0], [1], [0, 0, 1, 1], [], []>} : vector<8x8xbf16>, vector<8x32xbf16>, vector<8x32xf32> -> vector<8x32xf32>
    %334 = arith.addf %308, %333 : vector<8x32xf32>
    %c1_141 = arith.constant 1 : index
    %c0_142 = arith.constant 0 : index
    %c0_143 = arith.constant 0 : index
    %335 = vector.load %arg8[%c1_141, %c0_142, %c0_143] : memref<2x1x32xf32, #tpu.memory_space<vmem>>, vector<1x1x32xf32>
    %336 = vector.shape_cast %335 : vector<1x1x32xf32> to vector<1x32xf32>
    %337 = vector.broadcast %336 : vector<1x32xf32> to vector<8x32xf32>
    %338 = arith.addf %334, %337 : vector<8x32xf32>
    %339 = arith.addf %338, %221 : vector<8x32xf32>
    %c1_144 = arith.constant 1 : index
    %c0_145 = arith.constant 0 : index
    %c0_146 = arith.constant 0 : index
    %340 = vector.load %arg9[%c1_144, %c0_145, %c0_146] : memref<2x1x32xf32, #tpu.memory_space<vmem>>, vector<1x1x32xf32>
    %341 = vector.shape_cast %340 : vector<1x1x32xf32> to vector<1x32xf32>
    %c1_147 = arith.constant 1 : index
    %c0_148 = arith.constant 0 : index
    %c0_149 = arith.constant 0 : index
    %342 = vector.load %arg10[%c1_147, %c0_148, %c0_149] : memref<2x1x32xf32, #tpu.memory_space<vmem>>, vector<1x1x32xf32>
    %343 = vector.shape_cast %342 : vector<1x1x32xf32> to vector<1x32xf32>
    %cst_150 = arith.constant dense<0.000000e+00> : vector<8xf32>
    %344 = vector.multi_reduction <add>, %339, %cst_150 [1] : vector<8x32xf32> to vector<8xf32>
    %345 = vector.shape_cast %344 : vector<8xf32> to vector<8x1xf32>
    %cst_151 = arith.constant 3.200000e+01 : f32
    %346 = vector.broadcast %cst_151 : f32 to vector<8x1xf32>
    %347 = arith.divf %345, %346 : vector<8x1xf32>
    %348 = vector.broadcast %347 : vector<8x1xf32> to vector<8x32xf32>
    %349 = arith.subf %339, %348 : vector<8x32xf32>
    %350 = arith.mulf %349, %349 : vector<8x32xf32>
    %cst_152 = arith.constant dense<0.000000e+00> : vector<8xf32>
    %351 = vector.multi_reduction <add>, %350, %cst_152 [1] : vector<8x32xf32> to vector<8xf32>
    %352 = vector.shape_cast %351 : vector<8xf32> to vector<8x1xf32>
    %cst_153 = arith.constant 3.200000e+01 : f32
    %353 = vector.broadcast %cst_153 : f32 to vector<8x1xf32>
    %354 = arith.divf %352, %353 : vector<8x1xf32>
    %cst_154 = arith.constant 9.99999996E-13 : f32
    %355 = vector.broadcast %cst_154 : f32 to vector<8x1xf32>
    %356 = arith.addf %354, %355 : vector<8x1xf32>
    %357 = math.rsqrt %356 : vector<8x1xf32>
    %358 = vector.broadcast %357 : vector<8x1xf32> to vector<8x32xf32>
    %359 = arith.mulf %349, %358 : vector<8x32xf32>
    %360 = vector.broadcast %341 : vector<1x32xf32> to vector<8x32xf32>
    %361 = arith.mulf %359, %360 : vector<8x32xf32>
    %362 = vector.broadcast %343 : vector<1x32xf32> to vector<8x32xf32>
    %363 = arith.addf %361, %362 : vector<8x32xf32>
    %364 = arith.truncf %363 : vector<8x32xf32> to vector<8x32xbf16>
    %c1_155 = arith.constant 1 : index
    %c0_156 = arith.constant 0 : index
    %c0_157 = arith.constant 0 : index
    %365 = vector.load %arg11[%c1_155, %c0_156, %c0_157] : memref<2x32x64xbf16, #tpu.memory_space<vmem>>, vector<1x32x64xbf16>
    %366 = vector.shape_cast %365 : vector<1x32x64xbf16> to vector<32x64xbf16>
    %cst_158 = arith.constant dense<0.000000e+00> : vector<8x64xf32>
    %367 = tpu.matmul %364, %366, %cst_158 {dimension_numbers = #tpu.dot_dimension_numbers<[1], [0], [0], [1], [0, 0, 1, 1], [], []>} : vector<8x32xbf16>, vector<32x64xbf16>, vector<8x64xf32> -> vector<8x64xf32>
    %c1_159 = arith.constant 1 : index
    %c0_160 = arith.constant 0 : index
    %c0_161 = arith.constant 0 : index
    %368 = vector.load %arg12[%c1_159, %c0_160, %c0_161] : memref<2x1x64xf32, #tpu.memory_space<vmem>>, vector<1x1x64xf32>
    %369 = vector.shape_cast %368 : vector<1x1x64xf32> to vector<1x64xf32>
    %370 = vector.broadcast %369 : vector<1x64xf32> to vector<8x64xf32>
    %371 = arith.addf %367, %370 : vector<8x64xf32>
    %cst_162 = arith.constant 5.000000e-01 : f32
    %372 = vector.broadcast %cst_162 : f32 to vector<8x64xf32>
    %373 = arith.mulf %372, %371 : vector<8x64xf32>
    %cst_163 = arith.constant 4.471500e-02 : f32
    %374 = vector.broadcast %cst_163 : f32 to vector<8x64xf32>
    %375 = arith.mulf %374, %371 : vector<8x64xf32>
    %376 = arith.mulf %375, %371 : vector<8x64xf32>
    %377 = arith.mulf %376, %371 : vector<8x64xf32>
    %378 = arith.addf %371, %377 : vector<8x64xf32>
    %cst_164 = arith.constant 0.797884583 : f32
    %379 = vector.broadcast %cst_164 : f32 to vector<8x64xf32>
    %380 = arith.mulf %379, %378 : vector<8x64xf32>
    %381 = math.tanh %380 : vector<8x64xf32>
    %cst_165 = arith.constant 1.000000e+00 : f32
    %382 = vector.broadcast %cst_165 : f32 to vector<8x64xf32>
    %383 = arith.addf %382, %381 : vector<8x64xf32>
    %384 = arith.mulf %373, %383 : vector<8x64xf32>
    %385 = arith.truncf %384 : vector<8x64xf32> to vector<8x64xbf16>
    %c1_166 = arith.constant 1 : index
    %c0_167 = arith.constant 0 : index
    %c0_168 = arith.constant 0 : index
    %386 = vector.load %arg13[%c1_166, %c0_167, %c0_168] : memref<2x64x32xbf16, #tpu.memory_space<vmem>>, vector<1x64x32xbf16>
    %387 = vector.shape_cast %386 : vector<1x64x32xbf16> to vector<64x32xbf16>
    %cst_169 = arith.constant dense<0.000000e+00> : vector<8x32xf32>
    %388 = tpu.matmul %385, %387, %cst_169 {dimension_numbers = #tpu.dot_dimension_numbers<[1], [0], [0], [1], [0, 0, 1, 1], [], []>} : vector<8x64xbf16>, vector<64x32xbf16>, vector<8x32xf32> -> vector<8x32xf32>
    %c1_170 = arith.constant 1 : index
    %c0_171 = arith.constant 0 : index
    %c0_172 = arith.constant 0 : index
    %389 = vector.load %arg14[%c1_170, %c0_171, %c0_172] : memref<2x1x32xf32, #tpu.memory_space<vmem>>, vector<1x1x32xf32>
    %390 = vector.shape_cast %389 : vector<1x1x32xf32> to vector<1x32xf32>
    %391 = vector.broadcast %390 : vector<1x32xf32> to vector<8x32xf32>
    %392 = arith.addf %388, %391 : vector<8x32xf32>
    %393 = arith.addf %392, %363 : vector<8x32xf32>
    %c1_173 = arith.constant 1 : index
    %c0_174 = arith.constant 0 : index
    %c0_175 = arith.constant 0 : index
    %394 = vector.load %arg15[%c1_173, %c0_174, %c0_175] : memref<2x1x32xf32, #tpu.memory_space<vmem>>, vector<1x1x32xf32>
    %395 = vector.shape_cast %394 : vector<1x1x32xf32> to vector<1x32xf32>
    %c1_176 = arith.constant 1 : index
    %c0_177 = arith.constant 0 : index
    %c0_178 = arith.constant 0 : index
    %396 = vector.load %arg16[%c1_176, %c0_177, %c0_178] : memref<2x1x32xf32, #tpu.memory_space<vmem>>, vector<1x1x32xf32>
    %397 = vector.shape_cast %396 : vector<1x1x32xf32> to vector<1x32xf32>
    %cst_179 = arith.constant dense<0.000000e+00> : vector<8xf32>
    %398 = vector.multi_reduction <add>, %393, %cst_179 [1] : vector<8x32xf32> to vector<8xf32>
    %399 = vector.shape_cast %398 : vector<8xf32> to vector<8x1xf32>
    %cst_180 = arith.constant 3.200000e+01 : f32
    %400 = vector.broadcast %cst_180 : f32 to vector<8x1xf32>
    %401 = arith.divf %399, %400 : vector<8x1xf32>
    %402 = vector.broadcast %401 : vector<8x1xf32> to vector<8x32xf32>
    %403 = arith.subf %393, %402 : vector<8x32xf32>
    %404 = arith.mulf %403, %403 : vector<8x32xf32>
    %cst_181 = arith.constant dense<0.000000e+00> : vector<8xf32>
    %405 = vector.multi_reduction <add>, %404, %cst_181 [1] : vector<8x32xf32> to vector<8xf32>
    %406 = vector.shape_cast %405 : vector<8xf32> to vector<8x1xf32>
    %cst_182 = arith.constant 3.200000e+01 : f32
    %407 = vector.broadcast %cst_182 : f32 to vector<8x1xf32>
    %408 = arith.divf %406, %407 : vector<8x1xf32>
    %cst_183 = arith.constant 9.99999996E-13 : f32
    %409 = vector.broadcast %cst_183 : f32 to vector<8x1xf32>
    %410 = arith.addf %408, %409 : vector<8x1xf32>
    %411 = math.rsqrt %410 : vector<8x1xf32>
    %412 = vector.broadcast %411 : vector<8x1xf32> to vector<8x32xf32>
    %413 = arith.mulf %403, %412 : vector<8x32xf32>
    %414 = vector.broadcast %395 : vector<1x32xf32> to vector<8x32xf32>
    %415 = arith.mulf %413, %414 : vector<8x32xf32>
    %416 = vector.broadcast %397 : vector<1x32xf32> to vector<8x32xf32>
    %417 = arith.addf %415, %416 : vector<8x32xf32>
    %c0_184 = arith.constant 0 : index
    %c0_185 = arith.constant 0 : index
    %c0_186 = arith.constant 0 : index
    %418 = vector.load %arg17[%c0_184, %c0_185, %c0_186] : memref<1x8x32xf32, #tpu.memory_space<vmem>>, vector<1x8x32xf32>
    %419 = vector.shape_cast %418 : vector<1x8x32xf32> to vector<8x32xf32>
    %420 = vector.shape_cast %417 : vector<8x32xf32> to vector<1x8x32xf32>
    tpu.vector_store %arg17[%c0_184, %c0_185, %c0_186], %420 {strides = array<i32>} : memref<1x8x32xf32, #tpu.memory_space<vmem>>, vector<1x8x32xf32>,
    return
  }
  func.func @transform_0(%arg0: i32) -> (i32, i32, i32) {
    %c0_i32 = arith.constant 0 : i32
    %c0_i32_0 = arith.constant 0 : i32
    %c0_i32_1 = arith.constant 0 : i32
    return %arg0, %c0_i32, %c0_i32_0 : i32, i32, i32
  }
  func.func @transform_1(%arg0: i32) -> (i32, i32, i32) {
    %c0_i32 = arith.constant 0 : i32
    %c0_i32_0 = arith.constant 0 : i32
    %c0_i32_1 = arith.constant 0 : i32
    return %arg0, %c0_i32, %c0_i32_0 : i32, i32, i32
  }
  func.func @transform_2(%arg0: i32) -> (i32, i32) {
    %c0_i32 = arith.constant 0 : i32
    %c0_i32_0 = arith.constant 0 : i32
    %c0_i32_1 = arith.constant 0 : i32
    return %c0_i32, %c0_i32_0 : i32, i32
  }
  func.func @transform_3(%arg0: i32) -> (i32, i32) {
    %c0_i32 = arith.constant 0 : i32
    %c0_i32_0 = arith.constant 0 : i32
    %c0_i32_1 = arith.constant 0 : i32
    return %c0_i32, %c0_i32_0 : i32, i32
  }
  func.func @transform_4(%arg0: i32) -> (i32, i32, i32) {
    %c0_i32 = arith.constant 0 : i32
    %c0_i32_0 = arith.constant 0 : i32
    %c0_i32_1 = arith.constant 0 : i32
    %c0_i32_2 = arith.constant 0 : i32
    return %c0_i32, %c0_i32_0, %c0_i32_1 : i32, i32, i32
  }
  func.func @transform_5(%arg0: i32) -> (i32, i32, i32) {
    %c0_i32 = arith.constant 0 : i32
    %c0_i32_0 = arith.constant 0 : i32
    %c0_i32_1 = arith.constant 0 : i32
    %c0_i32_2 = arith.constant 0 : i32
    return %c0_i32, %c0_i32_0, %c0_i32_1 : i32, i32, i32
  }
  func.func @transform_6(%arg0: i32) -> (i32, i32, i32, i32) {
    %c0_i32 = arith.constant 0 : i32
    %c0_i32_0 = arith.constant 0 : i32
    %c0_i32_1 = arith.constant 0 : i32
    %c0_i32_2 = arith.constant 0 : i32
    %c0_i32_3 = arith.constant 0 : i32
    return %c0_i32, %c0_i32_0, %c0_i32_1, %c0_i32_2 : i32, i32, i32, i32
  }
  func.func @transform_7(%arg0: i32) -> (i32, i32, i32) {
    %c0_i32 = arith.constant 0 : i32
    %c0_i32_0 = arith.constant 0 : i32
    %c0_i32_1 = arith.constant 0 : i32
    %c0_i32_2 = arith.constant 0 : i32
    return %c0_i32, %c0_i32_0, %c0_i32_1 : i32, i32, i32
  }
  func.func @transform_8(%arg0: i32) -> (i32, i32, i32) {
    %c0_i32 = arith.constant 0 : i32
    %c0_i32_0 = arith.constant 0 : i32
    %c0_i32_1 = arith.constant 0 : i32
    %c0_i32_2 = arith.constant 0 : i32
    return %c0_i32, %c0_i32_0, %c0_i32_1 : i32, i32, i32
  }
  func.func @transform_9(%arg0: i32) -> (i32, i32, i32) {
    %c0_i32 = arith.constant 0 : i32
    %c0_i32_0 = arith.constant 0 : i32
    %c0_i32_1 = arith.constant 0 : i32
    %c0_i32_2 = arith.constant 0 : i32
    return %c0_i32, %c0_i32_0, %c0_i32_1 : i32, i32, i32
  }
  func.func @transform_10(%arg0: i32) -> (i32, i32, i32) {
    %c0_i32 = arith.constant 0 : i32
    %c0_i32_0 = arith.constant 0 : i32
    %c0_i32_1 = arith.constant 0 : i32
    %c0_i32_2 = arith.constant 0 : i32
    return %c0_i32, %c0_i32_0, %c0_i32_1 : i32, i32, i32
  }
  func.func @transform_11(%arg0: i32) -> (i32, i32, i32) {
    %c0_i32 = arith.constant 0 : i32
    %c0_i32_0 = arith.constant 0 : i32
    %c0_i32_1 = arith.constant 0 : i32
    %c0_i32_2 = arith.constant 0 : i32
    return %c0_i32, %c0_i32_0, %c0_i32_1 : i32, i32, i32
  }
  func.func @transform_12(%arg0: i32) -> (i32, i32, i32) {
    %c0_i32 = arith.constant 0 : i32
    %c0_i32_0 = arith.constant 0 : i32
    %c0_i32_1 = arith.constant 0 : i32
    %c0_i32_2 = arith.constant 0 : i32
    return %c0_i32, %c0_i32_0, %c0_i32_1 : i32, i32, i32
  }
  func.func @transform_13(%arg0: i32) -> (i32, i32, i32) {
    %c0_i32 = arith.constant 0 : i32
    %c0_i32_0 = arith.constant 0 : i32
    %c0_i32_1 = arith.constant 0 : i32
    %c0_i32_2 = arith.constant 0 : i32
    return %c0_i32, %c0_i32_0, %c0_i32_1 : i32, i32, i32
  }
  func.func @transform_14(%arg0: i32) -> (i32, i32, i32) {
    %c0_i32 = arith.constant 0 : i32
    %c0_i32_0 = arith.constant 0 : i32
    %c0_i32_1 = arith.constant 0 : i32
    %c0_i32_2 = arith.constant 0 : i32
    return %c0_i32, %c0_i32_0, %c0_i32_1 : i32, i32, i32
  }
  func.func @transform_15(%arg0: i32) -> (i32, i32, i32) {
    %c0_i32 = arith.constant 0 : i32
    %c0_i32_0 = arith.constant 0 : i32
    %c0_i32_1 = arith.constant 0 : i32
    %c0_i32_2 = arith.constant 0 : i32
    return %c0_i32, %c0_i32_0, %c0_i32_1 : i32, i32, i32
  }
  func.func @transform_16(%arg0: i32) -> (i32, i32, i32) {
    %c0_i32 = arith.constant 0 : i32
    %c0_i32_0 = arith.constant 0 : i32
    %c0_i32_1 = arith.constant 0 : i32
    return %arg0, %c0_i32, %c0_i32_0 : i32, i32, i32
  }
}

</mosaic_0001>

<llo_original>
// kernel: sentiment_classifier_forward.1
$region0: #{sentiment_classifier_forward.1}
  #allocation0 [shape = 'u32[]', space=smem, size = 0x4, offset = 0x4, fixed_abs, tag = 'smem constant byte address 0x4 - core index']
  #allocation1 [shape = 'u32[144,128]{1,0:T(1,128)}', space=vmem, size = 0x12000, scoped, tag = 'internal scratch']
  %s0 = inlined_call_operand.vmem [shape: f32[2,8,32], index: 0, kind: input, shape index: {}]
  %s1 = inlined_call_operand.vmem [shape: f32[2,1,8], index: 1, kind: input, shape index: {}]
  %s2 = inlined_call_operand.vmem [shape: f32[1,32], index: 2, kind: input, shape index: {}]
  %s3 = inlined_call_operand.vmem [shape: f32[1,32], index: 3, kind: input, shape index: {}]
  %s4 = inlined_call_operand.vmem [shape: bf16[2,32,96], index: 4, kind: input, shape index: {}]
  %s5 = inlined_call_operand.vmem [shape: f32[2,1,96], index: 5, kind: input, shape index: {}]
  %s6 = inlined_call_operand.vmem [shape: bf16[2,4,8,32], index: 6, kind: input, shape index: {}]
  %s7 = inlined_call_operand.vmem [shape: f32[2,1,32], index: 7, kind: input, shape index: {}]
  %s8 = inlined_call_operand.vmem [shape: f32[2,1,32], index: 8, kind: input, shape index: {}]
  %s9 = inlined_call_operand.vmem [shape: f32[2,1,32], index: 9, kind: input, shape index: {}]
  %s10 = inlined_call_operand.vmem [shape: bf16[2,32,64], index: 10, kind: input, shape index: {}]
  %s11 = inlined_call_operand.vmem [shape: f32[2,1,64], index: 11, kind: input, shape index: {}]
  %s12 = inlined_call_operand.vmem [shape: bf16[2,64,32], index: 12, kind: input, shape index: {}]
  %s13 = inlined_call_operand.vmem [shape: f32[2,1,32], index: 13, kind: input, shape index: {}]
  %s14 = inlined_call_operand.vmem [shape: f32[2,1,32], index: 14, kind: input, shape index: {}]
  %s15 = inlined_call_operand.vmem [shape: f32[2,1,32], index: 15, kind: input, shape index: {}]
  %s16 = inlined_call_operand.vmem [shape: f32[2,8,32], index: 16, kind: output, shape index: {}]
  %s17 = sld [smem:[#allocation0]]
  $region97: #{sentiment_classifier_forward.1} parent=0
    _
  %s19 = ssub.s32 1, %s17
  %s20 = scalar_select 0, %s19, %s17
  loop: start=0, step=1, limit=4
  $region2: #{sentiment_classifier_forward.1} parent=0 // loop_pre_header
    _
  $region3: #{sentiment_classifier_forward.1} parent=0 // loop_header
    %s22 = sphi 0, %s26
    %p23 = scmp.ge.s32.totalorder %s22, 4
    %s32 = sphi 0, %s34
    %s35 = sphi 0, %s32
    %s36 = sphi 0, %s35
    %s52 = sphi 0, %s36
    %s58 = sphi 0, %s60
    %s61 = sphi 0, %s58
    %s62 = sphi 0, %s61
    %s78 = sphi 0, %s62
    %s82 = sphi 0, %s82
    %s84 = sphi 0, %s82
    %s85 = sphi 0, %s84
    %s99 = sphi 0, %s85
    %s103 = sphi 0, %s103
    %s105 = sphi 0, %s103
    %s106 = sphi 0, %s105
    %s120 = sphi 0, %s106
    %s124 = sphi 0, %s124
    %s126 = sphi 0, %s124
    %s127 = sphi 0, %s126
    %s141 = sphi 0, %s127
    %s145 = sphi 0, %s145
    %s147 = sphi 0, %s145
    %s148 = sphi 0, %s147
    %s162 = sphi 0, %s148
    %s166 = sphi 0, %s166
    %s168 = sphi 0, %s166
    %s169 = sphi 0, %s168
    %s183 = sphi 0, %s169
    %s187 = sphi 0, %s187
    %s189 = sphi 0, %s187
    %s190 = sphi 0, %s189
    %s204 = sphi 0, %s190
    %s208 = sphi 0, %s208
    %s210 = sphi 0, %s208
    %s211 = sphi 0, %s210
    %s225 = sphi 0, %s211
    %s229 = sphi 0, %s229
    %s231 = sphi 0, %s229
    %s232 = sphi 0, %s231
    %s246 = sphi 0, %s232
    %s250 = sphi 0, %s250
    %s252 = sphi 0, %s250
    %s253 = sphi 0, %s252
    %s267 = sphi 0, %s253
    %s271 = sphi 0, %s271
    %s273 = sphi 0, %s271
    %s274 = sphi 0, %s273
    %s288 = sphi 0, %s274
    %s292 = sphi 0, %s292
    %s294 = sphi 0, %s292
    %s295 = sphi 0, %s294
    %s309 = sphi 0, %s295
    %s313 = sphi 0, %s313
    %s315 = sphi 0, %s313
    %s316 = sphi 0, %s315
    %s330 = sphi 0, %s316
    %s334 = sphi 0, %s334
    %s336 = sphi 0, %s334
    %s337 = sphi 0, %s336
    %s351 = sphi 0, %s337
    %s355 = sphi 0, %s355
    %s357 = sphi 0, %s355
    %s358 = sphi 0, %s357
    %s372 = sphi 0, %s358
    %s378 = sphi 0, %s380
    %s381 = sphi 0, %s378
    %s382 = sphi 0, %s381
    %s398 = sphi 0, %s382
  $region4: #{sentiment_classifier_forward.1} parent=0 // loop_header_branch
    %25 = sbr.rel (%p23) target = $region8
  $region5: #{sentiment_classifier_forward.1} parent=0 // loop_body
    %s27 = ssub.s32 %s22, 1
    %s28 = ssub.s32 %s22, 2
    %s29 = sadd.s32 %s22, 1
    %s30 = ssub.s32 %s22, %s29
    %p31 = scmp.eq.s32.totalorder %s30, 0
    %s33 = sadd.s32 %s32, 1
    %s34 = scalar_select %p31, %s32, %s33
    %p37 = pneg %p31
    %p38 = scmp.eq.s32.totalorder %s22, 1
    %p39 = por %p37, %p38
    %p40 = scmp.ne.s32.totalorder %s32, %s35
    %p41 = scmp.eq.s32.totalorder %s22, 0
    %p42 = por %p40, %p41
    %p43 = scmp.ne.s32.totalorder %s32, %s35
    %p44 = scmp.eq.s32.totalorder %s27, 1
    %p45 = por %p43, %p44
    %p46 = scmp.ne.s32.totalorder %s35, %s36
    %p47 = scmp.eq.s32.totalorder %s27, 0
    %p48 = por %p46, %p47
    %p49 = scmp.ne.s32.totalorder %s35, %s36
    %p50 = scmp.eq.s32.totalorder %s28, 1
    %p51 = por %p49, %p50
    %p53 = scmp.ne.s32.totalorder %s36, %s52
    %p54 = scmp.eq.s32.totalorder %s28, 0
    %p55 = por %p53, %p54
    %s56 = ssub.s32 %s22, %s29
    %p57 = scmp.eq.s32.totalorder %s56, 0
    %s59 = sadd.s32 %s58, 1
    %s60 = scalar_select %p57, %s58, %s59
    %p63 = pneg %p57
    %p64 = scmp.eq.s32.totalorder %s22, 1
    %p65 = por %p63, %p64
    %p66 = scmp.ne.s32.totalorder %s58, %s61
    %p67 = scmp.eq.s32.totalorder %s22, 0
    %p68 = por %p66, %p67
    %p69 = scmp.ne.s32.totalorder %s58, %s61
    %p70 = scmp.eq.s32.totalorder %s27, 1
    %p71 = por %p69, %p70
    %p72 = scmp.ne.s32.totalorder %s61, %s62
    %p73 = scmp.eq.s32.totalorder %s27, 0
    %p74 = por %p72, %p73
    %p75 = scmp.ne.s32.totalorder %s61, %s62
    %p76 = scmp.eq.s32.totalorder %s28, 1
    %p77 = por %p75, %p76
    %p79 = scmp.ne.s32.totalorder %s62, %s78
    %p80 = scmp.eq.s32.totalorder %s28, 0
    %p81 = por %p79, %p80
    %s83 = sadd.s32 %s82, 1
    %p86 = scmp.eq.s32.totalorder %s22, 1
    %p87 = scmp.ne.s32.totalorder %s82, %s84
    %p88 = scmp.eq.s32.totalorder %s22, 0
    %p89 = por %p87, %p88
    %p90 = scmp.ne.s32.totalorder %s82, %s84
    %p91 = scmp.eq.s32.totalorder %s27, 1
    %p92 = por %p90, %p91
    %p93 = scmp.ne.s32.totalorder %s84, %s85
    %p94 = scmp.eq.s32.totalorder %s27, 0
    %p95 = por %p93, %p94
    %p96 = scmp.ne.s32.totalorder %s84, %s85
    %p97 = scmp.eq.s32.totalorder %s28, 1
    %p98 = por %p96, %p97
    %p100 = scmp.ne.s32.totalorder %s85, %s99
    %p101 = scmp.eq.s32.totalorder %s28, 0
    %p102 = por %p100, %p101
    %s104 = sadd.s32 %s103, 1
    %p107 = scmp.eq.s32.totalorder %s22, 1
    %p108 = scmp.ne.s32.totalorder %s103, %s105
    %p109 = scmp.eq.s32.totalorder %s22, 0
    %p110 = por %p108, %p109
    %p111 = scmp.ne.s32.totalorder %s103, %s105
    %p112 = scmp.eq.s32.totalorder %s27, 1
    %p113 = por %p111, %p112
    %p114 = scmp.ne.s32.totalorder %s105, %s106
    %p115 = scmp.eq.s32.totalorder %s27, 0
    %p116 = por %p114, %p115
    %p117 = scmp.ne.s32.totalorder %s105, %s106
    %p118 = scmp.eq.s32.totalorder %s28, 1
    %p119 = por %p117, %p118
    %p121 = scmp.ne.s32.totalorder %s106, %s120
    %p122 = scmp.eq.s32.totalorder %s28, 0
    %p123 = por %p121, %p122
    %s125 = sadd.s32 %s124, 1
    %p128 = scmp.eq.s32.totalorder %s22, 1
    %p129 = scmp.ne.s32.totalorder %s124, %s126
    %p130 = scmp.eq.s32.totalorder %s22, 0
    %p131 = por %p129, %p130
    %p132 = scmp.ne.s32.totalorder %s124, %s126
    %p133 = scmp.eq.s32.totalorder %s27, 1
    %p134 = por %p132, %p133
    %p135 = scmp.ne.s32.totalorder %s126, %s127
    %p136 = scmp.eq.s32.totalorder %s27, 0
    %p137 = por %p135, %p136
    %p138 = scmp.ne.s32.totalorder %s126, %s127
    %p139 = scmp.eq.s32.totalorder %s28, 1
    %p140 = por %p138, %p139
    %p142 = scmp.ne.s32.totalorder %s127, %s141
    %p143 = scmp.eq.s32.totalorder %s28, 0
    %p144 = por %p142, %p143
    %s146 = sadd.s32 %s145, 1
    %p149 = scmp.eq.s32.totalorder %s22, 1
    %p150 = scmp.ne.s32.totalorder %s145, %s147
    %p151 = scmp.eq.s32.totalorder %s22, 0
    %p152 = por %p150, %p151
    %p153 = scmp.ne.s32.totalorder %s145, %s147
    %p154 = scmp.eq.s32.totalorder %s27, 1
    %p155 = por %p153, %p154
    %p156 = scmp.ne.s32.totalorder %s147, %s148
    %p157 = scmp.eq.s32.totalorder %s27, 0
    %p158 = por %p156, %p157
    %p159 = scmp.ne.s32.totalorder %s147, %s148
    %p160 = scmp.eq.s32.totalorder %s28, 1
    %p161 = por %p159, %p160
    %p163 = scmp.ne.s32.totalorder %s148, %s162
    %p164 = scmp.eq.s32.totalorder %s28, 0
    %p165 = por %p163, %p164
    %s167 = sadd.s32 %s166, 1
    %p170 = scmp.eq.s32.totalorder %s22, 1
    %p171 = scmp.ne.s32.totalorder %s166, %s168
    %p172 = scmp.eq.s32.totalorder %s22, 0
    %p173 = por %p171, %p172
    %p174 = scmp.ne.s32.totalorder %s166, %s168
    %p175 = scmp.eq.s32.totalorder %s27, 1
    %p176 = por %p174, %p175
    %p177 = scmp.ne.s32.totalorder %s168, %s169
    %p178 = scmp.eq.s32.totalorder %s27, 0
    %p179 = por %p177, %p178
    %p180 = scmp.ne.s32.totalorder %s168, %s169
    %p181 = scmp.eq.s32.totalorder %s28, 1
    %p182 = por %p180, %p181
    %p184 = scmp.ne.s32.totalorder %s169, %s183
    %p185 = scmp.eq.s32.totalorder %s28, 0
    %p186 = por %p184, %p185
    %s188 = sadd.s32 %s187, 1
    %p191 = scmp.eq.s32.totalorder %s22, 1
    %p192 = scmp.ne.s32.totalorder %s187, %s189
    %p193 = scmp.eq.s32.totalorder %s22, 0
    %p194 = por %p192, %p193
    %p195 = scmp.ne.s32.totalorder %s187, %s189
    %p196 = scmp.eq.s32.totalorder %s27, 1
    %p197 = por %p195, %p196
    %p198 = scmp.ne.s32.totalorder %s189, %s190
    %p199 = scmp.eq.s32.totalorder %s27, 0
    %p200 = por %p198, %p199
    %p201 = scmp.ne.s32.totalorder %s189, %s190
    %p202 = scmp.eq.s32.totalorder %s28, 1
    %p203 = por %p201, %p202
    %p205 = scmp.ne.s32.totalorder %s190, %s204
    %p206 = scmp.eq.s32.totalorder %s28, 0
    %p207 = por %p205, %p206
    %s209 = sadd.s32 %s208, 1
    %p212 = scmp.eq.s32.totalorder %s22, 1
    %p213 = scmp.ne.s32.totalorder %s208, %s210
    %p214 = scmp.eq.s32.totalorder %s22, 0
    %p215 = por %p213, %p214
    %p216 = scmp.ne.s32.totalorder %s208, %s210
    %p217 = scmp.eq.s32.totalorder %s27, 1
    %p218 = por %p216, %p217
    %p219 = scmp.ne.s32.totalorder %s210, %s211
    %p220 = scmp.eq.s32.totalorder %s27, 0
    %p221 = por %p219, %p220
    %p222 = scmp.ne.s32.totalorder %s210, %s211
    %p223 = scmp.eq.s32.totalorder %s28, 1
    %p224 = por %p222, %p223
    %p226 = scmp.ne.s32.totalorder %s211, %s225
    %p227 = scmp.eq.s32.totalorder %s28, 0
    %p228 = por %p226, %p227
    %s230 = sadd.s32 %s229, 1
    %p233 = scmp.eq.s32.totalorder %s22, 1
    %p234 = scmp.ne.s32.totalorder %s229, %s231
    %p235 = scmp.eq.s32.totalorder %s22, 0
    %p236 = por %p234, %p235
    %p237 = scmp.ne.s32.totalorder %s229, %s231
    %p238 = scmp.eq.s32.totalorder %s27, 1
    %p239 = por %p237, %p238
    %p240 = scmp.ne.s32.totalorder %s231, %s232
    %p241 = scmp.eq.s32.totalorder %s27, 0
    %p242 = por %p240, %p241
    %p243 = scmp.ne.s32.totalorder %s231, %s232
    %p244 = scmp.eq.s32.totalorder %s28, 1
    %p245 = por %p243, %p244
    %p247 = scmp.ne.s32.totalorder %s232, %s246
    %p248 = scmp.eq.s32.totalorder %s28, 0
    %p249 = por %p247, %p248
    %s251 = sadd.s32 %s250, 1
    %p254 = scmp.eq.s32.totalorder %s22, 1
    %p255 = scmp.ne.s32.totalorder %s250, %s252
    %p256 = scmp.eq.s32.totalorder %s22, 0
    %p257 = por %p255, %p256
    %p258 = scmp.ne.s32.totalorder %s250, %s252
    %p259 = scmp.eq.s32.totalorder %s27, 1
    %p260 = por %p258, %p259
    %p261 = scmp.ne.s32.totalorder %s252, %s253
    %p262 = scmp.eq.s32.totalorder %s27, 0
    %p263 = por %p261, %p262
    %p264 = scmp.ne.s32.totalorder %s252, %s253
    %p265 = scmp.eq.s32.totalorder %s28, 1
    %p266 = por %p264, %p265
    %p268 = scmp.ne.s32.totalorder %s253, %s267
    %p269 = scmp.eq.s32.totalorder %s28, 0
    %p270 = por %p268, %p269
    %s272 = sadd.s32 %s271, 1
    %p275 = scmp.eq.s32.totalorder %s22, 1
    %p276 = scmp.ne.s32.totalorder %s271, %s273
    %p277 = scmp.eq.s32.totalorder %s22, 0
    %p278 = por %p276, %p277
    %p279 = scmp.ne.s32.totalorder %s271, %s273
    %p280 = scmp.eq.s32.totalorder %s27, 1
    %p281 = por %p279, %p280
    %p282 = scmp.ne.s32.totalorder %s273, %s274
    %p283 = scmp.eq.s32.totalorder %s27, 0
    %p284 = por %p282, %p283
    %p285 = scmp.ne.s32.totalorder %s273, %s274
    %p286 = scmp.eq.s32.totalorder %s28, 1
    %p287 = por %p285, %p286
    %p289 = scmp.ne.s32.totalorder %s274, %s288
    %p290 = scmp.eq.s32.totalorder %s28, 0
    %p291 = por %p289, %p290
    %s293 = sadd.s32 %s292, 1
    %p296 = scmp.eq.s32.totalorder %s22, 1
    %p297 = scmp.ne.s32.totalorder %s292, %s294
    %p298 = scmp.eq.s32.totalorder %s22, 0
    %p299 = por %p297, %p298
    %p300 = scmp.ne.s32.totalorder %s292, %s294
    %p301 = scmp.eq.s32.totalorder %s27, 1
    %p302 = por %p300, %p301
    %p303 = scmp.ne.s32.totalorder %s294, %s295
    %p304 = scmp.eq.s32.totalorder %s27, 0
    %p305 = por %p303, %p304
    %p306 = scmp.ne.s32.totalorder %s294, %s295
    %p307 = scmp.eq.s32.totalorder %s28, 1
    %p308 = por %p306, %p307
    %p310 = scmp.ne.s32.totalorder %s295, %s309
    %p311 = scmp.eq.s32.totalorder %s28, 0
    %p312 = por %p310, %p311
    %s314 = sadd.s32 %s313, 1
    %p317 = scmp.eq.s32.totalorder %s22, 1
    %p318 = scmp.ne.s32.totalorder %s313, %s315
    %p319 = scmp.eq.s32.totalorder %s22, 0
    %p320 = por %p318, %p319
    %p321 = scmp.ne.s32.totalorder %s313, %s315
    %p322 = scmp.eq.s32.totalorder %s27, 1
    %p323 = por %p321, %p322
    %p324 = scmp.ne.s32.totalorder %s315, %s316
    %p325 = scmp.eq.s32.totalorder %s27, 0
    %p326 = por %p324, %p325
    %p327 = scmp.ne.s32.totalorder %s315, %s316
    %p328 = scmp.eq.s32.totalorder %s28, 1
    %p329 = por %p327, %p328
    %p331 = scmp.ne.s32.totalorder %s316, %s330
    %p332 = scmp.eq.s32.totalorder %s28, 0
    %p333 = por %p331, %p332
    %s335 = sadd.s32 %s334, 1
    %p338 = scmp.eq.s32.totalorder %s22, 1
    %p339 = scmp.ne.s32.totalorder %s334, %s336
    %p340 = scmp.eq.s32.totalorder %s22, 0
    %p341 = por %p339, %p340
    %p342 = scmp.ne.s32.totalorder %s334, %s336
    %p343 = scmp.eq.s32.totalorder %s27, 1
    %p344 = por %p342, %p343
    %p345 = scmp.ne.s32.totalorder %s336, %s337
    %p346 = scmp.eq.s32.totalorder %s27, 0
    %p347 = por %p345, %p346
    %p348 = scmp.ne.s32.totalorder %s336, %s337
    %p349 = scmp.eq.s32.totalorder %s28, 1
    %p350 = por %p348, %p349
    %p352 = scmp.ne.s32.totalorder %s337, %s351
    %p353 = scmp.eq.s32.totalorder %s28, 0
    %p354 = por %p352, %p353
    %s356 = sadd.s32 %s355, 1
    %p359 = scmp.eq.s32.totalorder %s22, 1
    %p360 = scmp.ne.s32.totalorder %s355, %s357
    %p361 = scmp.eq.s32.totalorder %s22, 0
    %p362 = por %p360, %p361
    %p363 = scmp.ne.s32.totalorder %s355, %s357
    %p364 = scmp.eq.s32.totalorder %s27, 1
    %p365 = por %p363, %p364
    %p366 = scmp.ne.s32.totalorder %s357, %s358
    %p367 = scmp.eq.s32.totalorder %s27, 0
    %p368 = por %p366, %p367
    %p369 = scmp.ne.s32.totalorder %s357, %s358
    %p370 = scmp.eq.s32.totalorder %s28, 1
    %p371 = por %p369, %p370
    %p373 = scmp.ne.s32.totalorder %s358, %s372
    %p374 = scmp.eq.s32.totalorder %s28, 0
    %p375 = por %p373, %p374
    %s376 = ssub.s32 %s22, %s29
    %p377 = scmp.eq.s32.totalorder %s376, 0
    %s379 = sadd.s32 %s378, 1
    %s380 = scalar_select %p377, %s378, %s379
    %p383 = pneg %p377
    %p384 = scmp.eq.s32.totalorder %s22, 1
    %p385 = por %p383, %p384
    %p386 = scmp.ne.s32.totalorder %s378, %s381
    %p387 = scmp.eq.s32.totalorder %s22, 0
    %p388 = por %p386, %p387
    %p389 = scmp.ne.s32.totalorder %s378, %s381
    %p390 = scmp.eq.s32.totalorder %s27, 1
    %p391 = por %p389, %p390
    %p392 = scmp.ne.s32.totalorder %s381, %s382
    %p393 = scmp.eq.s32.totalorder %s27, 0
    %p394 = por %p392, %p393
    %p395 = scmp.ne.s32.totalorder %s381, %s382
    %p396 = scmp.eq.s32.totalorder %s28, 1
    %p397 = por %p395, %p396
    %p399 = scmp.ne.s32.totalorder %s382, %s398
    %p400 = scmp.eq.s32.totalorder %s28, 0
    %p401 = por %p399, %p400
    %p402 = scmp.le.s32.totalorder 1, %s22
    %p403 = scmp.lt.s32.totalorder %s22, 3
    %p404 = pnand %p402, %p403
    %p405 = pneg %p404
    // Predicated region
    $region9: #{sentiment_classifier_forward.1} parent=5 // pred_check
      _
    $region10: #{sentiment_classifier_forward.1} parent=5 // pred_check_branch
      %407 = sbr.rel (%p404) target = $region12
    $region11: #{sentiment_classifier_forward.1} parent=5 // pred_region
      %s408 = ssub.s32 %s22, 1
      // Predicated region
      $region13: #{sentiment_classifier_forward.1} parent=11 // pred_check
        %p409 = pneg %p95
      $region14: #{sentiment_classifier_forward.1} parent=11 // pred_check_branch
        %411 = sbr.rel (%p409) target = $region16
      $region15: #{sentiment_classifier_forward.1} parent=11 // pred_region
        _
      $region16: #{sentiment_classifier_forward.1} parent=11 // pred_fallthru
        _
      // Predicated region
      $region17: #{sentiment_classifier_forward.1} parent=11 // pred_check
        %p412 = pneg %p116
      $region18: #{sentiment_classifier_forward.1} parent=11 // pred_check_branch
        %414 = sbr.rel (%p412) target = $region20
      $region19: #{sentiment_classifier_forward.1} parent=11 // pred_region
        _
      $region20: #{sentiment_classifier_forward.1} parent=11 // pred_fallthru
        _
      // Predicated region
      $region21: #{sentiment_classifier_forward.1} parent=11 // pred_check
        %p415 = pneg %p137
      $region22: #{sentiment_classifier_forward.1} parent=11 // pred_check_branch
        %417 = sbr.rel (%p415) target = $region24
      $region23: #{sentiment_classifier_forward.1} parent=11 // pred_region
        _
      $region24: #{sentiment_classifier_forward.1} parent=11 // pred_fallthru
        _
      // Predicated region
      $region25: #{sentiment_classifier_forward.1} parent=11 // pred_check
        %p418 = pneg %p158
      $region26: #{sentiment_classifier_forward.1} parent=11 // pred_check_branch
        %420 = sbr.rel (%p418) target = $region28
      $region27: #{sentiment_classifier_forward.1} parent=11 // pred_region
        _
      $region28: #{sentiment_classifier_forward.1} parent=11 // pred_fallthru
        _
      // Predicated region
      $region29: #{sentiment_classifier_forward.1} parent=11 // pred_check
        %p421 = pneg %p179
      $region30: #{sentiment_classifier_forward.1} parent=11 // pred_check_branch
        %423 = sbr.rel (%p421) target = $region32
      $region31: #{sentiment_classifier_forward.1} parent=11 // pred_region
        _
      $region32: #{sentiment_classifier_forward.1} parent=11 // pred_fallthru
        _
      // Predicated region
      $region33: #{sentiment_classifier_forward.1} parent=11 // pred_check
        %p424 = pneg %p200
      $region34: #{sentiment_classifier_forward.1} parent=11 // pred_check_branch
        %426 = sbr.rel (%p424) target = $region36
      $region35: #{sentiment_classifier_forward.1} parent=11 // pred_region
        _
      $region36: #{sentiment_classifier_forward.1} parent=11 // pred_fallthru
        _
      // Predicated region
      $region37: #{sentiment_classifier_forward.1} parent=11 // pred_check
        %p427 = pneg %p221
      $region38: #{sentiment_classifier_forward.1} parent=11 // pred_check_branch
        %429 = sbr.rel (%p427) target = $region40
      $region39: #{sentiment_classifier_forward.1} parent=11 // pred_region
        _
      $region40: #{sentiment_classifier_forward.1} parent=11 // pred_fallthru
        _
      // Predicated region
      $region41: #{sentiment_classifier_forward.1} parent=11 // pred_check
        %p430 = pneg %p242
      $region42: #{sentiment_classifier_forward.1} parent=11 // pred_check_branch
        %432 = sbr.rel (%p430) target = $region44
      $region43: #{sentiment_classifier_forward.1} parent=11 // pred_region
        _
      $region44: #{sentiment_classifier_forward.1} parent=11 // pred_fallthru
        _
      // Predicated region
      $region45: #{sentiment_classifier_forward.1} parent=11 // pred_check
        %p433 = pneg %p263
      $region46: #{sentiment_classifier_forward.1} parent=11 // pred_check_branch
        %435 = sbr.rel (%p433) target = $region48
      $region47: #{sentiment_classifier_forward.1} parent=11 // pred_region
        _
      $region48: #{sentiment_classifier_forward.1} parent=11 // pred_fallthru
        _
      // Predicated region
      $region49: #{sentiment_classifier_forward.1} parent=11 // pred_check
        %p436 = pneg %p284
      $region50: #{sentiment_classifier_forward.1} parent=11 // pred_check_branch
        %438 = sbr.rel (%p436) target = $region52
      $region51: #{sentiment_classifier_forward.1} parent=11 // pred_region
        _
      $region52: #{sentiment_classifier_forward.1} parent=11 // pred_fallthru
        _
      // Predicated region
      $region53: #{sentiment_classifier_forward.1} parent=11 // pred_check
        %p439 = pneg %p305
      $region54: #{sentiment_classifier_forward.1} parent=11 // pred_check_branch
        %441 = sbr.rel (%p439) target = $region56
      $region55: #{sentiment_classifier_forward.1} parent=11 // pred_region
        _
      $region56: #{sentiment_classifier_forward.1} parent=11 // pred_fallthru
        _
      // Predicated region
      $region57: #{sentiment_classifier_forward.1} parent=11 // pred_check
        %p442 = pneg %p326
      $region58: #{sentiment_classifier_forward.1} parent=11 // pred_check_branch
        %444 = sbr.rel (%p442) target = $region60
      $region59: #{sentiment_classifier_forward.1} parent=11 // pred_region
        _
      $region60: #{sentiment_classifier_forward.1} parent=11 // pred_fallthru
        _
      // Predicated region
      $region61: #{sentiment_classifier_forward.1} parent=11 // pred_check
        %p445 = pneg %p347
      $region62: #{sentiment_classifier_forward.1} parent=11 // pred_check_branch
        %447 = sbr.rel (%p445) target = $region64
      $region63: #{sentiment_classifier_forward.1} parent=11 // pred_region
        _
      $region64: #{sentiment_classifier_forward.1} parent=11 // pred_fallthru
        _
      // Predicated region
      $region65: #{sentiment_classifier_forward.1} parent=11 // pred_check
        %p448 = pneg %p368
      $region66: #{sentiment_classifier_forward.1} parent=11 // pred_check_branch
        %450 = sbr.rel (%p448) target = $region68
      $region67: #{sentiment_classifier_forward.1} parent=11 // pred_region
        _
      $region68: #{sentiment_classifier_forward.1} parent=11 // pred_fallthru
        _
    $region12: #{sentiment_classifier_forward.1} parent=5 // pred_fallthru
      _
    %p451 = scmp.lt.s32.totalorder %s22, 2
    // Predicated region
    $region69: #{sentiment_classifier_forward.1} parent=5 // pred_check
      %p452 = pneg %p451
    $region70: #{sentiment_classifier_forward.1} parent=5 // pred_check_branch
      %454 = sbr.rel (%p452) target = $region72
    $region71: #{sentiment_classifier_forward.1} parent=5 // pred_region
      // Predicated region
      $region73: #{sentiment_classifier_forward.1} parent=71 // pred_check
        %p455 = pneg %p42
      $region74: #{sentiment_classifier_forward.1} parent=71 // pred_check_branch
        %457 = sbr.rel (%p455) target = $region76
      $region75: #{sentiment_classifier_forward.1} parent=71 // pred_region
        %p458 = scmp.lt.s32.totalorder %s22, 1
        %s459 = scalar_select %p458, %s22, 1
        %s460 = smul.addr %s459, 8
        %s461 = scalar_lea.vmem %s0, %s460
      $region76: #{sentiment_classifier_forward.1} parent=71 // pred_fallthru
        _
      // Predicated region
      $region77: #{sentiment_classifier_forward.1} parent=71 // pred_check
        %p462 = pneg %p68
      $region78: #{sentiment_classifier_forward.1} parent=71 // pred_check_branch
        %464 = sbr.rel (%p462) target = $region80
      $region79: #{sentiment_classifier_forward.1} parent=71 // pred_region
        %p465 = scmp.lt.s32.totalorder %s22, 1
        %s466 = scalar_select %p465, %s22, 1
        %s467 = scalar_lea.vmem %s1, %s466
      $region80: #{sentiment_classifier_forward.1} parent=71 // pred_fallthru
        _
    $region72: #{sentiment_classifier_forward.1} parent=5 // pred_fallthru
      _
    %p468 = scmp.le.s32.totalorder 1, %s22
    %p469 = scmp.lt.s32.totalorder %s22, 3
    %p470 = pnand %p468, %p469
    %p471 = pneg %p470
    // Predicated region
    $region81: #{sentiment_classifier_forward.1} parent=5 // pred_check
      _
    $region82: #{sentiment_classifier_forward.1} parent=5 // pred_check_branch
      %473 = sbr.rel (%p470) target = $region84
    $region83: #{sentiment_classifier_forward.1} parent=5 // pred_region
      %s474 = ssub.s32 %s22, 1
      %p475 = scmp.lt.s32.totalorder %s27, 1
      %s476 = scalar_select %p475, %s27, 1
      %s477 = smul.addr %s476, 8
      %s478 = scalar_lea.vmem %s0, %s477
      %p479 = pneg %p48
      %p480 = pneg %p45
      %p481 = scmp.lt.s32.totalorder %s27, 1
      %s482 = scalar_select %p481, %s27, 1
      %s483 = scalar_lea.vmem %s1, %s482
      %p484 = pneg %p74
      %p485 = pneg %p71
      %p486 = pneg %p95
      %p487 = pneg %p92
      %p488 = pneg %p116
      %p489 = pneg %p113
      %p490 = pneg %p137
      %p491 = pneg %p134
      %p492 = pneg %p158
      %p493 = pneg %p155
      %p494 = pneg %p179
      %p495 = pneg %p176
      %p496 = pneg %p200
      %p497 = pneg %p197
      %p498 = pneg %p221
      %p499 = pneg %p218
      %p500 = pneg %p242
      %p501 = pneg %p239
      %p502 = pneg %p263
      %p503 = pneg %p260
      %p504 = pneg %p284
      %p505 = pneg %p281
      %p506 = pneg %p305
      %p507 = pneg %p302
      %p508 = pneg %p326
      %p509 = pneg %p323
      %p510 = pneg %p347
      %p511 = pneg %p344
      %p512 = pneg %p368
      %p513 = pneg %p365
      %p514 = pneg %p394
      %p515 = pneg %p391
      %p516 = scmp.lt.s32.totalorder %s27, 1
      %s517 = scalar_select %p516, %s27, 1
      %s518 = smul.addr %s517, 8
      %s519 = scalar_lea.vmem %s16, %s518
      %p520 = scmp.lt.s32.totalorder %s27, 1
      %s521 = scalar_select %p520, %s27, 1
      %s522 = smul.addr %s521, 8
      %s523 = scalar_lea.vmem %s0, %s522
      %p524 = scmp.lt.s32.totalorder %s27, 1
      %s525 = scalar_select %p524, %s27, 1
      %s526 = scalar_lea.vmem %s1, %s525
      %p527 = scmp.lt.s32.totalorder %s27, 1
      %s528 = scalar_select %p527, %s27, 1
      %s529 = smul.addr %s528, 8
      %s530 = scalar_lea.vmem %s16, %s529
      %v532 = vld [vmem:[%s526] sm:$0x1]
      %v533 = vld [vmem:[%s523] sm:$0xff]
      %v534 = vld [vmem:[%s2] sm:$0x1]
      %v535 = vld [vmem:[%s3] sm:$0x1]
      %vm536 = vcmask 261120
      %v537 = vsel %vm536, %v533, 0.0
      %538 = vadd.xlane.f32.xlu0 %v537
      %v539 = vpop.xlane.xlu0 %538
      %v540 = vrcp.pop 32.0
      %v541 = vmul.f32 %v539, %v540
      %v542 = vsub.f32 %v533, %v541
      %v543 = vmul.f32 %v542, %v542
      %v544 = vsel %vm536, %v543, 0.0
      %545 = vadd.xlane.f32.xlu0 %v544
      %v546 = vpop.xlane.xlu0 %545
      %v547 = vmul.f32 %v546, %v540
      %v548 = vadd.f32 %v547, 1e-12
      %v549 = vrsqrt.pop %v548
      %v550 = vmul.f32 %v542, %v549
      %v552 = vlaneseq
      %v553 = vshrl.u32 %v552, 7
      %v554 = vsub.s32 0, %v553
      %v555 = vrot.slane %v534, %v554
      %v557 = vmul.f32 %v550, %v555
      %v559 = vlaneseq
      %v560 = vshrl.u32 %v559, 7
      %v561 = vsub.s32 0, %v560
      %v562 = vrot.slane %v535, %v561
      %v564 = vadd.f32 %v557, %v562
      %v565 = vpack.c.bf16 %v564, %v564
      %v566 = vld [vmem:[%s4] sm:$0xf]
      %v567 = vld [vmem:[%s4 + $0x4] sm:$0xf]
      %v568 = vld [vmem:[%s4 + $0x8] sm:$0xf]
      %v569 = vld [vmem:[%s4 + $0xc] sm:$0xf]
      %v570 = vld [vmem:[%s5] sm:$0x1]
      %v572 = vlaneseq
      %v573 = vshrl.u32 %v572, 7
      %v574 = vsub.s32 0, %v573
      %v575 = vrot.slane %v570, %v574
      %v581 = vunpack.c.l.b16 %v566
      %v582 = vunpack.c.l.b16 %v567
      %v583 = vunpack.c.l.b16 %v568
      %v584 = vunpack.c.l.b16 %v569
      %v585 = vpack.c.b16 %v582, %v581
      %v586 = vpack.c.b16 %v584, %v583
      %v590 = vsel %vm536, %v565, 0
      %592 = vmatprep.subr.bf16.mxu0 0
      %593 = vmatpush1.bf16.msra.mxu0 %v585
      %594 = vmatprep.subr.bf16.mxu0 0
      %595 = vmatpush1.bf16.msra.mxu0 %v586
      %596 = vmatprep.subr.bf16.mxu0 0
      %597 = vmatpush1.bf16.msra.mxu0 0
      %598 = vmatprep.subr.bf16.mxu0 0
      %599 = vmatpush1.bf16.msra.mxu0 0
      %600 = vmatprep.subr.bf16.mxu0 0
      %601 = vmatpush1.bf16.msra.mxu0 0
      %602 = vmatprep.subr.bf16.mxu0 0
      %603 = vmatpush1.bf16.msra.mxu0 0
      %604 = vmatprep.subr.bf16.mxu0 0
      %605 = vmatpush1.bf16.msra.mxu0 0
      %606 = vmatprep.subr.bf16.mxu0 0
      %607 = vmatpush1.bf16.msra.mxu0 0
      %608 = vmatprep.subr.bf16.mxu0 0
      %609 = vmatpush1.bf16.msra.mxu0 0
      %610 = vmatprep.subr.bf16.mxu0 0
      %611 = vmatpush1.bf16.msra.mxu0 0
      %612 = vmatprep.subr.bf16.mxu0 0
      %613 = vmatpush1.bf16.msra.mxu0 0
      %614 = vmatprep.subr.bf16.mxu0 0
      %615 = vmatpush1.bf16.msra.mxu0 0
      %616 = vmatprep.subr.bf16.mxu0 0
      %617 = vmatpush1.bf16.msra.mxu0 0
      %618 = vmatprep.subr.bf16.mxu0 0
      %619 = vmatpush1.bf16.msra.mxu0 0
      %620 = vmatprep.subr.bf16.mxu0 0
      %621 = vmatpush1.bf16.msra.mxu0 0
      %622 = vmatprep.subr.bf16.mxu0 0
      %623 = vmatpush1.bf16.msra.mxu0 0
      %624 = vmatprep.mubr.bf16.mxu0 0
      %625 = vmatmul.mubr.bf16.gmra.mrb[0].mxu0 %v590
      %v626 = vpop.f32.mrb[0].mxu0
      %v627 = vadd.f32 %v575, %v626
      %v628 = vpop.f32.mrb[0].mxu0
      %v629 = vpop.f32.mrb[0].mxu0
      %v630 = vpop.f32.mrb[0].mxu0
      %631 = vdwg.mxu0
      %v632 = vpack.c.bf16 %v627, %v627
      %v634 = vlaneseq
      %v635 = vshrl.u32 %v634, 7
      %v636 = vsub.s32 0, %v635
      %v637 = vrot.slane %v532, %v636
      %640 = vrot.lane.b32.xlu0 %v632, 96
      %v641 = vpop.permute.xlu0 %640
      %vm642 = vcmask 64512
      %v644 = vsel %vm642, %v632, 0
      %v647 = vsel %vm642, %v641, 0
      %649 = vmatprep.subr.bf16.mxu0 0
      %650 = vmatpush1.bf16.xpose.msra.mxu0 %v647
      %651 = vmatprep.subr.bf16.mxu0 0
      %652 = vmatpush1.bf16.xpose.msra.mxu0 0
      %653 = vmatprep.subr.bf16.mxu0 0
      %654 = vmatpush1.bf16.xpose.msra.mxu0 0
      %655 = vmatprep.subr.bf16.mxu0 0
      %656 = vmatpush1.bf16.xpose.msra.mxu0 0
      %657 = vmatprep.subr.bf16.mxu0 0
      %658 = vmatpush1.bf16.xpose.msra.mxu0 0
      %659 = vmatprep.subr.bf16.mxu0 0
      %660 = vmatpush1.bf16.xpose.msra.mxu0 0
      %661 = vmatprep.subr.bf16.mxu0 0
      %662 = vmatpush1.bf16.xpose.msra.mxu0 0
      %663 = vmatprep.subr.bf16.mxu0 0
      %664 = vmatpush1.bf16.xpose.msra.mxu0 0
      %665 = vmatprep.subr.bf16.mxu0 0
      %666 = vmatpush1.bf16.xpose.msra.mxu0 0
      %667 = vmatprep.subr.bf16.mxu0 0
      %668 = vmatpush1.bf16.xpose.msra.mxu0 0
      %669 = vmatprep.subr.bf16.mxu0 0
      %670 = vmatpush1.bf16.xpose.msra.mxu0 0
      %671 = vmatprep.subr.bf16.mxu0 0
      %672 = vmatpush1.bf16.xpose.msra.mxu0 0
      %673 = vmatprep.subr.bf16.mxu0 0
      %674 = vmatpush1.bf16.xpose.msra.mxu0 0
      %675 = vmatprep.subr.bf16.mxu0 0
      %676 = vmatpush1.bf16.xpose.msra.mxu0 0
      %677 = vmatprep.subr.bf16.mxu0 0
      %678 = vmatpush1.bf16.xpose.msra.mxu0 0
      %679 = vmatprep.subr.bf16.mxu0 0
      %680 = vmatpush1.bf16.xpose.msra.mxu0 0
      %681 = vmatprep.mubr.bf16.mxu0 0
      %682 = vmatmul.mubr.bf16.gmra.mrb[0].mxu0 %v644
      %v683 = vpop.f32.mrb[0].mxu0
      %v684 = vadd.f32 %v637, %v683
      %v685 = vpop.f32.mrb[0].mxu0
      %v686 = vpop.f32.mrb[0].mxu0
      %v687 = vpop.f32.mrb[0].mxu0
      %688 = vdwg.mxu0
      %v689 = vsel %vm642, %v684, -inf
      %690 = vmax.xlane.f32.xlu0 %v689
      %v691 = vpop.xlane.xlu0 %690
      %v692 = vsub.f32 %v684, %v691
      %v693 = vmul.f32 %v692, 1.442695
      %v694 = vpow.pop %v693
      %v695 = vsel %vm642, %v694, 0.0
      %696 = vadd.xlane.f32.xlu0 %v695
      %v697 = vpop.xlane.xlu0 %696
      %v698 = vrcp.pop %v697
      %v699 = vmul.f32 %v694, %v698
      %v700 = vpack.c.bf16 %v699, %v699
      %701 = vrot.lane.b32.xlu0 %v632, 64
      %v702 = vpop.permute.xlu0 %701
      %v704 = vsel %vm642, %v700, 0
      %vm706 = vcmask 1043456
      %v708 = vsel %vm706, %v702, 0
      %710 = vmatprep.subr.bf16.mxu0 0
      %711 = vmatpush1.bf16.msra.mxu0 %v708
      %712 = vmatprep.subr.bf16.mxu0 0
      %713 = vmatpush1.bf16.msra.mxu0 0
      %714 = vmatprep.subr.bf16.mxu0 0
      %715 = vmatpush1.bf16.msra.mxu0 0
      %716 = vmatprep.subr.bf16.mxu0 0
      %717 = vmatpush1.bf16.msra.mxu0 0
      %718 = vmatprep.subr.bf16.mxu0 0
      %719 = vmatpush1.bf16.msra.mxu0 0
      %720 = vmatprep.subr.bf16.mxu0 0
      %721 = vmatpush1.bf16.msra.mxu0 0
      %722 = vmatprep.subr.bf16.mxu0 0
      %723 = vmatpush1.bf16.msra.mxu0 0
      %724 = vmatprep.subr.bf16.mxu0 0
      %725 = vmatpush1.bf16.msra.mxu0 0
      %726 = vmatprep.subr.bf16.mxu0 0
      %727 = vmatpush1.bf16.msra.mxu0 0
      %728 = vmatprep.subr.bf16.mxu0 0
      %729 = vmatpush1.bf16.msra.mxu0 0
      %730 = vmatprep.subr.bf16.mxu0 0
      %731 = vmatpush1.bf16.msra.mxu0 0
      %732 = vmatprep.subr.bf16.mxu0 0
      %733 = vmatpush1.bf16.msra.mxu0 0
      %734 = vmatprep.subr.bf16.mxu0 0
      %735 = vmatpush1.bf16.msra.mxu0 0
      %736 = vmatprep.subr.bf16.mxu0 0
      %737 = vmatpush1.bf16.msra.mxu0 0
      %738 = vmatprep.subr.bf16.mxu0 0
      %739 = vmatpush1.bf16.msra.mxu0 0
      %740 = vmatprep.subr.bf16.mxu0 0
      %741 = vmatpush1.bf16.msra.mxu0 0
      %742 = vmatprep.mubr.bf16.mxu0 0
      %743 = vmatmul.mubr.bf16.gmra.mrb[0].mxu0 %v704
      %v744 = vpop.f32.mrb[0].mxu0
      %v745 = vadd.f32 0.0, %v744
      %v746 = vpop.f32.mrb[0].mxu0
      %v747 = vpop.f32.mrb[0].mxu0
      %v748 = vpop.f32.mrb[0].mxu0
      %749 = vdwg.mxu0
      %v750 = vpack.c.bf16 %v745, %v745
      %v751 = vld [vmem:[%s6] sm:$0xf]
      %752 = vrot.lane.b32.xlu0 %v632, 120
      %v753 = vpop.permute.xlu0 %752
      %754 = vrot.lane.b32.xlu0 %v632, 88
      %v755 = vpop.permute.xlu0 %754
      %v757 = vsel %vm642, %v753, 0
      %v760 = vsel %vm642, %v755, 0
      %762 = vmatprep.subr.bf16.mxu0 0
      %763 = vmatpush1.bf16.xpose.msra.mxu0 %v760
      %764 = vmatprep.subr.bf16.mxu0 0
      %765 = vmatpush1.bf16.xpose.msra.mxu0 0
      %766 = vmatprep.subr.bf16.mxu0 0
      %767 = vmatpush1.bf16.xpose.msra.mxu0 0
      %768 = vmatprep.subr.bf16.mxu0 0
      %769 = vmatpush1.bf16.xpose.msra.mxu0 0
      %770 = vmatprep.subr.bf16.mxu0 0
      %771 = vmatpush1.bf16.xpose.msra.mxu0 0
      %772 = vmatprep.subr.bf16.mxu0 0
      %773 = vmatpush1.bf16.xpose.msra.mxu0 0
      %774 = vmatprep.subr.bf16.mxu0 0
      %775 = vmatpush1.bf16.xpose.msra.mxu0 0
      %776 = vmatprep.subr.bf16.mxu0 0
      %777 = vmatpush1.bf16.xpose.msra.mxu0 0
      %778 = vmatprep.subr.bf16.mxu0 0
      %779 = vmatpush1.bf16.xpose.msra.mxu0 0
      %780 = vmatprep.subr.bf16.mxu0 0
      %781 = vmatpush1.bf16.xpose.msra.mxu0 0
      %782 = vmatprep.subr.bf16.mxu0 0
      %783 = vmatpush1.bf16.xpose.msra.mxu0 0
      %784 = vmatprep.subr.bf16.mxu0 0
      %785 = vmatpush1.bf16.xpose.msra.mxu0 0
      %786 = vmatprep.subr.bf16.mxu0 0
      %787 = vmatpush1.bf16.xpose.msra.mxu0 0
      %788 = vmatprep.subr.bf16.mxu0 0
      %789 = vmatpush1.bf16.xpose.msra.mxu0 0
      %790 = vmatprep.subr.bf16.mxu0 0
      %791 = vmatpush1.bf16.xpose.msra.mxu0 0
      %792 = vmatprep.subr.bf16.mxu0 0
      %793 = vmatpush1.bf16.xpose.msra.mxu0 0
      %794 = vmatprep.mubr.bf16.mxu0 0
      %795 = vmatmul.mubr.bf16.gmra.mrb[0].mxu0 %v757
      %v796 = vpop.f32.mrb[0].mxu0
      %v797 = vadd.f32 %v637, %v796
      %v798 = vpop.f32.mrb[0].mxu0
      %v799 = vpop.f32.mrb[0].mxu0
      %v800 = vpop.f32.mrb[0].mxu0
      %801 = vdwg.mxu0
      %v802 = vsel %vm642, %v797, -inf
      %803 = vmax.xlane.f32.xlu0 %v802
      %v804 = vpop.xlane.xlu0 %803
      %v805 = vsub.f32 %v797, %v804
      %v806 = vmul.f32 %v805, 1.442695
      %v807 = vpow.pop %v806
      %v808 = vsel %vm642, %v807, 0.0
      %809 = vadd.xlane.f32.xlu0 %v808
      %v810 = vpop.xlane.xlu0 %809
      %v811 = vrcp.pop %v810
      %v812 = vmul.f32 %v807, %v811
      %v813 = vpack.c.bf16 %v812, %v812
      %814 = vrot.lane.b32.xlu0 %v632, 56
      %v815 = vpop.permute.xlu0 %814
      %v817 = vsel %vm642, %v813, 0
      %v820 = vsel %vm706, %v815, 0
      %822 = vmatprep.subr.bf16.mxu0 0
      %823 = vmatpush1.bf16.msra.mxu0 %v820
      %824 = vmatprep.subr.bf16.mxu0 0
      %825 = vmatpush1.bf16.msra.mxu0 0
      %826 = vmatprep.subr.bf16.mxu0 0
      %827 = vmatpush1.bf16.msra.mxu0 0
      %828 = vmatprep.subr.bf16.mxu0 0
      %829 = vmatpush1.bf16.msra.mxu0 0
      %830 = vmatprep.subr.bf16.mxu0 0
      %831 = vmatpush1.bf16.msra.mxu0 0
      %832 = vmatprep.subr.bf16.mxu0 0
      %833 = vmatpush1.bf16.msra.mxu0 0
      %834 = vmatprep.subr.bf16.mxu0 0
      %835 = vmatpush1.bf16.msra.mxu0 0
      %836 = vmatprep.subr.bf16.mxu0 0
      %837 = vmatpush1.bf16.msra.mxu0 0
      %838 = vmatprep.subr.bf16.mxu0 0
      %839 = vmatpush1.bf16.msra.mxu0 0
      %840 = vmatprep.subr.bf16.mxu0 0
      %841 = vmatpush1.bf16.msra.mxu0 0
      %842 = vmatprep.subr.bf16.mxu0 0
      %843 = vmatpush1.bf16.msra.mxu0 0
      %844 = vmatprep.subr.bf16.mxu0 0
      %845 = vmatpush1.bf16.msra.mxu0 0
      %846 = vmatprep.subr.bf16.mxu0 0
      %847 = vmatpush1.bf16.msra.mxu0 0
      %848 = vmatprep.subr.bf16.mxu0 0
      %849 = vmatpush1.bf16.msra.mxu0 0
      %850 = vmatprep.subr.bf16.mxu0 0
      %851 = vmatpush1.bf16.msra.mxu0 0
      %852 = vmatprep.subr.bf16.mxu0 0
      %853 = vmatpush1.bf16.msra.mxu0 0
      %854 = vmatprep.mubr.bf16.mxu0 0
      %855 = vmatmul.mubr.bf16.gmra.mrb[0].mxu0 %v817
      %v856 = vpop.f32.mrb[0].mxu0
      %v857 = vadd.f32 0.0, %v856
      %v858 = vpop.f32.mrb[0].mxu0
      %v859 = vpop.f32.mrb[0].mxu0
      %v860 = vpop.f32.mrb[0].mxu0
      %861 = vdwg.mxu0
      %v862 = vpack.c.bf16 %v857, %v857
      %s863 = scalar_lea.vmem %s6, 4
      %v864 = vld [vmem:[%s863] sm:$0xf]
      %v866 = vsel %vm642, %v862, 0
      %v869 = vsel %vm706, %v864, 0
      %871 = vmatprep.subr.bf16.mxu0 0
      %872 = vmatpush1.bf16.msra.mxu0 %v869
      %873 = vmatprep.subr.bf16.mxu0 0
      %874 = vmatpush1.bf16.msra.mxu0 0
      %875 = vmatprep.subr.bf16.mxu0 0
      %876 = vmatpush1.bf16.msra.mxu0 0
      %877 = vmatprep.subr.bf16.mxu0 0
      %878 = vmatpush1.bf16.msra.mxu0 0
      %879 = vmatprep.subr.bf16.mxu0 0
      %880 = vmatpush1.bf16.msra.mxu0 0
      %881 = vmatprep.subr.bf16.mxu0 0
      %882 = vmatpush1.bf16.msra.mxu0 0
      %883 = vmatprep.subr.bf16.mxu0 0
      %884 = vmatpush1.bf16.msra.mxu0 0
      %885 = vmatprep.subr.bf16.mxu0 0
      %886 = vmatpush1.bf16.msra.mxu0 0
      %887 = vmatprep.subr.bf16.mxu0 0
      %888 = vmatpush1.bf16.msra.mxu0 0
      %889 = vmatprep.subr.bf16.mxu0 0
      %890 = vmatpush1.bf16.msra.mxu0 0
      %891 = vmatprep.subr.bf16.mxu0 0
      %892 = vmatpush1.bf16.msra.mxu0 0
      %893 = vmatprep.subr.bf16.mxu0 0
      %894 = vmatpush1.bf16.msra.mxu0 0
      %895 = vmatprep.subr.bf16.mxu0 0
      %896 = vmatpush1.bf16.msra.mxu0 0
      %897 = vmatprep.subr.bf16.mxu0 0
      %898 = vmatpush1.bf16.msra.mxu0 0
      %899 = vmatprep.subr.bf16.mxu0 0
      %900 = vmatpush1.bf16.msra.mxu0 0
      %901 = vmatprep.subr.bf16.mxu0 0
      %902 = vmatpush1.bf16.msra.mxu0 0
      %903 = vmatprep.mubr.bf16.mxu0 0
      %904 = vmatmul.mubr.bf16.gmra.mrb[0].mxu0 %v866
      %v905 = vpop.f32.mrb[0].mxu0
      %v906 = vadd.f32 0.0, %v905
      %v907 = vpop.f32.mrb[0].mxu0
      %v908 = vpop.f32.mrb[0].mxu0
      %v909 = vpop.f32.mrb[0].mxu0
      %910 = vdwg.mxu0
      %v912 = vsel %vm642, %v750, 0
      %v915 = vsel %vm706, %v751, 0
      %917 = vmatprep.subr.bf16.mxu0 0
      %918 = vmatpush1.bf16.msra.mxu0 %v915
      %919 = vmatprep.subr.bf16.mxu0 0
      %920 = vmatpush1.bf16.msra.mxu0 0
      %921 = vmatprep.subr.bf16.mxu0 0
      %922 = vmatpush1.bf16.msra.mxu0 0
      %923 = vmatprep.subr.bf16.mxu0 0
      %924 = vmatpush1.bf16.msra.mxu0 0
      %925 = vmatprep.subr.bf16.mxu0 0
      %926 = vmatpush1.bf16.msra.mxu0 0
      %927 = vmatprep.subr.bf16.mxu0 0
      %928 = vmatpush1.bf16.msra.mxu0 0
      %929 = vmatprep.subr.bf16.mxu0 0
      %930 = vmatpush1.bf16.msra.mxu0 0
      %931 = vmatprep.subr.bf16.mxu0 0
      %932 = vmatpush1.bf16.msra.mxu0 0
      %933 = vmatprep.subr.bf16.mxu0 0
      %934 = vmatpush1.bf16.msra.mxu0 0
      %935 = vmatprep.subr.bf16.mxu0 0
      %936 = vmatpush1.bf16.msra.mxu0 0
      %937 = vmatprep.subr.bf16.mxu0 0
      %938 = vmatpush1.bf16.msra.mxu0 0
      %939 = vmatprep.subr.bf16.mxu0 0
      %940 = vmatpush1.bf16.msra.mxu0 0
      %941 = vmatprep.subr.bf16.mxu0 0
      %942 = vmatpush1.bf16.msra.mxu0 0
      %943 = vmatprep.subr.bf16.mxu0 0
      %944 = vmatpush1.bf16.msra.mxu0 0
      %945 = vmatprep.subr.bf16.mxu0 0
      %946 = vmatpush1.bf16.msra.mxu0 0
      %947 = vmatprep.subr.bf16.mxu0 0
      %948 = vmatpush1.bf16.msra.mxu0 0
      %949 = vmatprep.mubr.bf16.mxu0 0
      %950 = vmatmul.mubr.bf16.gmra.mrb[0].mxu0 %v912
      %v951 = vpop.f32.mrb[0].mxu0
      %v952 = vadd.f32 %v906, %v951
      %v953 = vpop.f32.mrb[0].mxu0
      %v954 = vpop.f32.mrb[0].mxu0
      %v955 = vpop.f32.mrb[0].mxu0
      %956 = vdwg.mxu0
      %957 = vrot.lane.b32.xlu0 %v632, 112
      %v958 = vpop.permute.xlu0 %957
      %959 = vrot.lane.b32.xlu0 %v632, 80
      %v960 = vpop.permute.xlu0 %959
      %v962 = vsel %vm642, %v958, 0
      %v965 = vsel %vm642, %v960, 0
      %967 = vmatprep.subr.bf16.mxu0 0
      %968 = vmatpush1.bf16.xpose.msra.mxu0 %v965
      %969 = vmatprep.subr.bf16.mxu0 0
      %970 = vmatpush1.bf16.xpose.msra.mxu0 0
      %971 = vmatprep.subr.bf16.mxu0 0
      %972 = vmatpush1.bf16.xpose.msra.mxu0 0
      %973 = vmatprep.subr.bf16.mxu0 0
      %974 = vmatpush1.bf16.xpose.msra.mxu0 0
      %975 = vmatprep.subr.bf16.mxu0 0
      %976 = vmatpush1.bf16.xpose.msra.mxu0 0
      %977 = vmatprep.subr.bf16.mxu0 0
      %978 = vmatpush1.bf16.xpose.msra.mxu0 0
      %979 = vmatprep.subr.bf16.mxu0 0
      %980 = vmatpush1.bf16.xpose.msra.mxu0 0
      %981 = vmatprep.subr.bf16.mxu0 0
      %982 = vmatpush1.bf16.xpose.msra.mxu0 0
      %983 = vmatprep.subr.bf16.mxu0 0
      %984 = vmatpush1.bf16.xpose.msra.mxu0 0
      %985 = vmatprep.subr.bf16.mxu0 0
      %986 = vmatpush1.bf16.xpose.msra.mxu0 0
      %987 = vmatprep.subr.bf16.mxu0 0
      %988 = vmatpush1.bf16.xpose.msra.mxu0 0
      %989 = vmatprep.subr.bf16.mxu0 0
      %990 = vmatpush1.bf16.xpose.msra.mxu0 0
      %991 = vmatprep.subr.bf16.mxu0 0
      %992 = vmatpush1.bf16.xpose.msra.mxu0 0
      %993 = vmatprep.subr.bf16.mxu0 0
      %994 = vmatpush1.bf16.xpose.msra.mxu0 0
      %995 = vmatprep.subr.bf16.mxu0 0
      %996 = vmatpush1.bf16.xpose.msra.mxu0 0
      %997 = vmatprep.subr.bf16.mxu0 0
      %998 = vmatpush1.bf16.xpose.msra.mxu0 0
      %999 = vmatprep.mubr.bf16.mxu0 0
      %1000 = vmatmul.mubr.bf16.gmra.mrb[0].mxu0 %v962
      %v1001 = vpop.f32.mrb[0].mxu0
      %v1002 = vadd.f32 %v637, %v1001
      %v1003 = vpop.f32.mrb[0].mxu0
      %v1004 = vpop.f32.mrb[0].mxu0
      %v1005 = vpop.f32.mrb[0].mxu0
      %1006 = vdwg.mxu0
      %v1007 = vsel %vm642, %v1002, -inf
      %1008 = vmax.xlane.f32.xlu0 %v1007
      %v1009 = vpop.xlane.xlu0 %1008
      %v1010 = vsub.f32 %v1002, %v1009
      %v1011 = vmul.f32 %v1010, 1.442695
      %v1012 = vpow.pop %v1011
      %v1013 = vsel %vm642, %v1012, 0.0
      %1014 = vadd.xlane.f32.xlu0 %v1013
      %v1015 = vpop.xlane.xlu0 %1014
      %v1016 = vrcp.pop %v1015
      %v1017 = vmul.f32 %v1012, %v1016
      %v1018 = vpack.c.bf16 %v1017, %v1017
      %1019 = vrot.lane.b32.xlu0 %v632, 48
      %v1020 = vpop.permute.xlu0 %1019
      %v1022 = vsel %vm642, %v1018, 0
      %v1025 = vsel %vm706, %v1020, 0
      %1027 = vmatprep.subr.bf16.mxu0 0
      %1028 = vmatpush1.bf16.msra.mxu0 %v1025
      %1029 = vmatprep.subr.bf16.mxu0 0
      %1030 = vmatpush1.bf16.msra.mxu0 0
      %1031 = vmatprep.subr.bf16.mxu0 0
      %1032 = vmatpush1.bf16.msra.mxu0 0
      %1033 = vmatprep.subr.bf16.mxu0 0
      %1034 = vmatpush1.bf16.msra.mxu0 0
      %1035 = vmatprep.subr.bf16.mxu0 0
      %1036 = vmatpush1.bf16.msra.mxu0 0
      %1037 = vmatprep.subr.bf16.mxu0 0
      %1038 = vmatpush1.bf16.msra.mxu0 0
      %1039 = vmatprep.subr.bf16.mxu0 0
      %1040 = vmatpush1.bf16.msra.mxu0 0
      %1041 = vmatprep.subr.bf16.mxu0 0
      %1042 = vmatpush1.bf16.msra.mxu0 0
      %1043 = vmatprep.subr.bf16.mxu0 0
      %1044 = vmatpush1.bf16.msra.mxu0 0
      %1045 = vmatprep.subr.bf16.mxu0 0
      %1046 = vmatpush1.bf16.msra.mxu0 0
      %1047 = vmatprep.subr.bf16.mxu0 0
      %1048 = vmatpush1.bf16.msra.mxu0 0
      %1049 = vmatprep.subr.bf16.mxu0 0
      %1050 = vmatpush1.bf16.msra.mxu0 0
      %1051 = vmatprep.subr.bf16.mxu0 0
      %1052 = vmatpush1.bf16.msra.mxu0 0
      %1053 = vmatprep.subr.bf16.mxu0 0
      %1054 = vmatpush1.bf16.msra.mxu0 0
      %1055 = vmatprep.subr.bf16.mxu0 0
      %1056 = vmatpush1.bf16.msra.mxu0 0
      %1057 = vmatprep.subr.bf16.mxu0 0
      %1058 = vmatpush1.bf16.msra.mxu0 0
      %1059 = vmatprep.mubr.bf16.mxu0 0
      %1060 = vmatmul.mubr.bf16.gmra.mrb[0].mxu0 %v1022
      %v1061 = vpop.f32.mrb[0].mxu0
      %v1062 = vadd.f32 0.0, %v1061
      %v1063 = vpop.f32.mrb[0].mxu0
      %v1064 = vpop.f32.mrb[0].mxu0
      %v1065 = vpop.f32.mrb[0].mxu0
      %1066 = vdwg.mxu0
      %v1067 = vpack.c.bf16 %v1062, %v1062
      %s1068 = scalar_lea.vmem %s6, 8
      %v1069 = vld [vmem:[%s1068] sm:$0xf]
      %v1071 = vsel %vm642, %v1067, 0
      %v1074 = vsel %vm706, %v1069, 0
      %1076 = vmatprep.subr.bf16.mxu0 0
      %1077 = vmatpush1.bf16.msra.mxu0 %v1074
      %1078 = vmatprep.subr.bf16.mxu0 0
      %1079 = vmatpush1.bf16.msra.mxu0 0
      %1080 = vmatprep.subr.bf16.mxu0 0
      %1081 = vmatpush1.bf16.msra.mxu0 0
      %1082 = vmatprep.subr.bf16.mxu0 0
      %1083 = vmatpush1.bf16.msra.mxu0 0
      %1084 = vmatprep.subr.bf16.mxu0 0
      %1085 = vmatpush1.bf16.msra.mxu0 0
      %1086 = vmatprep.subr.bf16.mxu0 0
      %1087 = vmatpush1.bf16.msra.mxu0 0
      %1088 = vmatprep.subr.bf16.mxu0 0
      %1089 = vmatpush1.bf16.msra.mxu0 0
      %1090 = vmatprep.subr.bf16.mxu0 0
      %1091 = vmatpush1.bf16.msra.mxu0 0
      %1092 = vmatprep.subr.bf16.mxu0 0
      %1093 = vmatpush1.bf16.msra.mxu0 0
      %1094 = vmatprep.subr.bf16.mxu0 0
      %1095 = vmatpush1.bf16.msra.mxu0 0
      %1096 = vmatprep.subr.bf16.mxu0 0
      %1097 = vmatpush1.bf16.msra.mxu0 0
      %1098 = vmatprep.subr.bf16.mxu0 0
      %1099 = vmatpush1.bf16.msra.mxu0 0
      %1100 = vmatprep.subr.bf16.mxu0 0
      %1101 = vmatpush1.bf16.msra.mxu0 0
      %1102 = vmatprep.subr.bf16.mxu0 0
      %1103 = vmatpush1.bf16.msra.mxu0 0
      %1104 = vmatprep.subr.bf16.mxu0 0
      %1105 = vmatpush1.bf16.msra.mxu0 0
      %1106 = vmatprep.subr.bf16.mxu0 0
      %1107 = vmatpush1.bf16.msra.mxu0 0
      %1108 = vmatprep.mubr.bf16.mxu0 0
      %1109 = vmatmul.mubr.bf16.gmra.mrb[0].mxu0 %v1071
      %v1110 = vpop.f32.mrb[0].mxu0
      %v1111 = vadd.f32 0.0, %v1110
      %v1112 = vpop.f32.mrb[0].mxu0
      %v1113 = vpop.f32.mrb[0].mxu0
      %v1114 = vpop.f32.mrb[0].mxu0
      %1115 = vdwg.mxu0
      %v1116 = vadd.f32 %v952, %v1111
      %1117 = vrot.lane.b32.xlu0 %v632, 104
      %v1118 = vpop.permute.xlu0 %1117
      %1119 = vrot.lane.b32.xlu0 %v632, 72
      %v1120 = vpop.permute.xlu0 %1119
      %v1122 = vsel %vm642, %v1118, 0
      %v1125 = vsel %vm642, %v1120, 0
      %1127 = vmatprep.subr.bf16.mxu0 0
      %1128 = vmatpush1.bf16.xpose.msra.mxu0 %v1125
      %1129 = vmatprep.subr.bf16.mxu0 0
      %1130 = vmatpush1.bf16.xpose.msra.mxu0 0
      %1131 = vmatprep.subr.bf16.mxu0 0
      %1132 = vmatpush1.bf16.xpose.msra.mxu0 0
      %1133 = vmatprep.subr.bf16.mxu0 0
      %1134 = vmatpush1.bf16.xpose.msra.mxu0 0
      %1135 = vmatprep.subr.bf16.mxu0 0
      %1136 = vmatpush1.bf16.xpose.msra.mxu0 0
      %1137 = vmatprep.subr.bf16.mxu0 0
      %1138 = vmatpush1.bf16.xpose.msra.mxu0 0
      %1139 = vmatprep.subr.bf16.mxu0 0
      %1140 = vmatpush1.bf16.xpose.msra.mxu0 0
      %1141 = vmatprep.subr.bf16.mxu0 0
      %1142 = vmatpush1.bf16.xpose.msra.mxu0 0
      %1143 = vmatprep.subr.bf16.mxu0 0
      %1144 = vmatpush1.bf16.xpose.msra.mxu0 0
      %1145 = vmatprep.subr.bf16.mxu0 0
      %1146 = vmatpush1.bf16.xpose.msra.mxu0 0
      %1147 = vmatprep.subr.bf16.mxu0 0
      %1148 = vmatpush1.bf16.xpose.msra.mxu0 0
      %1149 = vmatprep.subr.bf16.mxu0 0
      %1150 = vmatpush1.bf16.xpose.msra.mxu0 0
      %1151 = vmatprep.subr.bf16.mxu0 0
      %1152 = vmatpush1.bf16.xpose.msra.mxu0 0
      %1153 = vmatprep.subr.bf16.mxu0 0
      %1154 = vmatpush1.bf16.xpose.msra.mxu0 0
      %1155 = vmatprep.subr.bf16.mxu0 0
      %1156 = vmatpush1.bf16.xpose.msra.mxu0 0
      %1157 = vmatprep.subr.bf16.mxu0 0
      %1158 = vmatpush1.bf16.xpose.msra.mxu0 0
      %1159 = vmatprep.mubr.bf16.mxu0 0
      %1160 = vmatmul.mubr.bf16.gmra.mrb[0].mxu0 %v1122
      %v1161 = vpop.f32.mrb[0].mxu0
      %v1162 = vadd.f32 %v637, %v1161
      %v1163 = vpop.f32.mrb[0].mxu0
      %v1164 = vpop.f32.mrb[0].mxu0
      %v1165 = vpop.f32.mrb[0].mxu0
      %1166 = vdwg.mxu0
      %v1167 = vsel %vm642, %v1162, -inf
      %1168 = vmax.xlane.f32.xlu0 %v1167
      %v1169 = vpop.xlane.xlu0 %1168
      %v1170 = vsub.f32 %v1162, %v1169
      %v1171 = vmul.f32 %v1170, 1.442695
      %v1172 = vpow.pop %v1171
      %v1173 = vsel %vm642, %v1172, 0.0
      %1174 = vadd.xlane.f32.xlu0 %v1173
      %v1175 = vpop.xlane.xlu0 %1174
      %v1176 = vrcp.pop %v1175
      %v1177 = vmul.f32 %v1172, %v1176
      %v1178 = vpack.c.bf16 %v1177, %v1177
      %1179 = vrot.lane.b32.xlu0 %v632, 40
      %v1180 = vpop.permute.xlu0 %1179
      %v1182 = vsel %vm642, %v1178, 0
      %v1185 = vsel %vm706, %v1180, 0
      %1187 = vmatprep.subr.bf16.mxu0 0
      %1188 = vmatpush1.bf16.msra.mxu0 %v1185
      %1189 = vmatprep.subr.bf16.mxu0 0
      %1190 = vmatpush1.bf16.msra.mxu0 0
      %1191 = vmatprep.subr.bf16.mxu0 0
      %1192 = vmatpush1.bf16.msra.mxu0 0
      %1193 = vmatprep.subr.bf16.mxu0 0
      %1194 = vmatpush1.bf16.msra.mxu0 0
      %1195 = vmatprep.subr.bf16.mxu0 0
      %1196 = vmatpush1.bf16.msra.mxu0 0
      %1197 = vmatprep.subr.bf16.mxu0 0
      %1198 = vmatpush1.bf16.msra.mxu0 0
      %1199 = vmatprep.subr.bf16.mxu0 0
      %1200 = vmatpush1.bf16.msra.mxu0 0
      %1201 = vmatprep.subr.bf16.mxu0 0
      %1202 = vmatpush1.bf16.msra.mxu0 0
      %1203 = vmatprep.subr.bf16.mxu0 0
      %1204 = vmatpush1.bf16.msra.mxu0 0
      %1205 = vmatprep.subr.bf16.mxu0 0
      %1206 = vmatpush1.bf16.msra.mxu0 0
      %1207 = vmatprep.subr.bf16.mxu0 0
      %1208 = vmatpush1.bf16.msra.mxu0 0
      %1209 = vmatprep.subr.bf16.mxu0 0
      %1210 = vmatpush1.bf16.msra.mxu0 0
      %1211 = vmatprep.subr.bf16.mxu0 0
      %1212 = vmatpush1.bf16.msra.mxu0 0
      %1213 = vmatprep.subr.bf16.mxu0 0
      %1214 = vmatpush1.bf16.msra.mxu0 0
      %1215 = vmatprep.subr.bf16.mxu0 0
      %1216 = vmatpush1.bf16.msra.mxu0 0
      %1217 = vmatprep.subr.bf16.mxu0 0
      %1218 = vmatpush1.bf16.msra.mxu0 0
      %1219 = vmatprep.mubr.bf16.mxu0 0
      %1220 = vmatmul.mubr.bf16.gmra.mrb[0].mxu0 %v1182
      %v1221 = vpop.f32.mrb[0].mxu0
      %v1222 = vadd.f32 0.0, %v1221
      %v1223 = vpop.f32.mrb[0].mxu0
      %v1224 = vpop.f32.mrb[0].mxu0
      %v1225 = vpop.f32.mrb[0].mxu0
      %1226 = vdwg.mxu0
      %v1227 = vpack.c.bf16 %v1222, %v1222
      %s1228 = scalar_lea.vmem %s6, 12
      %v1229 = vld [vmem:[%s1228] sm:$0xf]
      %v1231 = vsel %vm642, %v1227, 0
      %v1234 = vsel %vm706, %v1229, 0
      %1236 = vmatprep.subr.bf16.mxu0 0
      %1237 = vmatpush1.bf16.msra.mxu0 %v1234
      %1238 = vmatprep.subr.bf16.mxu0 0
      %1239 = vmatpush1.bf16.msra.mxu0 0
      %1240 = vmatprep.subr.bf16.mxu0 0
      %1241 = vmatpush1.bf16.msra.mxu0 0
      %1242 = vmatprep.subr.bf16.mxu0 0
      %1243 = vmatpush1.bf16.msra.mxu0 0
      %1244 = vmatprep.subr.bf16.mxu0 0
      %1245 = vmatpush1.bf16.msra.mxu0 0
      %1246 = vmatprep.subr.bf16.mxu0 0
      %1247 = vmatpush1.bf16.msra.mxu0 0
      %1248 = vmatprep.subr.bf16.mxu0 0
      %1249 = vmatpush1.bf16.msra.mxu0 0
      %1250 = vmatprep.subr.bf16.mxu0 0
      %1251 = vmatpush1.bf16.msra.mxu0 0
      %1252 = vmatprep.subr.bf16.mxu0 0
      %1253 = vmatpush1.bf16.msra.mxu0 0
      %1254 = vmatprep.subr.bf16.mxu0 0
      %1255 = vmatpush1.bf16.msra.mxu0 0
      %1256 = vmatprep.subr.bf16.mxu0 0
      %1257 = vmatpush1.bf16.msra.mxu0 0
      %1258 = vmatprep.subr.bf16.mxu0 0
      %1259 = vmatpush1.bf16.msra.mxu0 0
      %1260 = vmatprep.subr.bf16.mxu0 0
      %1261 = vmatpush1.bf16.msra.mxu0 0
      %1262 = vmatprep.subr.bf16.mxu0 0
      %1263 = vmatpush1.bf16.msra.mxu0 0
      %1264 = vmatprep.subr.bf16.mxu0 0
      %1265 = vmatpush1.bf16.msra.mxu0 0
      %1266 = vmatprep.subr.bf16.mxu0 0
      %1267 = vmatpush1.bf16.msra.mxu0 0
      %1268 = vmatprep.mubr.bf16.mxu0 0
      %1269 = vmatmul.mubr.bf16.gmra.mrb[0].mxu0 %v1231
      %v1270 = vpop.f32.mrb[0].mxu0
      %v1271 = vadd.f32 0.0, %v1270
      %v1272 = vpop.f32.mrb[0].mxu0
      %v1273 = vpop.f32.mrb[0].mxu0
      %v1274 = vpop.f32.mrb[0].mxu0
      %1275 = vdwg.mxu0
      %v1276 = vadd.f32 %v1116, %v1271
      %v1277 = vld [vmem:[%s7] sm:$0x1]
      %v1279 = vlaneseq
      %v1280 = vshrl.u32 %v1279, 7
      %v1281 = vsub.s32 0, %v1280
      %v1282 = vrot.slane %v1277, %v1281
      %v1284 = vadd.f32 %v1276, %v1282
      %v1285 = vadd.f32 %v1284, %v564
      %v1286 = vld [vmem:[%s8] sm:$0x1]
      %v1287 = vld [vmem:[%s9] sm:$0x1]
      %v1288 = vsel %vm536, %v1285, 0.0
      %1289 = vadd.xlane.f32.xlu0 %v1288
      %v1290 = vpop.xlane.xlu0 %1289
      %v1291 = vmul.f32 %v1290, %v540
      %v1292 = vsub.f32 %v1285, %v1291
      %v1293 = vmul.f32 %v1292, %v1292
      %v1294 = vsel %vm536, %v1293, 0.0
      %1295 = vadd.xlane.f32.xlu0 %v1294
      %v1296 = vpop.xlane.xlu0 %1295
      %v1297 = vmul.f32 %v1296, %v540
      %v1298 = vadd.f32 %v1297, 1e-12
      %v1299 = vrsqrt.pop %v1298
      %v1300 = vmul.f32 %v1292, %v1299
      %v1302 = vlaneseq
      %v1303 = vshrl.u32 %v1302, 7
      %v1304 = vsub.s32 0, %v1303
      %v1305 = vrot.slane %v1286, %v1304
      %v1307 = vmul.f32 %v1300, %v1305
      %v1309 = vlaneseq
      %v1310 = vshrl.u32 %v1309, 7
      %v1311 = vsub.s32 0, %v1310
      %v1312 = vrot.slane %v1287, %v1311
      %v1314 = vadd.f32 %v1307, %v1312
      %v1315 = vpack.c.bf16 %v1314, %v1314
      %v1316 = vld [vmem:[%s10] sm:$0xf]
      %v1317 = vld [vmem:[%s10 + $0x4] sm:$0xf]
      %v1318 = vld [vmem:[%s10 + $0x8] sm:$0xf]
      %v1319 = vld [vmem:[%s10 + $0xc] sm:$0xf]
      %v1320 = vld [vmem:[%s11] sm:$0x1]
      %v1322 = vlaneseq
      %v1323 = vshrl.u32 %v1322, 7
      %v1324 = vsub.s32 0, %v1323
      %v1325 = vrot.slane %v1320, %v1324
      %v1331 = vunpack.c.l.b16 %v1316
      %v1332 = vunpack.c.l.b16 %v1317
      %v1333 = vunpack.c.l.b16 %v1318
      %v1334 = vunpack.c.l.b16 %v1319
      %v1335 = vpack.c.b16 %v1332, %v1331
      %v1336 = vpack.c.b16 %v1334, %v1333
      %v1340 = vsel %vm536, %v1315, 0
      %1342 = vmatprep.subr.bf16.mxu0 0
      %1343 = vmatpush1.bf16.msra.mxu0 %v1335
      %1344 = vmatprep.subr.bf16.mxu0 0
      %1345 = vmatpush1.bf16.msra.mxu0 %v1336
      %1346 = vmatprep.subr.bf16.mxu0 0
      %1347 = vmatpush1.bf16.msra.mxu0 0
      %1348 = vmatprep.subr.bf16.mxu0 0
      %1349 = vmatpush1.bf16.msra.mxu0 0
      %1350 = vmatprep.subr.bf16.mxu0 0
      %1351 = vmatpush1.bf16.msra.mxu0 0
      %1352 = vmatprep.subr.bf16.mxu0 0
      %1353 = vmatpush1.bf16.msra.mxu0 0
      %1354 = vmatprep.subr.bf16.mxu0 0
      %1355 = vmatpush1.bf16.msra.mxu0 0
      %1356 = vmatprep.subr.bf16.mxu0 0
      %1357 = vmatpush1.bf16.msra.mxu0 0
      %1358 = vmatprep.subr.bf16.mxu0 0
      %1359 = vmatpush1.bf16.msra.mxu0 0
      %1360 = vmatprep.subr.bf16.mxu0 0
      %1361 = vmatpush1.bf16.msra.mxu0 0
      %1362 = vmatprep.subr.bf16.mxu0 0
      %1363 = vmatpush1.bf16.msra.mxu0 0
      %1364 = vmatprep.subr.bf16.mxu0 0
      %1365 = vmatpush1.bf16.msra.mxu0 0
      %1366 = vmatprep.subr.bf16.mxu0 0
      %1367 = vmatpush1.bf16.msra.mxu0 0
      %1368 = vmatprep.subr.bf16.mxu0 0
      %1369 = vmatpush1.bf16.msra.mxu0 0
      %1370 = vmatprep.subr.bf16.mxu0 0
      %1371 = vmatpush1.bf16.msra.mxu0 0
      %1372 = vmatprep.subr.bf16.mxu0 0
      %1373 = vmatpush1.bf16.msra.mxu0 0
      %1374 = vmatprep.mubr.bf16.mxu0 0
      %1375 = vmatmul.mubr.bf16.gmra.mrb[0].mxu0 %v1340
      %v1376 = vpop.f32.mrb[0].mxu0
      %v1377 = vadd.f32 %v1325, %v1376
      %v1378 = vpop.f32.mrb[0].mxu0
      %v1379 = vpop.f32.mrb[0].mxu0
      %v1380 = vpop.f32.mrb[0].mxu0
      %1381 = vdwg.mxu0
      %v1382 = vmul.f32 %v1377, 0.5
      %v1383 = vmul.f32 %v1377, 0.044715
      %v1384 = vmul.f32 %v1383, %v1377
      %v1385 = vmul.f32 %v1384, %v1377
      %v1386 = vadd.f32 %v1377, %v1385
      %v1387 = vmul.f32 %v1386, 0.7978846
      %v1388 = vtanh.pop %v1387
      %v1389 = vadd.f32 %v1388, 1.0
      %v1390 = vmul.f32 %v1382, %v1389
      %v1391 = vpack.c.bf16 %v1390, %v1390
      %v1392 = vld [vmem:[%s12] sm:$0xf]
      %v1393 = vld [vmem:[%s12 + $0x4] sm:$0xf]
      %v1394 = vld [vmem:[%s12 + $0x8] sm:$0xf]
      %v1395 = vld [vmem:[%s12 + $0xc] sm:$0xf]
      %v1396 = vld [vmem:[%s12 + $0x10] sm:$0xf]
      %v1397 = vld [vmem:[%s12 + $0x14] sm:$0xf]
      %v1398 = vld [vmem:[%s12 + $0x18] sm:$0xf]
      %v1399 = vld [vmem:[%s12 + $0x1c] sm:$0xf]
      %v1400 = vld [vmem:[%s13] sm:$0x1]
      %v1402 = vlaneseq
      %v1403 = vshrl.u32 %v1402, 7
      %v1404 = vsub.s32 0, %v1403
      %v1405 = vrot.slane %v1400, %v1404
      %v1415 = vunpack.c.l.b16 %v1392
      %v1416 = vunpack.c.l.b16 %v1393
      %v1417 = vunpack.c.l.b16 %v1394
      %v1418 = vunpack.c.l.b16 %v1395
      %v1419 = vunpack.c.l.b16 %v1396
      %v1420 = vunpack.c.l.b16 %v1397
      %v1421 = vunpack.c.l.b16 %v1398
      %v1422 = vunpack.c.l.b16 %v1399
      %v1423 = vpack.c.b16 %v1416, %v1415
      %v1424 = vpack.c.b16 %v1418, %v1417
      %v1425 = vpack.c.b16 %v1420, %v1419
      %v1426 = vpack.c.b16 %v1422, %v1421
      %vm1431 = vcmask 523264
      %v1433 = vsel %vm1431, %v1391, 0
      %1435 = vmatprep.subr.bf16.mxu0 0
      %1436 = vmatpush1.bf16.msra.mxu0 %v1423
      %1437 = vmatprep.subr.bf16.mxu0 0
      %1438 = vmatpush1.bf16.msra.mxu0 %v1424
      %1439 = vmatprep.subr.bf16.mxu0 0
      %1440 = vmatpush1.bf16.msra.mxu0 %v1425
      %1441 = vmatprep.subr.bf16.mxu0 0
      %1442 = vmatpush1.bf16.msra.mxu0 %v1426
      %1443 = vmatprep.subr.bf16.mxu0 0
      %1444 = vmatpush1.bf16.msra.mxu0 0
      %1445 = vmatprep.subr.bf16.mxu0 0
      %1446 = vmatpush1.bf16.msra.mxu0 0
      %1447 = vmatprep.subr.bf16.mxu0 0
      %1448 = vmatpush1.bf16.msra.mxu0 0
      %1449 = vmatprep.subr.bf16.mxu0 0
      %1450 = vmatpush1.bf16.msra.mxu0 0
      %1451 = vmatprep.subr.bf16.mxu0 0
      %1452 = vmatpush1.bf16.msra.mxu0 0
      %1453 = vmatprep.subr.bf16.mxu0 0
      %1454 = vmatpush1.bf16.msra.mxu0 0
      %1455 = vmatprep.subr.bf16.mxu0 0
      %1456 = vmatpush1.bf16.msra.mxu0 0
      %1457 = vmatprep.subr.bf16.mxu0 0
      %1458 = vmatpush1.bf16.msra.mxu0 0
      %1459 = vmatprep.subr.bf16.mxu0 0
      %1460 = vmatpush1.bf16.msra.mxu0 0
      %1461 = vmatprep.subr.bf16.mxu0 0
      %1462 = vmatpush1.bf16.msra.mxu0 0
      %1463 = vmatprep.subr.bf16.mxu0 0
      %1464 = vmatpush1.bf16.msra.mxu0 0
      %1465 = vmatprep.subr.bf16.mxu0 0
      %1466 = vmatpush1.bf16.msra.mxu0 0
      %1467 = vmatprep.mubr.bf16.mxu0 0
      %1468 = vmatmul.mubr.bf16.gmra.mrb[0].mxu0 %v1433
      %v1469 = vpop.f32.mrb[0].mxu0
      %v1470 = vadd.f32 %v1405, %v1469
      %v1471 = vpop.f32.mrb[0].mxu0
      %v1472 = vpop.f32.mrb[0].mxu0
      %v1473 = vpop.f32.mrb[0].mxu0
      %1474 = vdwg.mxu0
      %v1475 = vadd.f32 %v1470, %v1314
      %v1476 = vld [vmem:[%s14] sm:$0x1]
      %v1477 = vld [vmem:[%s15] sm:$0x1]
      %v1478 = vsel %vm536, %v1475, 0.0
      %1479 = vadd.xlane.f32.xlu0 %v1478
      %v1480 = vpop.xlane.xlu0 %1479
      %v1481 = vmul.f32 %v1480, %v540
      %v1482 = vsub.f32 %v1475, %v1481
      %v1483 = vmul.f32 %v1482, %v1482
      %v1484 = vsel %vm536, %v1483, 0.0
      %1485 = vadd.xlane.f32.xlu0 %v1484
      %v1486 = vpop.xlane.xlu0 %1485
      %v1487 = vmul.f32 %v1486, %v540
      %v1488 = vadd.f32 %v1487, 1e-12
      %v1489 = vrsqrt.pop %v1488
      %v1490 = vmul.f32 %v1482, %v1489
      %v1492 = vlaneseq
      %v1493 = vshrl.u32 %v1492, 7
      %v1494 = vsub.s32 0, %v1493
      %v1495 = vrot.slane %v1476, %v1494
      %v1497 = vmul.f32 %v1490, %v1495
      %v1499 = vlaneseq
      %v1500 = vshrl.u32 %v1499, 7
      %v1501 = vsub.s32 0, %v1500
      %v1502 = vrot.slane %v1477, %v1501
      %v1504 = vadd.f32 %v1497, %v1502
      %v1505 = vpack.c.bf16 %v1504, %v1504
      %s1506 = scalar_lea.vmem %s4, 16
      %v1507 = vld [vmem:[%s1506] sm:$0xf]
      %v1508 = vld [vmem:[%s1506 + $0x4] sm:$0xf]
      %v1509 = vld [vmem:[%s1506 + $0x8] sm:$0xf]
      %v1510 = vld [vmem:[%s1506 + $0xc] sm:$0xf]
      %s1511 = scalar_lea.vmem %s5, 1
      %v1512 = vld [vmem:[%s1511] sm:$0x1]
      %v1514 = vlaneseq
      %v1515 = vshrl.u32 %v1514, 7
      %v1516 = vsub.s32 0, %v1515
      %v1517 = vrot.slane %v1512, %v1516
      %v1523 = vunpack.c.l.b16 %v1507
      %v1524 = vunpack.c.l.b16 %v1508
      %v1525 = vunpack.c.l.b16 %v1509
      %v1526 = vunpack.c.l.b16 %v1510
      %v1527 = vpack.c.b16 %v1524, %v1523
      %v1528 = vpack.c.b16 %v1526, %v1525
      %v1532 = vsel %vm536, %v1505, 0
      %1534 = vmatprep.subr.bf16.mxu0 0
      %1535 = vmatpush1.bf16.msra.mxu0 %v1527
      %1536 = vmatprep.subr.bf16.mxu0 0
      %1537 = vmatpush1.bf16.msra.mxu0 %v1528
      %1538 = vmatprep.subr.bf16.mxu0 0
      %1539 = vmatpush1.bf16.msra.mxu0 0
      %1540 = vmatprep.subr.bf16.mxu0 0
      %1541 = vmatpush1.bf16.msra.mxu0 0
      %1542 = vmatprep.subr.bf16.mxu0 0
      %1543 = vmatpush1.bf16.msra.mxu0 0
      %1544 = vmatprep.subr.bf16.mxu0 0
      %1545 = vmatpush1.bf16.msra.mxu0 0
      %1546 = vmatprep.subr.bf16.mxu0 0
      %1547 = vmatpush1.bf16.msra.mxu0 0
      %1548 = vmatprep.subr.bf16.mxu0 0
      %1549 = vmatpush1.bf16.msra.mxu0 0
      %1550 = vmatprep.subr.bf16.mxu0 0
      %1551 = vmatpush1.bf16.msra.mxu0 0
      %1552 = vmatprep.subr.bf16.mxu0 0
      %1553 = vmatpush1.bf16.msra.mxu0 0
      %1554 = vmatprep.subr.bf16.mxu0 0
      %1555 = vmatpush1.bf16.msra.mxu0 0
      %1556 = vmatprep.subr.bf16.mxu0 0
      %1557 = vmatpush1.bf16.msra.mxu0 0
      %1558 = vmatprep.subr.bf16.mxu0 0
      %1559 = vmatpush1.bf16.msra.mxu0 0
      %1560 = vmatprep.subr.bf16.mxu0 0
      %1561 = vmatpush1.bf16.msra.mxu0 0
      %1562 = vmatprep.subr.bf16.mxu0 0
      %1563 = vmatpush1.bf16.msra.mxu0 0
      %1564 = vmatprep.subr.bf16.mxu0 0
      %1565 = vmatpush1.bf16.msra.mxu0 0
      %1566 = vmatprep.mubr.bf16.mxu0 0
      %1567 = vmatmul.mubr.bf16.gmra.mrb[0].mxu0 %v1532
      %v1568 = vpop.f32.mrb[0].mxu0
      %v1569 = vadd.f32 %v1517, %v1568
      %v1570 = vpop.f32.mrb[0].mxu0
      %v1571 = vpop.f32.mrb[0].mxu0
      %v1572 = vpop.f32.mrb[0].mxu0
      %1573 = vdwg.mxu0
      %v1574 = vpack.c.bf16 %v1569, %v1569
      %1576 = vrot.lane.b32.xlu0 %v1574, 96
      %v1577 = vpop.permute.xlu0 %1576
      %v1579 = vsel %vm642, %v1574, 0
      %v1582 = vsel %vm642, %v1577, 0
      %1584 = vmatprep.subr.bf16.mxu0 0
      %1585 = vmatpush1.bf16.xpose.msra.mxu0 %v1582
      %1586 = vmatprep.subr.bf16.mxu0 0
      %1587 = vmatpush1.bf16.xpose.msra.mxu0 0
      %1588 = vmatprep.subr.bf16.mxu0 0
      %1589 = vmatpush1.bf16.xpose.msra.mxu0 0
      %1590 = vmatprep.subr.bf16.mxu0 0
      %1591 = vmatpush1.bf16.xpose.msra.mxu0 0
      %1592 = vmatprep.subr.bf16.mxu0 0
      %1593 = vmatpush1.bf16.xpose.msra.mxu0 0
      %1594 = vmatprep.subr.bf16.mxu0 0
      %1595 = vmatpush1.bf16.xpose.msra.mxu0 0
      %1596 = vmatprep.subr.bf16.mxu0 0
      %1597 = vmatpush1.bf16.xpose.msra.mxu0 0
      %1598 = vmatprep.subr.bf16.mxu0 0
      %1599 = vmatpush1.bf16.xpose.msra.mxu0 0
      %1600 = vmatprep.subr.bf16.mxu0 0
      %1601 = vmatpush1.bf16.xpose.msra.mxu0 0
      %1602 = vmatprep.subr.bf16.mxu0 0
      %1603 = vmatpush1.bf16.xpose.msra.mxu0 0
      %1604 = vmatprep.subr.bf16.mxu0 0
      %1605 = vmatpush1.bf16.xpose.msra.mxu0 0
      %1606 = vmatprep.subr.bf16.mxu0 0
      %1607 = vmatpush1.bf16.xpose.msra.mxu0 0
      %1608 = vmatprep.subr.bf16.mxu0 0
      %1609 = vmatpush1.bf16.xpose.msra.mxu0 0
      %1610 = vmatprep.subr.bf16.mxu0 0
      %1611 = vmatpush1.bf16.xpose.msra.mxu0 0
      %1612 = vmatprep.subr.bf16.mxu0 0
      %1613 = vmatpush1.bf16.xpose.msra.mxu0 0
      %1614 = vmatprep.subr.bf16.mxu0 0
      %1615 = vmatpush1.bf16.xpose.msra.mxu0 0
      %1616 = vmatprep.mubr.bf16.mxu0 0
      %1617 = vmatmul.mubr.bf16.gmra.mrb[0].mxu0 %v1579
      %v1618 = vpop.f32.mrb[0].mxu0
      %v1619 = vadd.f32 %v637, %v1618
      %v1620 = vpop.f32.mrb[0].mxu0
      %v1621 = vpop.f32.mrb[0].mxu0
      %v1622 = vpop.f32.mrb[0].mxu0
      %1623 = vdwg.mxu0
      %v1624 = vsel %vm642, %v1619, -inf
      %1625 = vmax.xlane.f32.xlu0 %v1624
      %v1626 = vpop.xlane.xlu0 %1625
      %v1627 = vsub.f32 %v1619, %v1626
      %v1628 = vmul.f32 %v1627, 1.442695
      %v1629 = vpow.pop %v1628
      %v1630 = vsel %vm642, %v1629, 0.0
      %1631 = vadd.xlane.f32.xlu0 %v1630
      %v1632 = vpop.xlane.xlu0 %1631
      %v1633 = vrcp.pop %v1632
      %v1634 = vmul.f32 %v1629, %v1633
      %v1635 = vpack.c.bf16 %v1634, %v1634
      %1636 = vrot.lane.b32.xlu0 %v1574, 64
      %v1637 = vpop.permute.xlu0 %1636
      %v1639 = vsel %vm642, %v1635, 0
      %v1642 = vsel %vm706, %v1637, 0
      %1644 = vmatprep.subr.bf16.mxu0 0
      %1645 = vmatpush1.bf16.msra.mxu0 %v1642
      %1646 = vmatprep.subr.bf16.mxu0 0
      %1647 = vmatpush1.bf16.msra.mxu0 0
      %1648 = vmatprep.subr.bf16.mxu0 0
      %1649 = vmatpush1.bf16.msra.mxu0 0
      %1650 = vmatprep.subr.bf16.mxu0 0
      %1651 = vmatpush1.bf16.msra.mxu0 0
      %1652 = vmatprep.subr.bf16.mxu0 0
      %1653 = vmatpush1.bf16.msra.mxu0 0
      %1654 = vmatprep.subr.bf16.mxu0 0
      %1655 = vmatpush1.bf16.msra.mxu0 0
      %1656 = vmatprep.subr.bf16.mxu0 0
      %1657 = vmatpush1.bf16.msra.mxu0 0
      %1658 = vmatprep.subr.bf16.mxu0 0
      %1659 = vmatpush1.bf16.msra.mxu0 0
      %1660 = vmatprep.subr.bf16.mxu0 0
      %1661 = vmatpush1.bf16.msra.mxu0 0
      %1662 = vmatprep.subr.bf16.mxu0 0
      %1663 = vmatpush1.bf16.msra.mxu0 0
      %1664 = vmatprep.subr.bf16.mxu0 0
      %1665 = vmatpush1.bf16.msra.mxu0 0
      %1666 = vmatprep.subr.bf16.mxu0 0
      %1667 = vmatpush1.bf16.msra.mxu0 0
      %1668 = vmatprep.subr.bf16.mxu0 0
      %1669 = vmatpush1.bf16.msra.mxu0 0
      %1670 = vmatprep.subr.bf16.mxu0 0
      %1671 = vmatpush1.bf16.msra.mxu0 0
      %1672 = vmatprep.subr.bf16.mxu0 0
      %1673 = vmatpush1.bf16.msra.mxu0 0
      %1674 = vmatprep.subr.bf16.mxu0 0
      %1675 = vmatpush1.bf16.msra.mxu0 0
      %1676 = vmatprep.mubr.bf16.mxu0 0
      %1677 = vmatmul.mubr.bf16.gmra.mrb[0].mxu0 %v1639
      %v1678 = vpop.f32.mrb[0].mxu0
      %v1679 = vadd.f32 0.0, %v1678
      %v1680 = vpop.f32.mrb[0].mxu0
      %v1681 = vpop.f32.mrb[0].mxu0
      %v1682 = vpop.f32.mrb[0].mxu0
      %1683 = vdwg.mxu0
      %v1684 = vpack.c.bf16 %v1679, %v1679
      %s1685 = scalar_lea.vmem %s6, 16
      %v1686 = vld [vmem:[%s1685] sm:$0xf]
      %1687 = vrot.lane.b32.xlu0 %v1574, 120
      %v1688 = vpop.permute.xlu0 %1687
      %1689 = vrot.lane.b32.xlu0 %v1574, 88
      %v1690 = vpop.permute.xlu0 %1689
      %v1692 = vsel %vm642, %v1688, 0
      %v1695 = vsel %vm642, %v1690, 0
      %1697 = vmatprep.subr.bf16.mxu0 0
      %1698 = vmatpush1.bf16.xpose.msra.mxu0 %v1695
      %1699 = vmatprep.subr.bf16.mxu0 0
      %1700 = vmatpush1.bf16.xpose.msra.mxu0 0
      %1701 = vmatprep.subr.bf16.mxu0 0
      %1702 = vmatpush1.bf16.xpose.msra.mxu0 0
      %1703 = vmatprep.subr.bf16.mxu0 0
      %1704 = vmatpush1.bf16.xpose.msra.mxu0 0
      %1705 = vmatprep.subr.bf16.mxu0 0
      %1706 = vmatpush1.bf16.xpose.msra.mxu0 0
      %1707 = vmatprep.subr.bf16.mxu0 0
      %1708 = vmatpush1.bf16.xpose.msra.mxu0 0
      %1709 = vmatprep.subr.bf16.mxu0 0
      %1710 = vmatpush1.bf16.xpose.msra.mxu0 0
      %1711 = vmatprep.subr.bf16.mxu0 0
      %1712 = vmatpush1.bf16.xpose.msra.mxu0 0
      %1713 = vmatprep.subr.bf16.mxu0 0
      %1714 = vmatpush1.bf16.xpose.msra.mxu0 0
      %1715 = vmatprep.subr.bf16.mxu0 0
      %1716 = vmatpush1.bf16.xpose.msra.mxu0 0
      %1717 = vmatprep.subr.bf16.mxu0 0
      %1718 = vmatpush1.bf16.xpose.msra.mxu0 0
      %1719 = vmatprep.subr.bf16.mxu0 0
      %1720 = vmatpush1.bf16.xpose.msra.mxu0 0
      %1721 = vmatprep.subr.bf16.mxu0 0
      %1722 = vmatpush1.bf16.xpose.msra.mxu0 0
      %1723 = vmatprep.subr.bf16.mxu0 0
      %1724 = vmatpush1.bf16.xpose.msra.mxu0 0
      %1725 = vmatprep.subr.bf16.mxu0 0
      %1726 = vmatpush1.bf16.xpose.msra.mxu0 0
      %1727 = vmatprep.subr.bf16.mxu0 0
      %1728 = vmatpush1.bf16.xpose.msra.mxu0 0
      %1729 = vmatprep.mubr.bf16.mxu0 0
      %1730 = vmatmul.mubr.bf16.gmra.mrb[0].mxu0 %v1692
      %v1731 = vpop.f32.mrb[0].mxu0
      %v1732 = vadd.f32 %v637, %v1731
      %v1733 = vpop.f32.mrb[0].mxu0
      %v1734 = vpop.f32.mrb[0].mxu0
      %v1735 = vpop.f32.mrb[0].mxu0
      %1736 = vdwg.mxu0
      %v1737 = vsel %vm642, %v1732, -inf
      %1738 = vmax.xlane.f32.xlu0 %v1737
      %v1739 = vpop.xlane.xlu0 %1738
      %v1740 = vsub.f32 %v1732, %v1739
      %v1741 = vmul.f32 %v1740, 1.442695
      %v1742 = vpow.pop %v1741
      %v1743 = vsel %vm642, %v1742, 0.0
      %1744 = vadd.xlane.f32.xlu0 %v1743
      %v1745 = vpop.xlane.xlu0 %1744
      %v1746 = vrcp.pop %v1745
      %v1747 = vmul.f32 %v1742, %v1746
      %v1748 = vpack.c.bf16 %v1747, %v1747
      %1749 = vrot.lane.b32.xlu0 %v1574, 56
      %v1750 = vpop.permute.xlu0 %1749
      %v1752 = vsel %vm642, %v1748, 0
      %v1755 = vsel %vm706, %v1750, 0
      %1757 = vmatprep.subr.bf16.mxu0 0
      %1758 = vmatpush1.bf16.msra.mxu0 %v1755
      %1759 = vmatprep.subr.bf16.mxu0 0
      %1760 = vmatpush1.bf16.msra.mxu0 0
      %1761 = vmatprep.subr.bf16.mxu0 0
      %1762 = vmatpush1.bf16.msra.mxu0 0
      %1763 = vmatprep.subr.bf16.mxu0 0
      %1764 = vmatpush1.bf16.msra.mxu0 0
      %1765 = vmatprep.subr.bf16.mxu0 0
      %1766 = vmatpush1.bf16.msra.mxu0 0
      %1767 = vmatprep.subr.bf16.mxu0 0
      %1768 = vmatpush1.bf16.msra.mxu0 0
      %1769 = vmatprep.subr.bf16.mxu0 0
      %1770 = vmatpush1.bf16.msra.mxu0 0
      %1771 = vmatprep.subr.bf16.mxu0 0
      %1772 = vmatpush1.bf16.msra.mxu0 0
      %1773 = vmatprep.subr.bf16.mxu0 0
      %1774 = vmatpush1.bf16.msra.mxu0 0
      %1775 = vmatprep.subr.bf16.mxu0 0
      %1776 = vmatpush1.bf16.msra.mxu0 0
      %1777 = vmatprep.subr.bf16.mxu0 0
      %1778 = vmatpush1.bf16.msra.mxu0 0
      %1779 = vmatprep.subr.bf16.mxu0 0
      %1780 = vmatpush1.bf16.msra.mxu0 0
      %1781 = vmatprep.subr.bf16.mxu0 0
      %1782 = vmatpush1.bf16.msra.mxu0 0
      %1783 = vmatprep.subr.bf16.mxu0 0
      %1784 = vmatpush1.bf16.msra.mxu0 0
      %1785 = vmatprep.subr.bf16.mxu0 0
      %1786 = vmatpush1.bf16.msra.mxu0 0
      %1787 = vmatprep.subr.bf16.mxu0 0
      %1788 = vmatpush1.bf16.msra.mxu0 0
      %1789 = vmatprep.mubr.bf16.mxu0 0
      %1790 = vmatmul.mubr.bf16.gmra.mrb[0].mxu0 %v1752
      %v1791 = vpop.f32.mrb[0].mxu0
      %v1792 = vadd.f32 0.0, %v1791
      %v1793 = vpop.f32.mrb[0].mxu0
      %v1794 = vpop.f32.mrb[0].mxu0
      %v1795 = vpop.f32.mrb[0].mxu0
      %1796 = vdwg.mxu0
      %v1797 = vpack.c.bf16 %v1792, %v1792
      %s1798 = scalar_lea.vmem %s6, 20
      %v1799 = vld [vmem:[%s1798] sm:$0xf]
      %v1801 = vsel %vm642, %v1797, 0
      %v1804 = vsel %vm706, %v1799, 0
      %1806 = vmatprep.subr.bf16.mxu0 0
      %1807 = vmatpush1.bf16.msra.mxu0 %v1804
      %1808 = vmatprep.subr.bf16.mxu0 0
      %1809 = vmatpush1.bf16.msra.mxu0 0
      %1810 = vmatprep.subr.bf16.mxu0 0
      %1811 = vmatpush1.bf16.msra.mxu0 0
      %1812 = vmatprep.subr.bf16.mxu0 0
      %1813 = vmatpush1.bf16.msra.mxu0 0
      %1814 = vmatprep.subr.bf16.mxu0 0
      %1815 = vmatpush1.bf16.msra.mxu0 0
      %1816 = vmatprep.subr.bf16.mxu0 0
      %1817 = vmatpush1.bf16.msra.mxu0 0
      %1818 = vmatprep.subr.bf16.mxu0 0
      %1819 = vmatpush1.bf16.msra.mxu0 0
      %1820 = vmatprep.subr.bf16.mxu0 0
      %1821 = vmatpush1.bf16.msra.mxu0 0
      %1822 = vmatprep.subr.bf16.mxu0 0
      %1823 = vmatpush1.bf16.msra.mxu0 0
      %1824 = vmatprep.subr.bf16.mxu0 0
      %1825 = vmatpush1.bf16.msra.mxu0 0
      %1826 = vmatprep.subr.bf16.mxu0 0
      %1827 = vmatpush1.bf16.msra.mxu0 0
      %1828 = vmatprep.subr.bf16.mxu0 0
      %1829 = vmatpush1.bf16.msra.mxu0 0
      %1830 = vmatprep.subr.bf16.mxu0 0
      %1831 = vmatpush1.bf16.msra.mxu0 0
      %1832 = vmatprep.subr.bf16.mxu0 0
      %1833 = vmatpush1.bf16.msra.mxu0 0
      %1834 = vmatprep.subr.bf16.mxu0 0
      %1835 = vmatpush1.bf16.msra.mxu0 0
      %1836 = vmatprep.subr.bf16.mxu0 0
      %1837 = vmatpush1.bf16.msra.mxu0 0
      %1838 = vmatprep.mubr.bf16.mxu0 0
      %1839 = vmatmul.mubr.bf16.gmra.mrb[0].mxu0 %v1801
      %v1840 = vpop.f32.mrb[0].mxu0
      %v1841 = vadd.f32 0.0, %v1840
      %v1842 = vpop.f32.mrb[0].mxu0
      %v1843 = vpop.f32.mrb[0].mxu0
      %v1844 = vpop.f32.mrb[0].mxu0
      %1845 = vdwg.mxu0
      %v1847 = vsel %vm642, %v1684, 0
      %v1850 = vsel %vm706, %v1686, 0
      %1852 = vmatprep.subr.bf16.mxu0 0
      %1853 = vmatpush1.bf16.msra.mxu0 %v1850
      %1854 = vmatprep.subr.bf16.mxu0 0
      %1855 = vmatpush1.bf16.msra.mxu0 0
      %1856 = vmatprep.subr.bf16.mxu0 0
      %1857 = vmatpush1.bf16.msra.mxu0 0
      %1858 = vmatprep.subr.bf16.mxu0 0
      %1859 = vmatpush1.bf16.msra.mxu0 0
      %1860 = vmatprep.subr.bf16.mxu0 0
      %1861 = vmatpush1.bf16.msra.mxu0 0
      %1862 = vmatprep.subr.bf16.mxu0 0
      %1863 = vmatpush1.bf16.msra.mxu0 0
      %1864 = vmatprep.subr.bf16.mxu0 0
      %1865 = vmatpush1.bf16.msra.mxu0 0
      %1866 = vmatprep.subr.bf16.mxu0 0
      %1867 = vmatpush1.bf16.msra.mxu0 0
      %1868 = vmatprep.subr.bf16.mxu0 0
      %1869 = vmatpush1.bf16.msra.mxu0 0
      %1870 = vmatprep.subr.bf16.mxu0 0
      %1871 = vmatpush1.bf16.msra.mxu0 0
      %1872 = vmatprep.subr.bf16.mxu0 0
      %1873 = vmatpush1.bf16.msra.mxu0 0
      %1874 = vmatprep.subr.bf16.mxu0 0
      %1875 = vmatpush1.bf16.msra.mxu0 0
      %1876 = vmatprep.subr.bf16.mxu0 0
      %1877 = vmatpush1.bf16.msra.mxu0 0
      %1878 = vmatprep.subr.bf16.mxu0 0
      %1879 = vmatpush1.bf16.msra.mxu0 0
      %1880 = vmatprep.subr.bf16.mxu0 0
      %1881 = vmatpush1.bf16.msra.mxu0 0
      %1882 = vmatprep.subr.bf16.mxu0 0
      %1883 = vmatpush1.bf16.msra.mxu0 0
      %1884 = vmatprep.mubr.bf16.mxu0 0
      %1885 = vmatmul.mubr.bf16.gmra.mrb[0].mxu0 %v1847
      %v1886 = vpop.f32.mrb[0].mxu0
      %v1887 = vadd.f32 %v1841, %v1886
      %v1888 = vpop.f32.mrb[0].mxu0
      %v1889 = vpop.f32.mrb[0].mxu0
      %v1890 = vpop.f32.mrb[0].mxu0
      %1891 = vdwg.mxu0
      %1892 = vrot.lane.b32.xlu0 %v1574, 112
      %v1893 = vpop.permute.xlu0 %1892
      %1894 = vrot.lane.b32.xlu0 %v1574, 80
      %v1895 = vpop.permute.xlu0 %1894
      %v1897 = vsel %vm642, %v1893, 0
      %v1900 = vsel %vm642, %v1895, 0
      %1902 = vmatprep.subr.bf16.mxu0 0
      %1903 = vmatpush1.bf16.xpose.msra.mxu0 %v1900
      %1904 = vmatprep.subr.bf16.mxu0 0
      %1905 = vmatpush1.bf16.xpose.msra.mxu0 0
      %1906 = vmatprep.subr.bf16.mxu0 0
      %1907 = vmatpush1.bf16.xpose.msra.mxu0 0
      %1908 = vmatprep.subr.bf16.mxu0 0
      %1909 = vmatpush1.bf16.xpose.msra.mxu0 0
      %1910 = vmatprep.subr.bf16.mxu0 0
      %1911 = vmatpush1.bf16.xpose.msra.mxu0 0
      %1912 = vmatprep.subr.bf16.mxu0 0
      %1913 = vmatpush1.bf16.xpose.msra.mxu0 0
      %1914 = vmatprep.subr.bf16.mxu0 0
      %1915 = vmatpush1.bf16.xpose.msra.mxu0 0
      %1916 = vmatprep.subr.bf16.mxu0 0
      %1917 = vmatpush1.bf16.xpose.msra.mxu0 0
      %1918 = vmatprep.subr.bf16.mxu0 0
      %1919 = vmatpush1.bf16.xpose.msra.mxu0 0
      %1920 = vmatprep.subr.bf16.mxu0 0
      %1921 = vmatpush1.bf16.xpose.msra.mxu0 0
      %1922 = vmatprep.subr.bf16.mxu0 0
      %1923 = vmatpush1.bf16.xpose.msra.mxu0 0
      %1924 = vmatprep.subr.bf16.mxu0 0
      %1925 = vmatpush1.bf16.xpose.msra.mxu0 0
      %1926 = vmatprep.subr.bf16.mxu0 0
      %1927 = vmatpush1.bf16.xpose.msra.mxu0 0
      %1928 = vmatprep.subr.bf16.mxu0 0
      %1929 = vmatpush1.bf16.xpose.msra.mxu0 0
      %1930 = vmatprep.subr.bf16.mxu0 0
      %1931 = vmatpush1.bf16.xpose.msra.mxu0 0
      %1932 = vmatprep.subr.bf16.mxu0 0
      %1933 = vmatpush1.bf16.xpose.msra.mxu0 0
      %1934 = vmatprep.mubr.bf16.mxu0 0
      %1935 = vmatmul.mubr.bf16.gmra.mrb[0].mxu0 %v1897
      %v1936 = vpop.f32.mrb[0].mxu0
      %v1937 = vadd.f32 %v637, %v1936
      %v1938 = vpop.f32.mrb[0].mxu0
      %v1939 = vpop.f32.mrb[0].mxu0
      %v1940 = vpop.f32.mrb[0].mxu0
      %1941 = vdwg.mxu0
      %v1942 = vsel %vm642, %v1937, -inf
      %1943 = vmax.xlane.f32.xlu0 %v1942
      %v1944 = vpop.xlane.xlu0 %1943
      %v1945 = vsub.f32 %v1937, %v1944
      %v1946 = vmul.f32 %v1945, 1.442695
      %v1947 = vpow.pop %v1946
      %v1948 = vsel %vm642, %v1947, 0.0
      %1949 = vadd.xlane.f32.xlu0 %v1948
      %v1950 = vpop.xlane.xlu0 %1949
      %v1951 = vrcp.pop %v1950
      %v1952 = vmul.f32 %v1947, %v1951
      %v1953 = vpack.c.bf16 %v1952, %v1952
      %1954 = vrot.lane.b32.xlu0 %v1574, 48
      %v1955 = vpop.permute.xlu0 %1954
      %v1957 = vsel %vm642, %v1953, 0
      %v1960 = vsel %vm706, %v1955, 0
      %1962 = vmatprep.subr.bf16.mxu0 0
      %1963 = vmatpush1.bf16.msra.mxu0 %v1960
      %1964 = vmatprep.subr.bf16.mxu0 0
      %1965 = vmatpush1.bf16.msra.mxu0 0
      %1966 = vmatprep.subr.bf16.mxu0 0
      %1967 = vmatpush1.bf16.msra.mxu0 0
      %1968 = vmatprep.subr.bf16.mxu0 0
      %1969 = vmatpush1.bf16.msra.mxu0 0
      %1970 = vmatprep.subr.bf16.mxu0 0
      %1971 = vmatpush1.bf16.msra.mxu0 0
      %1972 = vmatprep.subr.bf16.mxu0 0
      %1973 = vmatpush1.bf16.msra.mxu0 0
      %1974 = vmatprep.subr.bf16.mxu0 0
      %1975 = vmatpush1.bf16.msra.mxu0 0
      %1976 = vmatprep.subr.bf16.mxu0 0
      %1977 = vmatpush1.bf16.msra.mxu0 0
      %1978 = vmatprep.subr.bf16.mxu0 0
      %1979 = vmatpush1.bf16.msra.mxu0 0
      %1980 = vmatprep.subr.bf16.mxu0 0
      %1981 = vmatpush1.bf16.msra.mxu0 0
      %1982 = vmatprep.subr.bf16.mxu0 0
      %1983 = vmatpush1.bf16.msra.mxu0 0
      %1984 = vmatprep.subr.bf16.mxu0 0
      %1985 = vmatpush1.bf16.msra.mxu0 0
      %1986 = vmatprep.subr.bf16.mxu0 0
      %1987 = vmatpush1.bf16.msra.mxu0 0
      %1988 = vmatprep.subr.bf16.mxu0 0
      %1989 = vmatpush1.bf16.msra.mxu0 0
      %1990 = vmatprep.subr.bf16.mxu0 0
      %1991 = vmatpush1.bf16.msra.mxu0 0
      %1992 = vmatprep.subr.bf16.mxu0 0
      %1993 = vmatpush1.bf16.msra.mxu0 0
      %1994 = vmatprep.mubr.bf16.mxu0 0
      %1995 = vmatmul.mubr.bf16.gmra.mrb[0].mxu0 %v1957
      %v1996 = vpop.f32.mrb[0].mxu0
      %v1997 = vadd.f32 0.0, %v1996
      %v1998 = vpop.f32.mrb[0].mxu0
      %v1999 = vpop.f32.mrb[0].mxu0
      %v2000 = vpop.f32.mrb[0].mxu0
      %2001 = vdwg.mxu0
      %v2002 = vpack.c.bf16 %v1997, %v1997
      %s2003 = scalar_lea.vmem %s6, 24
      %v2004 = vld [vmem:[%s2003] sm:$0xf]
      %v2006 = vsel %vm642, %v2002, 0
      %v2009 = vsel %vm706, %v2004, 0
      %2011 = vmatprep.subr.bf16.mxu0 0
      %2012 = vmatpush1.bf16.msra.mxu0 %v2009
      %2013 = vmatprep.subr.bf16.mxu0 0
      %2014 = vmatpush1.bf16.msra.mxu0 0
      %2015 = vmatprep.subr.bf16.mxu0 0
      %2016 = vmatpush1.bf16.msra.mxu0 0
      %2017 = vmatprep.subr.bf16.mxu0 0
      %2018 = vmatpush1.bf16.msra.mxu0 0
      %2019 = vmatprep.subr.bf16.mxu0 0
      %2020 = vmatpush1.bf16.msra.mxu0 0
      %2021 = vmatprep.subr.bf16.mxu0 0
      %2022 = vmatpush1.bf16.msra.mxu0 0
      %2023 = vmatprep.subr.bf16.mxu0 0
      %2024 = vmatpush1.bf16.msra.mxu0 0
      %2025 = vmatprep.subr.bf16.mxu0 0
      %2026 = vmatpush1.bf16.msra.mxu0 0
      %2027 = vmatprep.subr.bf16.mxu0 0
      %2028 = vmatpush1.bf16.msra.mxu0 0
      %2029 = vmatprep.subr.bf16.mxu0 0
      %2030 = vmatpush1.bf16.msra.mxu0 0
      %2031 = vmatprep.subr.bf16.mxu0 0
      %2032 = vmatpush1.bf16.msra.mxu0 0
      %2033 = vmatprep.subr.bf16.mxu0 0
      %2034 = vmatpush1.bf16.msra.mxu0 0
      %2035 = vmatprep.subr.bf16.mxu0 0
      %2036 = vmatpush1.bf16.msra.mxu0 0
      %2037 = vmatprep.subr.bf16.mxu0 0
      %2038 = vmatpush1.bf16.msra.mxu0 0
      %2039 = vmatprep.subr.bf16.mxu0 0
      %2040 = vmatpush1.bf16.msra.mxu0 0
      %2041 = vmatprep.subr.bf16.mxu0 0
      %2042 = vmatpush1.bf16.msra.mxu0 0
      %2043 = vmatprep.mubr.bf16.mxu0 0
      %2044 = vmatmul.mubr.bf16.gmra.mrb[0].mxu0 %v2006
      %v2045 = vpop.f32.mrb[0].mxu0
      %v2046 = vadd.f32 0.0, %v2045
      %v2047 = vpop.f32.mrb[0].mxu0
      %v2048 = vpop.f32.mrb[0].mxu0
      %v2049 = vpop.f32.mrb[0].mxu0
      %2050 = vdwg.mxu0
      %v2051 = vadd.f32 %v1887, %v2046
      %2052 = vrot.lane.b32.xlu0 %v1574, 104
      %v2053 = vpop.permute.xlu0 %2052
      %2054 = vrot.lane.b32.xlu0 %v1574, 72
      %v2055 = vpop.permute.xlu0 %2054
      %v2057 = vsel %vm642, %v2053, 0
      %v2060 = vsel %vm642, %v2055, 0
      %2062 = vmatprep.subr.bf16.mxu0 0
      %2063 = vmatpush1.bf16.xpose.msra.mxu0 %v2060
      %2064 = vmatprep.subr.bf16.mxu0 0
      %2065 = vmatpush1.bf16.xpose.msra.mxu0 0
      %2066 = vmatprep.subr.bf16.mxu0 0
      %2067 = vmatpush1.bf16.xpose.msra.mxu0 0
      %2068 = vmatprep.subr.bf16.mxu0 0
      %2069 = vmatpush1.bf16.xpose.msra.mxu0 0
      %2070 = vmatprep.subr.bf16.mxu0 0
      %2071 = vmatpush1.bf16.xpose.msra.mxu0 0
      %2072 = vmatprep.subr.bf16.mxu0 0
      %2073 = vmatpush1.bf16.xpose.msra.mxu0 0
      %2074 = vmatprep.subr.bf16.mxu0 0
      %2075 = vmatpush1.bf16.xpose.msra.mxu0 0
      %2076 = vmatprep.subr.bf16.mxu0 0
      %2077 = vmatpush1.bf16.xpose.msra.mxu0 0
      %2078 = vmatprep.subr.bf16.mxu0 0
      %2079 = vmatpush1.bf16.xpose.msra.mxu0 0
      %2080 = vmatprep.subr.bf16.mxu0 0
      %2081 = vmatpush1.bf16.xpose.msra.mxu0 0
      %2082 = vmatprep.subr.bf16.mxu0 0
      %2083 = vmatpush1.bf16.xpose.msra.mxu0 0
      %2084 = vmatprep.subr.bf16.mxu0 0
      %2085 = vmatpush1.bf16.xpose.msra.mxu0 0
      %2086 = vmatprep.subr.bf16.mxu0 0
      %2087 = vmatpush1.bf16.xpose.msra.mxu0 0
      %2088 = vmatprep.subr.bf16.mxu0 0
      %2089 = vmatpush1.bf16.xpose.msra.mxu0 0
      %2090 = vmatprep.subr.bf16.mxu0 0
      %2091 = vmatpush1.bf16.xpose.msra.mxu0 0
      %2092 = vmatprep.subr.bf16.mxu0 0
      %2093 = vmatpush1.bf16.xpose.msra.mxu0 0
      %2094 = vmatprep.mubr.bf16.mxu0 0
      %2095 = vmatmul.mubr.bf16.gmra.mrb[0].mxu0 %v2057
      %v2096 = vpop.f32.mrb[0].mxu0
      %v2097 = vadd.f32 %v637, %v2096
      %v2098 = vpop.f32.mrb[0].mxu0
      %v2099 = vpop.f32.mrb[0].mxu0
      %v2100 = vpop.f32.mrb[0].mxu0
      %2101 = vdwg.mxu0
      %v2102 = vsel %vm642, %v2097, -inf
      %2103 = vmax.xlane.f32.xlu0 %v2102
      %v2104 = vpop.xlane.xlu0 %2103
      %v2105 = vsub.f32 %v2097, %v2104
      %v2106 = vmul.f32 %v2105, 1.442695
      %v2107 = vpow.pop %v2106
      %v2108 = vsel %vm642, %v2107, 0.0
      %2109 = vadd.xlane.f32.xlu0 %v2108
      %v2110 = vpop.xlane.xlu0 %2109
      %v2111 = vrcp.pop %v2110
      %v2112 = vmul.f32 %v2107, %v2111
      %v2113 = vpack.c.bf16 %v2112, %v2112
      %2114 = vrot.lane.b32.xlu0 %v1574, 40
      %v2115 = vpop.permute.xlu0 %2114
      %v2117 = vsel %vm642, %v2113, 0
      %v2120 = vsel %vm706, %v2115, 0
      %2122 = vmatprep.subr.bf16.mxu0 0
      %2123 = vmatpush1.bf16.msra.mxu0 %v2120
      %2124 = vmatprep.subr.bf16.mxu0 0
      %2125 = vmatpush1.bf16.msra.mxu0 0
      %2126 = vmatprep.subr.bf16.mxu0 0
      %2127 = vmatpush1.bf16.msra.mxu0 0
      %2128 = vmatprep.subr.bf16.mxu0 0
      %2129 = vmatpush1.bf16.msra.mxu0 0
      %2130 = vmatprep.subr.bf16.mxu0 0
      %2131 = vmatpush1.bf16.msra.mxu0 0
      %2132 = vmatprep.subr.bf16.mxu0 0
      %2133 = vmatpush1.bf16.msra.mxu0 0
      %2134 = vmatprep.subr.bf16.mxu0 0
      %2135 = vmatpush1.bf16.msra.mxu0 0
      %2136 = vmatprep.subr.bf16.mxu0 0
      %2137 = vmatpush1.bf16.msra.mxu0 0
      %2138 = vmatprep.subr.bf16.mxu0 0
      %2139 = vmatpush1.bf16.msra.mxu0 0
      %2140 = vmatprep.subr.bf16.mxu0 0
      %2141 = vmatpush1.bf16.msra.mxu0 0
      %2142 = vmatprep.subr.bf16.mxu0 0
      %2143 = vmatpush1.bf16.msra.mxu0 0
      %2144 = vmatprep.subr.bf16.mxu0 0
      %2145 = vmatpush1.bf16.msra.mxu0 0
      %2146 = vmatprep.subr.bf16.mxu0 0
      %2147 = vmatpush1.bf16.msra.mxu0 0
      %2148 = vmatprep.subr.bf16.mxu0 0
      %2149 = vmatpush1.bf16.msra.mxu0 0
      %2150 = vmatprep.subr.bf16.mxu0 0
      %2151 = vmatpush1.bf16.msra.mxu0 0
      %2152 = vmatprep.subr.bf16.mxu0 0
      %2153 = vmatpush1.bf16.msra.mxu0 0
      %2154 = vmatprep.mubr.bf16.mxu0 0
      %2155 = vmatmul.mubr.bf16.gmra.mrb[0].mxu0 %v2117
      %v2156 = vpop.f32.mrb[0].mxu0
      %v2157 = vadd.f32 0.0, %v2156
      %v2158 = vpop.f32.mrb[0].mxu0
      %v2159 = vpop.f32.mrb[0].mxu0
      %v2160 = vpop.f32.mrb[0].mxu0
      %2161 = vdwg.mxu0
      %v2162 = vpack.c.bf16 %v2157, %v2157
      %s2163 = scalar_lea.vmem %s6, 28
      %v2164 = vld [vmem:[%s2163] sm:$0xf]
      %v2166 = vsel %vm642, %v2162, 0
      %v2169 = vsel %vm706, %v2164, 0
      %2171 = vmatprep.subr.bf16.mxu0 0
      %2172 = vmatpush1.bf16.msra.mxu0 %v2169
      %2173 = vmatprep.subr.bf16.mxu0 0
      %2174 = vmatpush1.bf16.msra.mxu0 0
      %2175 = vmatprep.subr.bf16.mxu0 0
      %2176 = vmatpush1.bf16.msra.mxu0 0
      %2177 = vmatprep.subr.bf16.mxu0 0
      %2178 = vmatpush1.bf16.msra.mxu0 0
      %2179 = vmatprep.subr.bf16.mxu0 0
      %2180 = vmatpush1.bf16.msra.mxu0 0
      %2181 = vmatprep.subr.bf16.mxu0 0
      %2182 = vmatpush1.bf16.msra.mxu0 0
      %2183 = vmatprep.subr.bf16.mxu0 0
      %2184 = vmatpush1.bf16.msra.mxu0 0
      %2185 = vmatprep.subr.bf16.mxu0 0
      %2186 = vmatpush1.bf16.msra.mxu0 0
      %2187 = vmatprep.subr.bf16.mxu0 0
      %2188 = vmatpush1.bf16.msra.mxu0 0
      %2189 = vmatprep.subr.bf16.mxu0 0
      %2190 = vmatpush1.bf16.msra.mxu0 0
      %2191 = vmatprep.subr.bf16.mxu0 0
      %2192 = vmatpush1.bf16.msra.mxu0 0
      %2193 = vmatprep.subr.bf16.mxu0 0
      %2194 = vmatpush1.bf16.msra.mxu0 0
      %2195 = vmatprep.subr.bf16.mxu0 0
      %2196 = vmatpush1.bf16.msra.mxu0 0
      %2197 = vmatprep.subr.bf16.mxu0 0
      %2198 = vmatpush1.bf16.msra.mxu0 0
      %2199 = vmatprep.subr.bf16.mxu0 0
      %2200 = vmatpush1.bf16.msra.mxu0 0
      %2201 = vmatprep.subr.bf16.mxu0 0
      %2202 = vmatpush1.bf16.msra.mxu0 0
      %2203 = vmatprep.mubr.bf16.mxu0 0
      %2204 = vmatmul.mubr.bf16.gmra.mrb[0].mxu0 %v2166
      %v2205 = vpop.f32.mrb[0].mxu0
      %v2206 = vadd.f32 0.0, %v2205
      %v2207 = vpop.f32.mrb[0].mxu0
      %v2208 = vpop.f32.mrb[0].mxu0
      %v2209 = vpop.f32.mrb[0].mxu0
      %2210 = vdwg.mxu0
      %v2211 = vadd.f32 %v2051, %v2206
      %s2212 = scalar_lea.vmem %s7, 1
      %v2213 = vld [vmem:[%s2212] sm:$0x1]
      %v2215 = vlaneseq
      %v2216 = vshrl.u32 %v2215, 7
      %v2217 = vsub.s32 0, %v2216
      %v2218 = vrot.slane %v2213, %v2217
      %v2220 = vadd.f32 %v2211, %v2218
      %v2221 = vadd.f32 %v2220, %v1504
      %s2222 = scalar_lea.vmem %s8, 1
      %v2223 = vld [vmem:[%s2222] sm:$0x1]
      %s2224 = scalar_lea.vmem %s9, 1
      %v2225 = vld [vmem:[%s2224] sm:$0x1]
      %v2226 = vsel %vm536, %v2221, 0.0
      %2227 = vadd.xlane.f32.xlu0 %v2226
      %v2228 = vpop.xlane.xlu0 %2227
      %v2229 = vmul.f32 %v2228, %v540
      %v2230 = vsub.f32 %v2221, %v2229
      %v2231 = vmul.f32 %v2230, %v2230
      %v2232 = vsel %vm536, %v2231, 0.0
      %2233 = vadd.xlane.f32.xlu0 %v2232
      %v2234 = vpop.xlane.xlu0 %2233
      %v2235 = vmul.f32 %v2234, %v540
      %v2236 = vadd.f32 %v2235, 1e-12
      %v2237 = vrsqrt.pop %v2236
      %v2238 = vmul.f32 %v2230, %v2237
      %v2240 = vlaneseq
      %v2241 = vshrl.u32 %v2240, 7
      %v2242 = vsub.s32 0, %v2241
      %v2243 = vrot.slane %v2223, %v2242
      %v2245 = vmul.f32 %v2238, %v2243
      %v2247 = vlaneseq
      %v2248 = vshrl.u32 %v2247, 7
      %v2249 = vsub.s32 0, %v2248
      %v2250 = vrot.slane %v2225, %v2249
      %v2252 = vadd.f32 %v2245, %v2250
      %v2253 = vpack.c.bf16 %v2252, %v2252
      %s2254 = scalar_lea.vmem %s10, 16
      %v2255 = vld [vmem:[%s2254] sm:$0xf]
      %v2256 = vld [vmem:[%s2254 + $0x4] sm:$0xf]
      %v2257 = vld [vmem:[%s2254 + $0x8] sm:$0xf]
      %v2258 = vld [vmem:[%s2254 + $0xc] sm:$0xf]
      %s2259 = scalar_lea.vmem %s11, 1
      %v2260 = vld [vmem:[%s2259] sm:$0x1]
      %v2262 = vlaneseq
      %v2263 = vshrl.u32 %v2262, 7
      %v2264 = vsub.s32 0, %v2263
      %v2265 = vrot.slane %v2260, %v2264
      %v2271 = vunpack.c.l.b16 %v2255
      %v2272 = vunpack.c.l.b16 %v2256
      %v2273 = vunpack.c.l.b16 %v2257
      %v2274 = vunpack.c.l.b16 %v2258
      %v2275 = vpack.c.b16 %v2272, %v2271
      %v2276 = vpack.c.b16 %v2274, %v2273
      %v2280 = vsel %vm536, %v2253, 0
      %2282 = vmatprep.subr.bf16.mxu0 0
      %2283 = vmatpush1.bf16.msra.mxu0 %v2275
      %2284 = vmatprep.subr.bf16.mxu0 0
      %2285 = vmatpush1.bf16.msra.mxu0 %v2276
      %2286 = vmatprep.subr.bf16.mxu0 0
      %2287 = vmatpush1.bf16.msra.mxu0 0
      %2288 = vmatprep.subr.bf16.mxu0 0
      %2289 = vmatpush1.bf16.msra.mxu0 0
      %2290 = vmatprep.subr.bf16.mxu0 0
      %2291 = vmatpush1.bf16.msra.mxu0 0
      %2292 = vmatprep.subr.bf16.mxu0 0
      %2293 = vmatpush1.bf16.msra.mxu0 0
      %2294 = vmatprep.subr.bf16.mxu0 0
      %2295 = vmatpush1.bf16.msra.mxu0 0
      %2296 = vmatprep.subr.bf16.mxu0 0
      %2297 = vmatpush1.bf16.msra.mxu0 0
      %2298 = vmatprep.subr.bf16.mxu0 0
      %2299 = vmatpush1.bf16.msra.mxu0 0
      %2300 = vmatprep.subr.bf16.mxu0 0
      %2301 = vmatpush1.bf16.msra.mxu0 0
      %2302 = vmatprep.subr.bf16.mxu0 0
      %2303 = vmatpush1.bf16.msra.mxu0 0
      %2304 = vmatprep.subr.bf16.mxu0 0
      %2305 = vmatpush1.bf16.msra.mxu0 0
      %2306 = vmatprep.subr.bf16.mxu0 0
      %2307 = vmatpush1.bf16.msra.mxu0 0
      %2308 = vmatprep.subr.bf16.mxu0 0
      %2309 = vmatpush1.bf16.msra.mxu0 0
      %2310 = vmatprep.subr.bf16.mxu0 0
      %2311 = vmatpush1.bf16.msra.mxu0 0
      %2312 = vmatprep.subr.bf16.mxu0 0
      %2313 = vmatpush1.bf16.msra.mxu0 0
      %2314 = vmatprep.mubr.bf16.mxu0 0
      %2315 = vmatmul.mubr.bf16.gmra.mrb[0].mxu0 %v2280
      %v2316 = vpop.f32.mrb[0].mxu0
      %v2317 = vadd.f32 %v2265, %v2316
      %v2318 = vpop.f32.mrb[0].mxu0
      %v2319 = vpop.f32.mrb[0].mxu0
      %v2320 = vpop.f32.mrb[0].mxu0
      %2321 = vdwg.mxu0
      %v2322 = vmul.f32 %v2317, 0.5
      %v2323 = vmul.f32 %v2317, 0.044715
      %v2324 = vmul.f32 %v2323, %v2317
      %v2325 = vmul.f32 %v2324, %v2317
      %v2326 = vadd.f32 %v2317, %v2325
      %v2327 = vmul.f32 %v2326, 0.7978846
      %v2328 = vtanh.pop %v2327
      %v2329 = vadd.f32 %v2328, 1.0
      %v2330 = vmul.f32 %v2322, %v2329
      %v2331 = vpack.c.bf16 %v2330, %v2330
      %s2332 = scalar_lea.vmem %s12, 32
      %v2333 = vld [vmem:[%s2332] sm:$0xf]
      %v2334 = vld [vmem:[%s2332 + $0x4] sm:$0xf]
      %v2335 = vld [vmem:[%s2332 + $0x8] sm:$0xf]
      %v2336 = vld [vmem:[%s2332 + $0xc] sm:$0xf]
      %v2337 = vld [vmem:[%s2332 + $0x10] sm:$0xf]
      %v2338 = vld [vmem:[%s2332 + $0x14] sm:$0xf]
      %v2339 = vld [vmem:[%s2332 + $0x18] sm:$0xf]
      %v2340 = vld [vmem:[%s2332 + $0x1c] sm:$0xf]
      %s2341 = scalar_lea.vmem %s13, 1
      %v2342 = vld [vmem:[%s2341] sm:$0x1]
      %v2344 = vlaneseq
      %v2345 = vshrl.u32 %v2344, 7
      %v2346 = vsub.s32 0, %v2345
      %v2347 = vrot.slane %v2342, %v2346
      %v2357 = vunpack.c.l.b16 %v2333
      %v2358 = vunpack.c.l.b16 %v2334
      %v2359 = vunpack.c.l.b16 %v2335
      %v2360 = vunpack.c.l.b16 %v2336
      %v2361 = vunpack.c.l.b16 %v2337
      %v2362 = vunpack.c.l.b16 %v2338
      %v2363 = vunpack.c.l.b16 %v2339
      %v2364 = vunpack.c.l.b16 %v2340
      %v2365 = vpack.c.b16 %v2358, %v2357
      %v2366 = vpack.c.b16 %v2360, %v2359
      %v2367 = vpack.c.b16 %v2362, %v2361
      %v2368 = vpack.c.b16 %v2364, %v2363
      %v2374 = vsel %vm1431, %v2331, 0
      %2376 = vmatprep.subr.bf16.mxu0 0
      %2377 = vmatpush1.bf16.msra.mxu0 %v2365
      %2378 = vmatprep.subr.bf16.mxu0 0
      %2379 = vmatpush1.bf16.msra.mxu0 %v2366
      %2380 = vmatprep.subr.bf16.mxu0 0
      %2381 = vmatpush1.bf16.msra.mxu0 %v2367
      %2382 = vmatprep.subr.bf16.mxu0 0
      %2383 = vmatpush1.bf16.msra.mxu0 %v2368
      %2384 = vmatprep.subr.bf16.mxu0 0
      %2385 = vmatpush1.bf16.msra.mxu0 0
      %2386 = vmatprep.subr.bf16.mxu0 0
      %2387 = vmatpush1.bf16.msra.mxu0 0
      %2388 = vmatprep.subr.bf16.mxu0 0
      %2389 = vmatpush1.bf16.msra.mxu0 0
      %2390 = vmatprep.subr.bf16.mxu0 0
      %2391 = vmatpush1.bf16.msra.mxu0 0
      %2392 = vmatprep.subr.bf16.mxu0 0
      %2393 = vmatpush1.bf16.msra.mxu0 0
      %2394 = vmatprep.subr.bf16.mxu0 0
      %2395 = vmatpush1.bf16.msra.mxu0 0
      %2396 = vmatprep.subr.bf16.mxu0 0
      %2397 = vmatpush1.bf16.msra.mxu0 0
      %2398 = vmatprep.subr.bf16.mxu0 0
      %2399 = vmatpush1.bf16.msra.mxu0 0
      %2400 = vmatprep.subr.bf16.mxu0 0
      %2401 = vmatpush1.bf16.msra.mxu0 0
      %2402 = vmatprep.subr.bf16.mxu0 0
      %2403 = vmatpush1.bf16.msra.mxu0 0
      %2404 = vmatprep.subr.bf16.mxu0 0
      %2405 = vmatpush1.bf16.msra.mxu0 0
      %2406 = vmatprep.subr.bf16.mxu0 0
      %2407 = vmatpush1.bf16.msra.mxu0 0
      %2408 = vmatprep.mubr.bf16.mxu0 0
      %2409 = vmatmul.mubr.bf16.gmra.mrb[0].mxu0 %v2374
      %v2410 = vpop.f32.mrb[0].mxu0
      %v2411 = vadd.f32 %v2347, %v2410
      %v2412 = vpop.f32.mrb[0].mxu0
      %v2413 = vpop.f32.mrb[0].mxu0
      %v2414 = vpop.f32.mrb[0].mxu0
      %2415 = vdwg.mxu0
      %v2416 = vadd.f32 %v2411, %v2252
      %s2417 = scalar_lea.vmem %s14, 1
      %v2418 = vld [vmem:[%s2417] sm:$0x1]
      %s2419 = scalar_lea.vmem %s15, 1
      %v2420 = vld [vmem:[%s2419] sm:$0x1]
      %v2421 = vsel %vm536, %v2416, 0.0
      %2422 = vadd.xlane.f32.xlu0 %v2421
      %v2423 = vpop.xlane.xlu0 %2422
      %v2424 = vmul.f32 %v2423, %v540
      %v2425 = vsub.f32 %v2416, %v2424
      %v2426 = vmul.f32 %v2425, %v2425
      %v2427 = vsel %vm536, %v2426, 0.0
      %2428 = vadd.xlane.f32.xlu0 %v2427
      %v2429 = vpop.xlane.xlu0 %2428
      %v2430 = vmul.f32 %v2429, %v540
      %v2431 = vadd.f32 %v2430, 1e-12
      %v2432 = vrsqrt.pop %v2431
      %v2433 = vmul.f32 %v2425, %v2432
      %v2435 = vlaneseq
      %v2436 = vshrl.u32 %v2435, 7
      %v2437 = vsub.s32 0, %v2436
      %v2438 = vrot.slane %v2418, %v2437
      %v2440 = vmul.f32 %v2433, %v2438
      %v2442 = vlaneseq
      %v2443 = vshrl.u32 %v2442, 7
      %v2444 = vsub.s32 0, %v2443
      %v2445 = vrot.slane %v2420, %v2444
      %v2447 = vadd.f32 %v2440, %v2445
      %2448 = vst.msk [vmem:[%s530] sm:$0xff] %vm536, %v2447
      %p2449 = scmp.lt.s32.totalorder %s27, 1
      %s2450 = scalar_select %p2449, %s27, 1
      %s2451 = smul.addr %s2450, 8
      %s2452 = scalar_lea.vmem %s16, %s2451
      // Predicated region
      $region85: #{sentiment_classifier_forward.1} parent=83 // pred_check
        %p2453 = pneg %p391
      $region86: #{sentiment_classifier_forward.1} parent=83 // pred_check_branch
        %2455 = sbr.rel (%p2453) target = $region88
      $region87: #{sentiment_classifier_forward.1} parent=83 // pred_region
        _
      $region88: #{sentiment_classifier_forward.1} parent=83 // pred_fallthru
        _
    $region84: #{sentiment_classifier_forward.1} parent=5 // pred_fallthru
      _
    %p2456 = scmp.le.s32.totalorder 2, %s22
    // Predicated region
    $region89: #{sentiment_classifier_forward.1} parent=5 // pred_check
      %p2457 = pneg %p2456
    $region90: #{sentiment_classifier_forward.1} parent=5 // pred_check_branch
      %2459 = sbr.rel (%p2457) target = $region92
    $region91: #{sentiment_classifier_forward.1} parent=5 // pred_region
      %s2460 = ssub.s32 %s22, 2
      // Predicated region
      $region93: #{sentiment_classifier_forward.1} parent=91 // pred_check
        %p2461 = pneg %p397
      $region94: #{sentiment_classifier_forward.1} parent=91 // pred_check_branch
        %2463 = sbr.rel (%p2461) target = $region96
      $region95: #{sentiment_classifier_forward.1} parent=91 // pred_region
        %p2464 = scmp.lt.s32.totalorder %s28, 1
        %s2465 = scalar_select %p2464, %s28, 1
        %s2466 = smul.addr %s2465, 8
        %s2467 = scalar_lea.vmem %s16, %s2466
      $region96: #{sentiment_classifier_forward.1} parent=91 // pred_fallthru
        _
    $region92: #{sentiment_classifier_forward.1} parent=5 // pred_fallthru
      _
  $region6: #{sentiment_classifier_forward.1} parent=0 // loop_footer
    %s26 = sadd.s32 1, %s22
  $region7: #{sentiment_classifier_forward.1} parent=0 // loop_footer_branch
    %21 = sbr.rel target = $region3
  $region8: #{sentiment_classifier_forward.1} parent=0 // loop_exit
    _

</llo_original>
